<compile_context>
chip_gen: v5e
topology: v5e:2x2
jax: 0.10.0
libtpu: 0.0.40
codegen_flags: <defaults>
</compile_context>

<pallas_src>
import functools

import jax
import jax.numpy as jnp
from jax.experimental import pallas as pl
from jax.experimental.pallas import tpu as pltpu


# ----------------------------- Pallas kernels ------------------------------


def _light_extract_kernel(fg_ref, bg_ref, w_ref, b_ref, ratio_ref, inten_ref,
                          *, n_mod, dim):
    # fg/bg: (B, Lm); w: (Lm, n_mod*4*dim); b: (1, n_mod*4*dim)
    # ratio out: (3*n_mod, B, dim) = bg_ratio / (fg_ratio + 1e-8)
    # inten out: (n_mod,  B, dim) = bg_intensity - fg_intensity
    w = w_ref[...]
    b = b_ref[...]
    zf = jnp.maximum(
        jnp.dot(fg_ref[...], w, preferred_element_type=jnp.float32) + b, 0.0)
    zb = jnp.maximum(
        jnp.dot(bg_ref[...], w, preferred_element_type=jnp.float32) + b, 0.0)

    def ratio_inten(z, base):
        i0 = z[:, base:base + dim]                                # intensity group
        c = [z[:, base + (g + 1) * dim:base + (g + 2) * dim] for g in range(3)]
        mx = jnp.maximum(jnp.maximum(c[0], c[1]), c[2])           # softmax (colors)
        e = [jnp.exp(cg - mx) for cg in c]
        inv_s = 1.0 / (e[0] + e[1] + e[2])
        return [eg * inv_s for eg in e], i0

    for m in range(n_mod):
        base = m * 4 * dim
        fr, fi = ratio_inten(zf, base)
        br, bi = ratio_inten(zb, base)
        for g in range(3):
            ratio_ref[m * 3 + g] = br[g] / (fr[g] + 1e-8)
        inten_ref[m] = bi - fi


def _resblock_kernel(x_ref, mask_ref, vmask_ref, halo_ref,
                     w1_ref, b1_ref, wr1_ref, br1_ref, gw1_ref, gb1_ref,
                     r1_ref, i1_ref,
                     w2_ref, b2_ref, wr2_ref, br2_ref, gw2_ref, gb2_ref,
                     r2_ref, i2_ref,
                     lng_ref, lnb_ref,
                     o_ref, col_scr, *, H, W, P128):
    """One full Lighting resblock for one batch element, fully VMEM resident.

    Layout: flat padded grid, lane p = row*(W+2) + col over the (H+2)x(W+2)
    halo grid, padded with junk lanes up to P128 (multiple of 128).  Interior
    pixels are rows 1..H, cols 1..W.  Halo/tail lanes are junk: excluded from
    every statistic via `vmask`, forced to 0 on the blended path (fg mask is 0
    there), and rebuilt by in-kernel reflection before each conv.  NOTE: do
    NOT consume the raw (C, P128) output without slicing the interior.
    """
    C = b1_ref.shape[0]
    Wp = W + 2
    n_valid = float(C * H * W)
    inv_n = 1.0 / n_valid

    vmask = vmask_ref[...]                               # (1, P128) 1.0 at interior
    m = mask_ref[...]                                    # (1, P128) fg mask, 0 at junk
    one_minus_m = 1.0 - m
    halo = halo_ref[...]                                 # (4, P128) top/bot/left/right

    def shifted(v, d):
        # out[p] = v[p + d]; wrap-around only ever lands on junk lanes.
        if d == 0:
            return v
        return pltpu.roll(v, (-d) % P128, axis=1)

    def reflect(v):
        # Fill the 1-pixel halo by reflection (rows first, then cols, so the
        # corners pick up interior values exactly like nn.ReflectionPad2d(1)).
        # Interior lanes are untouched (blend weight is 0 there).
        v = v + halo[0:1] * (shifted(v, 2 * Wp) - v)     # top    <- padded row 2
        v = v + halo[1:2] * (shifted(v, -2 * Wp) - v)    # bottom <- padded row H-1
        v = v + halo[2:3] * (shifted(v, 2) - v)          # left   <- padded col 2
        v = v + halo[3:4] * (shifted(v, -2) - v)         # right  <- padded col W-1
        return v

    def conv3x3(v, w_ref_, b_ref_):
        # Single K = 9*C MXU dot over a bf16 im2col scratch built from 9
        # lane-dense rolled copies of the padded-flat input (cast fused into
        # the one im2col pass).  C should be even so the bf16 sublane stores
        # stay packed-word aligned (true for the module's channel counts).
        for t in range(9):
            dy, dx = divmod(t, 3)
            d = (dy - 1) * Wp + (dx - 1)
            col_scr[t * C:(t + 1) * C, :] = shifted(v, d).astype(jnp.bfloat16)
        return jnp.dot(w_ref_[...], col_scr[...],
                       preferred_element_type=jnp.float32) + b_ref_[...]

    def lighting(xm, wr_ref_, br_ref_, gw_ref_, gb_ref_, ratio_ref_, inten_ref_):
        # xm: conv_i output with junk lanes already exactly 0, so the
        # zero-padded rgb conv needs no extra pad buffer.
        rgb = conv3x3(xm, wr_ref_, br_ref_)              # (3C, P128) value, f32
        gw = gw_ref_[...]
        gb = gb_ref_[...]
        ratio = ratio_ref_[...]
        x_t = jnp.zeros_like(xm)
        for g in range(3):
            v = rgb[g * C:(g + 1) * C, :] * vmask        # junk -> 0
            s1 = jnp.sum(v)
            s2 = jnp.sum(v * v)
            mean = s1 * inv_n
            var = jnp.maximum(s2 * inv_n - mean * mean, 0.0)   # biased (GroupNorm)
            gn = (v - mean) * jax.lax.rsqrt(var + 1e-5)
            gn = gn * gw[g * C:(g + 1) * C, :] + gb[g * C:(g + 1) * C, :]
            x_t = x_t + jnp.maximum(gn, 0.0) * ratio[g * C:(g + 1) * C, :]
        return x_t + inten_ref_[...]

    def layer_norm(v):
        # MUNIT LayerNorm: per-sample mean / unbiased std, divide by (std+eps).
        # v is exactly 0 on junk lanes, so plain sums are the masked sums.
        s1 = jnp.sum(v)
        s2 = jnp.sum(v * v)
        mean = s1 / n_valid
        var = jnp.maximum((s2 - n_valid * mean * mean) / (n_valid - 1.0), 0.0)
        y = (v - mean) / (jnp.sqrt(var) + 1e-5)
        return y * lng_ref[...] + lnb_ref[...]

    def half(v_in, w_ref_, b_ref_, wr_ref_, br_ref_, gw_ref_, gb_ref_,
             ratio_ref_, inten_ref_):
        xc = conv3x3(reflect(v_in), w_ref_, b_ref_) * vmask     # conv_i, junk -> 0
        x_t = lighting(xc, wr_ref_, br_ref_, gw_ref_, gb_ref_,
                       ratio_ref_, inten_ref_)
        xl = xc * one_minus_m + x_t * m                  # fg-mask blend (junk stays 0)
        return layer_norm(xl)

    x_in = x_ref[...]

    y1 = half(x_in, w1_ref, b1_ref, wr1_ref, br1_ref, gw1_ref, gb1_ref,
              r1_ref, i1_ref)
    y1 = jnp.where(y1 >= 0, y1, 0.2 * y1)                # F.leaky_relu(., 0.2)

    y2 = half(y1, w2_ref, b2_ref, wr2_ref, br2_ref, gw2_ref, gb2_ref,
              r2_ref, i2_ref)
    o_ref[...] = y2 + x_in                               # outer residual


# --------------------------- pallas_call wrappers ---------------------------


def light_extract(fg, bg, w_all, b_all, *, dim, n_mod):
    B = fg.shape[0]
    kern = functools.partial(_light_extract_kernel, n_mod=n_mod, dim=dim)
    return pl.pallas_call(
        kern,
        out_shape=(jax.ShapeDtypeStruct((n_mod * 3, B, dim), jnp.float32),
                   jax.ShapeDtypeStruct((n_mod, B, dim), jnp.float32)),
    )(fg, bg, w_all, b_all)


def fused_resblock(xp, mask_pad, vmask, halo, p, r1, i1, r2, i2, *, H, W, P128):
    B, C, _ = xp.shape
    C3 = 3 * C
    K9 = 9 * C
    lt1, lt2 = p['lt1'], p['lt2']

    def const(shape):
        return pl.BlockSpec(shape, lambda b: (0,) * len(shape))

    def per_batch(shape):
        return pl.BlockSpec((pl.Squeezed(),) + shape,
                            lambda b: (b,) + (0,) * len(shape))

    in_specs = [
        per_batch((C, P128)),                   # x (padded-flat activation)
        per_batch((1, P128)),                   # fg mask (padded-flat, 0 on junk)
        const((1, P128)),                       # valid-interior mask
        const((4, P128)),                       # halo masks
        const((C, K9)), const((C, 1)),          # conv1 taps (bf16) / bias
        const((C3, K9)), const((C3, 1)),        # rgb1 taps (bf16) / bias
        const((C3, 1)), const((C3, 1)),         # GroupNorm1 weight / bias
        per_batch((C3, 1)), per_batch((C, 1)),  # ratio1 / intensity1
        const((C, K9)), const((C, 1)),          # conv2 taps / bias
        const((C3, K9)), const((C3, 1)),        # rgb2 taps / bias
        const((C3, 1)), const((C3, 1)),         # GroupNorm2 weight / bias
        per_batch((C3, 1)), per_batch((C, 1)),  # ratio2 / intensity2
        const((C, 1)), const((C, 1)),           # LayerNorm gamma / beta
    ]
    args = [xp, mask_pad, vmask, halo,
            p['conv1_w'], p['conv1_b'], lt1['rgb_w'], lt1['rgb_b'],
            lt1['gn_w'], lt1['gn_b'], r1, i1,
            p['conv2_w'], p['conv2_b'], lt2['rgb_w'], lt2['rgb_b'],
            lt2['gn_w'], lt2['gn_b'], r2, i2,
            p['ln_gamma'], p['ln_beta']]

    kern = functools.partial(_resblock_kernel, H=H, W=W, P128=P128)
    return pl.pallas_call(
        kern,
        out_shape=jax.ShapeDtypeStruct((B, C, P128), jnp.float32),
        grid=(B,),
        in_specs=in_specs,
        out_specs=per_batch((C, P128)),
        scratch_shapes=[pltpu.VMEM((K9, P128), jnp.bfloat16)],   # im2col columns
        compiler_params=pltpu.CompilerParams(
            dimension_semantics=("parallel",),                   # 2 TCs on v7x
            vmem_limit_bytes=32 * 1024 * 1024),
    )(*args)


# ------------------------ host-side layout helpers --------------------------


def _round_up(v, mult):
    return ((v + mult - 1) // mult) * mult


def _embed_padded_flat(img, P128):
    # (B, K, H, W) -> (B, K, P128): values at padded interior (row+1, col+1)
    # of the (H+2)x(W+2) grid; halo and tail lanes are 0.
    B, K, H, W = img.shape
    P = (H + 2) * (W + 2)
    xp = jnp.pad(img, ((0, 0), (0, 0), (1, 1), (1, 1)))
    xp = xp.reshape(B, K, P)
    return jnp.pad(xp, ((0, 0), (0, 0), (0, P128 - P)))


def _extract_interior(y, H, W):
    # (B, C, P128) -> (B, C, H, W): keep only the interior lanes.
    B, C, _ = y.shape
    Hp, Wp = H + 2, W + 2
    return y[:, :, :Hp * Wp].reshape(B, C, Hp, Wp)[:, :, 1:H + 1, 1:W + 1]


def _make_masks(H, W, P128):
    Hp, Wp = H + 2, W + 2
    P = Hp * Wp
    idx = jnp.arange(P128, dtype=jnp.int32)
    row = idx // Wp
    col = idx % Wp
    in_grid = idx < P
    interior = in_grid & (row >= 1) & (row <= H) & (col >= 1) & (col <= W)
    vmask = interior.astype(jnp.float32).reshape(1, P128)
    halo = jnp.stack([
        in_grid & (row == 0),                 # top halo row
        in_grid & (row == H + 1),             # bottom halo row
        in_grid & (col == 0),                 # left halo col (incl. corners)
        in_grid & (col == Wp - 1),            # right halo col (incl. corners)
    ]).astype(jnp.float32)
    return vmask, halo


# ------------------------------ forward pass --------------------------------


def lighting_res_blocks_forward(x, fg, bg, fg_mask, params, *, dim):
    B, C, H, W = x.shape
    P128 = _round_up((H + 2) * (W + 2), 128)
    vmask, halo = _make_masks(H, W, P128)
    mask_pad = _embed_padded_flat(fg_mask, P128)              # (B, 1, P128)

    # All lighting MLPs (2 per block) in one tiny pallas_call (fg/bg shared).
    w_all = jnp.concatenate(
        [p[k]['mlp_w'] for p in params for k in ('lt1', 'lt2')], axis=1)
    b_all = jnp.concatenate(
        [p[k]['mlp_b'] for p in params for k in ('lt1', 'lt2')], axis=0)
    b_all = b_all.reshape(1, -1)
    n_mod = 2 * len(params)
    ratio_all, inten_all = light_extract(fg, bg, w_all, b_all, dim=dim, n_mod=n_mod)

    def take(mi):
        r = ratio_all[mi * 3:(mi + 1) * 3]                    # (3, B, dim)
        r = jnp.transpose(r, (1, 0, 2)).reshape(B, 3 * dim, 1)
        it = inten_all[mi].reshape(B, dim, 1)
        return r, it

    # Resblocks chain directly on the padded-flat activation (no host glue).
    xp = _embed_padded_flat(x, P128)                          # (B, C, P128)
    for i, p in enumerate(params):
        r1, i1 = take(2 * i)
        r2, i2 = take(2 * i + 1)
        xp = fused_resblock(xp, mask_pad, vmask, halo, p, r1, i1, r2, i2,
                            H=H, W=W, P128=P128)
    return _extract_interior(xp, H, W)


# --------------------------------- params -----------------------------------


def init_params(key, num_blocks, dim, light_mlp_dim):
    params = []
    for _ in range(num_blocks):
        key, k1, k2, k3, k4, k5, k6, k7 = jax.random.split(key, 8)

        def conv_params(ka, kb, cout, cin):
            w = jax.random.normal(ka, (cout, cin, 3, 3), jnp.float32) * 0.1
            b = jax.random.normal(kb, (cout,), jnp.float32) * 0.1
            # tap-major (Cout, 9*Cin) layout matching the in-kernel im2col rows
            # (k = tap*Cin + ci); bf16 for the MXU, accumulation stays f32.
            w_flat = jnp.transpose(w, (0, 2, 3, 1)).reshape(cout, 9 * cin)
            return w_flat.astype(jnp.bfloat16), b.reshape(cout, 1)

        def lighting_params(k):
            ka, kb, kc, kd = jax.random.split(k, 4)
            mlp_w = jax.random.normal(ka, (light_mlp_dim, 4 * dim), jnp.float32) * 0.2
            mlp_b = jax.random.normal(kb, (4 * dim,), jnp.float32) * 0.1
            rgb_w, rgb_b = conv_params(kc, kd, 3 * dim, dim)
            return dict(mlp_w=mlp_w, mlp_b=mlp_b, rgb_w=rgb_w, rgb_b=rgb_b,
                        gn_w=jnp.ones((3 * dim, 1), jnp.float32),   # GroupNorm defaults
                        gn_b=jnp.zeros((3 * dim, 1), jnp.float32))

        conv1_w, conv1_b = conv_params(k1, k2, dim, dim)
        conv2_w, conv2_b = conv_params(k3, k4, dim, dim)
        lt1 = lighting_params(k5)
        lt2 = lighting_params(k6)
        ln_gamma = jax.random.uniform(k7, (dim, 1), jnp.float32)    # torch .uniform_()
        ln_beta = jnp.zeros((dim, 1), jnp.float32)
        params.append(dict(conv1_w=conv1_w, conv1_b=conv1_b,
                           conv2_w=conv2_w, conv2_b=conv2_b,
                           lt1=lt1, lt2=lt2,
                           ln_gamma=ln_gamma, ln_beta=ln_beta))
    return params


if __name__ == "__main__":
    num_blocks = 2
    dim = 4
    light_mlp_dim = 8
    B, H, W = 2, 16, 16

    key = jax.random.PRNGKey(0)
    kx, kf, kb, km, kp = jax.random.split(key, 5)
    x = jax.random.normal(kx, (B, dim, H, W), jnp.float32)
    fg = jax.random.normal(kf, (B, light_mlp_dim), jnp.float32)
    bg = jax.random.normal(kb, (B, light_mlp_dim), jnp.float32)
    fg_mask = jax.nn.sigmoid(jax.random.normal(km, (B, 1, H, W), jnp.float32))

    params = init_params(kp, num_blocks, dim, light_mlp_dim)

    fwd = jax.jit(functools.partial(lighting_res_blocks_forward, dim=dim))
    out = jax.block_until_ready(fwd(x, fg, bg, fg_mask, params))
    assert out.shape == (B, dim, H, W)
    assert bool(jnp.all(jnp.isfinite(out)))
    print("KERNEL_OK")
</pallas_src>

<mosaic_0001>
module attributes {stable_mosaic.version = 11 : i64} {
  func.func @_light_extract_kernel(%arg0: memref<2x8xf32, #tpu.memory_space<vmem>>, %arg1: memref<2x8xf32, #tpu.memory_space<vmem>>, %arg2: memref<8x64xf32, #tpu.memory_space<vmem>>, %arg3: memref<1x64xf32, #tpu.memory_space<vmem>>, %arg4: memref<12x2x4xf32, #tpu.memory_space<vmem>>, %arg5: memref<4x2x4xf32, #tpu.memory_space<vmem>>) attributes {dimension_semantics = [], scalar_prefetch = 0 : i64, scratch_operands = 0 : i64, tpu.core_type = #tpu.core_type<tc>} {
    %c0 = arith.constant 0 : index
    %c0_0 = arith.constant 0 : index
    %0 = vector.load %arg2[%c0, %c0_0] : memref<8x64xf32, #tpu.memory_space<vmem>>, vector<8x64xf32>
    %c0_1 = arith.constant 0 : index
    %c0_2 = arith.constant 0 : index
    %1 = vector.load %arg3[%c0_1, %c0_2] : memref<1x64xf32, #tpu.memory_space<vmem>>, vector<1x64xf32>
    %c0_3 = arith.constant 0 : index
    %c0_4 = arith.constant 0 : index
    %2 = vector.load %arg0[%c0_3, %c0_4] : memref<2x8xf32, #tpu.memory_space<vmem>>, vector<2x8xf32>
    %cst = arith.constant dense<0.000000e+00> : vector<2x64xf32>
    %3 = tpu.matmul %2, %0, %cst {dimension_numbers = #tpu.dot_dimension_numbers<[1], [0], [0], [1], [0, 0, 1, 1], [], []>} : vector<2x8xf32>, vector<8x64xf32>, vector<2x64xf32> -> vector<2x64xf32>
    %4 = vector.broadcast %1 : vector<1x64xf32> to vector<2x64xf32>
    %5 = arith.addf %3, %4 : vector<2x64xf32>
    %cst_5 = arith.constant 0.000000e+00 : f32
    %6 = vector.broadcast %cst_5 : f32 to vector<2x64xf32>
    %7 = arith.maximumf %5, %6 : vector<2x64xf32>
    %c0_6 = arith.constant 0 : index
    %c0_7 = arith.constant 0 : index
    %8 = vector.load %arg1[%c0_6, %c0_7] : memref<2x8xf32, #tpu.memory_space<vmem>>, vector<2x8xf32>
    %cst_8 = arith.constant dense<0.000000e+00> : vector<2x64xf32>
    %9 = tpu.matmul %8, %0, %cst_8 {dimension_numbers = #tpu.dot_dimension_numbers<[1], [0], [0], [1], [0, 0, 1, 1], [], []>} : vector<2x8xf32>, vector<8x64xf32>, vector<2x64xf32> -> vector<2x64xf32>
    %10 = vector.broadcast %1 : vector<1x64xf32> to vector<2x64xf32>
    %11 = arith.addf %9, %10 : vector<2x64xf32>
    %cst_9 = arith.constant 0.000000e+00 : f32
    %12 = vector.broadcast %cst_9 : f32 to vector<2x64xf32>
    %13 = arith.maximumf %11, %12 : vector<2x64xf32>
    %14 = vector.extract_strided_slice %7 {offsets = [0, 0], sizes = [2, 4], strides = [1, 1]} : vector<2x64xf32> to vector<2x4xf32>
    %15 = vector.extract_strided_slice %7 {offsets = [0, 4], sizes = [2, 4], strides = [1, 1]} : vector<2x64xf32> to vector<2x4xf32>
    %16 = vector.extract_strided_slice %7 {offsets = [0, 8], sizes = [2, 4], strides = [1, 1]} : vector<2x64xf32> to vector<2x4xf32>
    %17 = vector.extract_strided_slice %7 {offsets = [0, 12], sizes = [2, 4], strides = [1, 1]} : vector<2x64xf32> to vector<2x4xf32>
    %18 = arith.maximumf %15, %16 : vector<2x4xf32>
    %19 = arith.maximumf %18, %17 : vector<2x4xf32>
    %20 = arith.subf %15, %19 : vector<2x4xf32>
    %21 = math.exp %20 : vector<2x4xf32>
    %22 = arith.subf %16, %19 : vector<2x4xf32>
    %23 = math.exp %22 : vector<2x4xf32>
    %24 = arith.subf %17, %19 : vector<2x4xf32>
    %25 = math.exp %24 : vector<2x4xf32>
    %26 = arith.addf %21, %23 : vector<2x4xf32>
    %27 = arith.addf %26, %25 : vector<2x4xf32>
    %cst_10 = arith.constant 1.000000e+00 : f32
    %28 = vector.broadcast %cst_10 : f32 to vector<2x4xf32>
    %29 = arith.divf %28, %27 : vector<2x4xf32>
    %30 = arith.mulf %21, %29 : vector<2x4xf32>
    %31 = arith.mulf %23, %29 : vector<2x4xf32>
    %32 = arith.mulf %25, %29 : vector<2x4xf32>
    %33 = vector.extract_strided_slice %13 {offsets = [0, 0], sizes = [2, 4], strides = [1, 1]} : vector<2x64xf32> to vector<2x4xf32>
    %34 = vector.extract_strided_slice %13 {offsets = [0, 4], sizes = [2, 4], strides = [1, 1]} : vector<2x64xf32> to vector<2x4xf32>
    %35 = vector.extract_strided_slice %13 {offsets = [0, 8], sizes = [2, 4], strides = [1, 1]} : vector<2x64xf32> to vector<2x4xf32>
    %36 = vector.extract_strided_slice %13 {offsets = [0, 12], sizes = [2, 4], strides = [1, 1]} : vector<2x64xf32> to vector<2x4xf32>
    %37 = arith.maximumf %34, %35 : vector<2x4xf32>
    %38 = arith.maximumf %37, %36 : vector<2x4xf32>
    %39 = arith.subf %34, %38 : vector<2x4xf32>
    %40 = math.exp %39 : vector<2x4xf32>
    %41 = arith.subf %35, %38 : vector<2x4xf32>
    %42 = math.exp %41 : vector<2x4xf32>
    %43 = arith.subf %36, %38 : vector<2x4xf32>
    %44 = math.exp %43 : vector<2x4xf32>
    %45 = arith.addf %40, %42 : vector<2x4xf32>
    %46 = arith.addf %45, %44 : vector<2x4xf32>
    %cst_11 = arith.constant 1.000000e+00 : f32
    %47 = vector.broadcast %cst_11 : f32 to vector<2x4xf32>
    %48 = arith.divf %47, %46 : vector<2x4xf32>
    %49 = arith.mulf %40, %48 : vector<2x4xf32>
    %50 = arith.mulf %42, %48 : vector<2x4xf32>
    %51 = arith.mulf %44, %48 : vector<2x4xf32>
    %cst_12 = arith.constant 9.99999993E-9 : f32
    %52 = vector.broadcast %cst_12 : f32 to vector<2x4xf32>
    %53 = arith.addf %30, %52 : vector<2x4xf32>
    %54 = arith.divf %49, %53 : vector<2x4xf32>
    %c0_13 = arith.constant 0 : index
    %c0_14 = arith.constant 0 : index
    %c0_15 = arith.constant 0 : index
    %55 = vector.load %arg4[%c0_13, %c0_14, %c0_15] : memref<12x2x4xf32, #tpu.memory_space<vmem>>, vector<1x2x4xf32>
    %56 = vector.shape_cast %55 : vector<1x2x4xf32> to vector<2x4xf32>
    %57 = vector.shape_cast %54 : vector<2x4xf32> to vector<1x2x4xf32>
    tpu.vector_store %arg4[%c0_13, %c0_14, %c0_15], %57 {strides = array<i32>} : memref<12x2x4xf32, #tpu.memory_space<vmem>>, vector<1x2x4xf32>,
    %cst_16 = arith.constant 9.99999993E-9 : f32
    %58 = vector.broadcast %cst_16 : f32 to vector<2x4xf32>
    %59 = arith.addf %31, %58 : vector<2x4xf32>
    %60 = arith.divf %50, %59 : vector<2x4xf32>
    %c1 = arith.constant 1 : index
    %c0_17 = arith.constant 0 : index
    %c0_18 = arith.constant 0 : index
    %61 = vector.load %arg4[%c1, %c0_17, %c0_18] : memref<12x2x4xf32, #tpu.memory_space<vmem>>, vector<1x2x4xf32>
    %62 = vector.shape_cast %61 : vector<1x2x4xf32> to vector<2x4xf32>
    %63 = vector.shape_cast %60 : vector<2x4xf32> to vector<1x2x4xf32>
    tpu.vector_store %arg4[%c1, %c0_17, %c0_18], %63 {strides = array<i32>} : memref<12x2x4xf32, #tpu.memory_space<vmem>>, vector<1x2x4xf32>,
    %cst_19 = arith.constant 9.99999993E-9 : f32
    %64 = vector.broadcast %cst_19 : f32 to vector<2x4xf32>
    %65 = arith.addf %32, %64 : vector<2x4xf32>
    %66 = arith.divf %51, %65 : vector<2x4xf32>
    %c2 = arith.constant 2 : index
    %c0_20 = arith.constant 0 : index
    %c0_21 = arith.constant 0 : index
    %67 = vector.load %arg4[%c2, %c0_20, %c0_21] : memref<12x2x4xf32, #tpu.memory_space<vmem>>, vector<1x2x4xf32>
    %68 = vector.shape_cast %67 : vector<1x2x4xf32> to vector<2x4xf32>
    %69 = vector.shape_cast %66 : vector<2x4xf32> to vector<1x2x4xf32>
    tpu.vector_store %arg4[%c2, %c0_20, %c0_21], %69 {strides = array<i32>} : memref<12x2x4xf32, #tpu.memory_space<vmem>>, vector<1x2x4xf32>,
    %70 = arith.subf %33, %14 : vector<2x4xf32>
    %c0_22 = arith.constant 0 : index
    %c0_23 = arith.constant 0 : index
    %c0_24 = arith.constant 0 : index
    %71 = vector.load %arg5[%c0_22, %c0_23, %c0_24] : memref<4x2x4xf32, #tpu.memory_space<vmem>>, vector<1x2x4xf32>
    %72 = vector.shape_cast %71 : vector<1x2x4xf32> to vector<2x4xf32>
    %73 = vector.shape_cast %70 : vector<2x4xf32> to vector<1x2x4xf32>
    tpu.vector_store %arg5[%c0_22, %c0_23, %c0_24], %73 {strides = array<i32>} : memref<4x2x4xf32, #tpu.memory_space<vmem>>, vector<1x2x4xf32>,
    %74 = vector.extract_strided_slice %7 {offsets = [0, 16], sizes = [2, 4], strides = [1, 1]} : vector<2x64xf32> to vector<2x4xf32>
    %75 = vector.extract_strided_slice %7 {offsets = [0, 20], sizes = [2, 4], strides = [1, 1]} : vector<2x64xf32> to vector<2x4xf32>
    %76 = vector.extract_strided_slice %7 {offsets = [0, 24], sizes = [2, 4], strides = [1, 1]} : vector<2x64xf32> to vector<2x4xf32>
    %77 = vector.extract_strided_slice %7 {offsets = [0, 28], sizes = [2, 4], strides = [1, 1]} : vector<2x64xf32> to vector<2x4xf32>
    %78 = arith.maximumf %75, %76 : vector<2x4xf32>
    %79 = arith.maximumf %78, %77 : vector<2x4xf32>
    %80 = arith.subf %75, %79 : vector<2x4xf32>
    %81 = math.exp %80 : vector<2x4xf32>
    %82 = arith.subf %76, %79 : vector<2x4xf32>
    %83 = math.exp %82 : vector<2x4xf32>
    %84 = arith.subf %77, %79 : vector<2x4xf32>
    %85 = math.exp %84 : vector<2x4xf32>
    %86 = arith.addf %81, %83 : vector<2x4xf32>
    %87 = arith.addf %86, %85 : vector<2x4xf32>
    %cst_25 = arith.constant 1.000000e+00 : f32
    %88 = vector.broadcast %cst_25 : f32 to vector<2x4xf32>
    %89 = arith.divf %88, %87 : vector<2x4xf32>
    %90 = arith.mulf %81, %89 : vector<2x4xf32>
    %91 = arith.mulf %83, %89 : vector<2x4xf32>
    %92 = arith.mulf %85, %89 : vector<2x4xf32>
    %93 = vector.extract_strided_slice %13 {offsets = [0, 16], sizes = [2, 4], strides = [1, 1]} : vector<2x64xf32> to vector<2x4xf32>
    %94 = vector.extract_strided_slice %13 {offsets = [0, 20], sizes = [2, 4], strides = [1, 1]} : vector<2x64xf32> to vector<2x4xf32>
    %95 = vector.extract_strided_slice %13 {offsets = [0, 24], sizes = [2, 4], strides = [1, 1]} : vector<2x64xf32> to vector<2x4xf32>
    %96 = vector.extract_strided_slice %13 {offsets = [0, 28], sizes = [2, 4], strides = [1, 1]} : vector<2x64xf32> to vector<2x4xf32>
    %97 = arith.maximumf %94, %95 : vector<2x4xf32>
    %98 = arith.maximumf %97, %96 : vector<2x4xf32>
    %99 = arith.subf %94, %98 : vector<2x4xf32>
    %100 = math.exp %99 : vector<2x4xf32>
    %101 = arith.subf %95, %98 : vector<2x4xf32>
    %102 = math.exp %101 : vector<2x4xf32>
    %103 = arith.subf %96, %98 : vector<2x4xf32>
    %104 = math.exp %103 : vector<2x4xf32>
    %105 = arith.addf %100, %102 : vector<2x4xf32>
    %106 = arith.addf %105, %104 : vector<2x4xf32>
    %cst_26 = arith.constant 1.000000e+00 : f32
    %107 = vector.broadcast %cst_26 : f32 to vector<2x4xf32>
    %108 = arith.divf %107, %106 : vector<2x4xf32>
    %109 = arith.mulf %100, %108 : vector<2x4xf32>
    %110 = arith.mulf %102, %108 : vector<2x4xf32>
    %111 = arith.mulf %104, %108 : vector<2x4xf32>
    %cst_27 = arith.constant 9.99999993E-9 : f32
    %112 = vector.broadcast %cst_27 : f32 to vector<2x4xf32>
    %113 = arith.addf %90, %112 : vector<2x4xf32>
    %114 = arith.divf %109, %113 : vector<2x4xf32>
    %c3 = arith.constant 3 : index
    %c0_28 = arith.constant 0 : index
    %c0_29 = arith.constant 0 : index
    %115 = vector.load %arg4[%c3, %c0_28, %c0_29] : memref<12x2x4xf32, #tpu.memory_space<vmem>>, vector<1x2x4xf32>
    %116 = vector.shape_cast %115 : vector<1x2x4xf32> to vector<2x4xf32>
    %117 = vector.shape_cast %114 : vector<2x4xf32> to vector<1x2x4xf32>
    tpu.vector_store %arg4[%c3, %c0_28, %c0_29], %117 {strides = array<i32>} : memref<12x2x4xf32, #tpu.memory_space<vmem>>, vector<1x2x4xf32>,
    %cst_30 = arith.constant 9.99999993E-9 : f32
    %118 = vector.broadcast %cst_30 : f32 to vector<2x4xf32>
    %119 = arith.addf %91, %118 : vector<2x4xf32>
    %120 = arith.divf %110, %119 : vector<2x4xf32>
    %c4 = arith.constant 4 : index
    %c0_31 = arith.constant 0 : index
    %c0_32 = arith.constant 0 : index
    %121 = vector.load %arg4[%c4, %c0_31, %c0_32] : memref<12x2x4xf32, #tpu.memory_space<vmem>>, vector<1x2x4xf32>
    %122 = vector.shape_cast %121 : vector<1x2x4xf32> to vector<2x4xf32>
    %123 = vector.shape_cast %120 : vector<2x4xf32> to vector<1x2x4xf32>
    tpu.vector_store %arg4[%c4, %c0_31, %c0_32], %123 {strides = array<i32>} : memref<12x2x4xf32, #tpu.memory_space<vmem>>, vector<1x2x4xf32>,
    %cst_33 = arith.constant 9.99999993E-9 : f32
    %124 = vector.broadcast %cst_33 : f32 to vector<2x4xf32>
    %125 = arith.addf %92, %124 : vector<2x4xf32>
    %126 = arith.divf %111, %125 : vector<2x4xf32>
    %c5 = arith.constant 5 : index
    %c0_34 = arith.constant 0 : index
    %c0_35 = arith.constant 0 : index
    %127 = vector.load %arg4[%c5, %c0_34, %c0_35] : memref<12x2x4xf32, #tpu.memory_space<vmem>>, vector<1x2x4xf32>
    %128 = vector.shape_cast %127 : vector<1x2x4xf32> to vector<2x4xf32>
    %129 = vector.shape_cast %126 : vector<2x4xf32> to vector<1x2x4xf32>
    tpu.vector_store %arg4[%c5, %c0_34, %c0_35], %129 {strides = array<i32>} : memref<12x2x4xf32, #tpu.memory_space<vmem>>, vector<1x2x4xf32>,
    %130 = arith.subf %93, %74 : vector<2x4xf32>
    %c1_36 = arith.constant 1 : index
    %c0_37 = arith.constant 0 : index
    %c0_38 = arith.constant 0 : index
    %131 = vector.load %arg5[%c1_36, %c0_37, %c0_38] : memref<4x2x4xf32, #tpu.memory_space<vmem>>, vector<1x2x4xf32>
    %132 = vector.shape_cast %131 : vector<1x2x4xf32> to vector<2x4xf32>
    %133 = vector.shape_cast %130 : vector<2x4xf32> to vector<1x2x4xf32>
    tpu.vector_store %arg5[%c1_36, %c0_37, %c0_38], %133 {strides = array<i32>} : memref<4x2x4xf32, #tpu.memory_space<vmem>>, vector<1x2x4xf32>,
    %134 = vector.extract_strided_slice %7 {offsets = [0, 32], sizes = [2, 4], strides = [1, 1]} : vector<2x64xf32> to vector<2x4xf32>
    %135 = vector.extract_strided_slice %7 {offsets = [0, 36], sizes = [2, 4], strides = [1, 1]} : vector<2x64xf32> to vector<2x4xf32>
    %136 = vector.extract_strided_slice %7 {offsets = [0, 40], sizes = [2, 4], strides = [1, 1]} : vector<2x64xf32> to vector<2x4xf32>
    %137 = vector.extract_strided_slice %7 {offsets = [0, 44], sizes = [2, 4], strides = [1, 1]} : vector<2x64xf32> to vector<2x4xf32>
    %138 = arith.maximumf %135, %136 : vector<2x4xf32>
    %139 = arith.maximumf %138, %137 : vector<2x4xf32>
    %140 = arith.subf %135, %139 : vector<2x4xf32>
    %141 = math.exp %140 : vector<2x4xf32>
    %142 = arith.subf %136, %139 : vector<2x4xf32>
    %143 = math.exp %142 : vector<2x4xf32>
    %144 = arith.subf %137, %139 : vector<2x4xf32>
    %145 = math.exp %144 : vector<2x4xf32>
    %146 = arith.addf %141, %143 : vector<2x4xf32>
    %147 = arith.addf %146, %145 : vector<2x4xf32>
    %cst_39 = arith.constant 1.000000e+00 : f32
    %148 = vector.broadcast %cst_39 : f32 to vector<2x4xf32>
    %149 = arith.divf %148, %147 : vector<2x4xf32>
    %150 = arith.mulf %141, %149 : vector<2x4xf32>
    %151 = arith.mulf %143, %149 : vector<2x4xf32>
    %152 = arith.mulf %145, %149 : vector<2x4xf32>
    %153 = vector.extract_strided_slice %13 {offsets = [0, 32], sizes = [2, 4], strides = [1, 1]} : vector<2x64xf32> to vector<2x4xf32>
    %154 = vector.extract_strided_slice %13 {offsets = [0, 36], sizes = [2, 4], strides = [1, 1]} : vector<2x64xf32> to vector<2x4xf32>
    %155 = vector.extract_strided_slice %13 {offsets = [0, 40], sizes = [2, 4], strides = [1, 1]} : vector<2x64xf32> to vector<2x4xf32>
    %156 = vector.extract_strided_slice %13 {offsets = [0, 44], sizes = [2, 4], strides = [1, 1]} : vector<2x64xf32> to vector<2x4xf32>
    %157 = arith.maximumf %154, %155 : vector<2x4xf32>
    %158 = arith.maximumf %157, %156 : vector<2x4xf32>
    %159 = arith.subf %154, %158 : vector<2x4xf32>
    %160 = math.exp %159 : vector<2x4xf32>
    %161 = arith.subf %155, %158 : vector<2x4xf32>
    %162 = math.exp %161 : vector<2x4xf32>
    %163 = arith.subf %156, %158 : vector<2x4xf32>
    %164 = math.exp %163 : vector<2x4xf32>
    %165 = arith.addf %160, %162 : vector<2x4xf32>
    %166 = arith.addf %165, %164 : vector<2x4xf32>
    %cst_40 = arith.constant 1.000000e+00 : f32
    %167 = vector.broadcast %cst_40 : f32 to vector<2x4xf32>
    %168 = arith.divf %167, %166 : vector<2x4xf32>
    %169 = arith.mulf %160, %168 : vector<2x4xf32>
    %170 = arith.mulf %162, %168 : vector<2x4xf32>
    %171 = arith.mulf %164, %168 : vector<2x4xf32>
    %cst_41 = arith.constant 9.99999993E-9 : f32
    %172 = vector.broadcast %cst_41 : f32 to vector<2x4xf32>
    %173 = arith.addf %150, %172 : vector<2x4xf32>
    %174 = arith.divf %169, %173 : vector<2x4xf32>
    %c6 = arith.constant 6 : index
    %c0_42 = arith.constant 0 : index
    %c0_43 = arith.constant 0 : index
    %175 = vector.load %arg4[%c6, %c0_42, %c0_43] : memref<12x2x4xf32, #tpu.memory_space<vmem>>, vector<1x2x4xf32>
    %176 = vector.shape_cast %175 : vector<1x2x4xf32> to vector<2x4xf32>
    %177 = vector.shape_cast %174 : vector<2x4xf32> to vector<1x2x4xf32>
    tpu.vector_store %arg4[%c6, %c0_42, %c0_43], %177 {strides = array<i32>} : memref<12x2x4xf32, #tpu.memory_space<vmem>>, vector<1x2x4xf32>,
    %cst_44 = arith.constant 9.99999993E-9 : f32
    %178 = vector.broadcast %cst_44 : f32 to vector<2x4xf32>
    %179 = arith.addf %151, %178 : vector<2x4xf32>
    %180 = arith.divf %170, %179 : vector<2x4xf32>
    %c7 = arith.constant 7 : index
    %c0_45 = arith.constant 0 : index
    %c0_46 = arith.constant 0 : index
    %181 = vector.load %arg4[%c7, %c0_45, %c0_46] : memref<12x2x4xf32, #tpu.memory_space<vmem>>, vector<1x2x4xf32>
    %182 = vector.shape_cast %181 : vector<1x2x4xf32> to vector<2x4xf32>
    %183 = vector.shape_cast %180 : vector<2x4xf32> to vector<1x2x4xf32>
    tpu.vector_store %arg4[%c7, %c0_45, %c0_46], %183 {strides = array<i32>} : memref<12x2x4xf32, #tpu.memory_space<vmem>>, vector<1x2x4xf32>,
    %cst_47 = arith.constant 9.99999993E-9 : f32
    %184 = vector.broadcast %cst_47 : f32 to vector<2x4xf32>
    %185 = arith.addf %152, %184 : vector<2x4xf32>
    %186 = arith.divf %171, %185 : vector<2x4xf32>
    %c8 = arith.constant 8 : index
    %c0_48 = arith.constant 0 : index
    %c0_49 = arith.constant 0 : index
    %187 = vector.load %arg4[%c8, %c0_48, %c0_49] : memref<12x2x4xf32, #tpu.memory_space<vmem>>, vector<1x2x4xf32>
    %188 = vector.shape_cast %187 : vector<1x2x4xf32> to vector<2x4xf32>
    %189 = vector.shape_cast %186 : vector<2x4xf32> to vector<1x2x4xf32>
    tpu.vector_store %arg4[%c8, %c0_48, %c0_49], %189 {strides = array<i32>} : memref<12x2x4xf32, #tpu.memory_space<vmem>>, vector<1x2x4xf32>,
    %190 = arith.subf %153, %134 : vector<2x4xf32>
    %c2_50 = arith.constant 2 : index
    %c0_51 = arith.constant 0 : index
    %c0_52 = arith.constant 0 : index
    %191 = vector.load %arg5[%c2_50, %c0_51, %c0_52] : memref<4x2x4xf32, #tpu.memory_space<vmem>>, vector<1x2x4xf32>
    %192 = vector.shape_cast %191 : vector<1x2x4xf32> to vector<2x4xf32>
    %193 = vector.shape_cast %190 : vector<2x4xf32> to vector<1x2x4xf32>
    tpu.vector_store %arg5[%c2_50, %c0_51, %c0_52], %193 {strides = array<i32>} : memref<4x2x4xf32, #tpu.memory_space<vmem>>, vector<1x2x4xf32>,
    %194 = vector.extract_strided_slice %7 {offsets = [0, 48], sizes = [2, 4], strides = [1, 1]} : vector<2x64xf32> to vector<2x4xf32>
    %195 = vector.extract_strided_slice %7 {offsets = [0, 52], sizes = [2, 4], strides = [1, 1]} : vector<2x64xf32> to vector<2x4xf32>
    %196 = vector.extract_strided_slice %7 {offsets = [0, 56], sizes = [2, 4], strides = [1, 1]} : vector<2x64xf32> to vector<2x4xf32>
    %197 = vector.extract_strided_slice %7 {offsets = [0, 60], sizes = [2, 4], strides = [1, 1]} : vector<2x64xf32> to vector<2x4xf32>
    %198 = arith.maximumf %195, %196 : vector<2x4xf32>
    %199 = arith.maximumf %198, %197 : vector<2x4xf32>
    %200 = arith.subf %195, %199 : vector<2x4xf32>
    %201 = math.exp %200 : vector<2x4xf32>
    %202 = arith.subf %196, %199 : vector<2x4xf32>
    %203 = math.exp %202 : vector<2x4xf32>
    %204 = arith.subf %197, %199 : vector<2x4xf32>
    %205 = math.exp %204 : vector<2x4xf32>
    %206 = arith.addf %201, %203 : vector<2x4xf32>
    %207 = arith.addf %206, %205 : vector<2x4xf32>
    %cst_53 = arith.constant 1.000000e+00 : f32
    %208 = vector.broadcast %cst_53 : f32 to vector<2x4xf32>
    %209 = arith.divf %208, %207 : vector<2x4xf32>
    %210 = arith.mulf %201, %209 : vector<2x4xf32>
    %211 = arith.mulf %203, %209 : vector<2x4xf32>
    %212 = arith.mulf %205, %209 : vector<2x4xf32>
    %213 = vector.extract_strided_slice %13 {offsets = [0, 48], sizes = [2, 4], strides = [1, 1]} : vector<2x64xf32> to vector<2x4xf32>
    %214 = vector.extract_strided_slice %13 {offsets = [0, 52], sizes = [2, 4], strides = [1, 1]} : vector<2x64xf32> to vector<2x4xf32>
    %215 = vector.extract_strided_slice %13 {offsets = [0, 56], sizes = [2, 4], strides = [1, 1]} : vector<2x64xf32> to vector<2x4xf32>
    %216 = vector.extract_strided_slice %13 {offsets = [0, 60], sizes = [2, 4], strides = [1, 1]} : vector<2x64xf32> to vector<2x4xf32>
    %217 = arith.maximumf %214, %215 : vector<2x4xf32>
    %218 = arith.maximumf %217, %216 : vector<2x4xf32>
    %219 = arith.subf %214, %218 : vector<2x4xf32>
    %220 = math.exp %219 : vector<2x4xf32>
    %221 = arith.subf %215, %218 : vector<2x4xf32>
    %222 = math.exp %221 : vector<2x4xf32>
    %223 = arith.subf %216, %218 : vector<2x4xf32>
    %224 = math.exp %223 : vector<2x4xf32>
    %225 = arith.addf %220, %222 : vector<2x4xf32>
    %226 = arith.addf %225, %224 : vector<2x4xf32>
    %cst_54 = arith.constant 1.000000e+00 : f32
    %227 = vector.broadcast %cst_54 : f32 to vector<2x4xf32>
    %228 = arith.divf %227, %226 : vector<2x4xf32>
    %229 = arith.mulf %220, %228 : vector<2x4xf32>
    %230 = arith.mulf %222, %228 : vector<2x4xf32>
    %231 = arith.mulf %224, %228 : vector<2x4xf32>
    %cst_55 = arith.constant 9.99999993E-9 : f32
    %232 = vector.broadcast %cst_55 : f32 to vector<2x4xf32>
    %233 = arith.addf %210, %232 : vector<2x4xf32>
    %234 = arith.divf %229, %233 : vector<2x4xf32>
    %c9 = arith.constant 9 : index
    %c0_56 = arith.constant 0 : index
    %c0_57 = arith.constant 0 : index
    %235 = vector.load %arg4[%c9, %c0_56, %c0_57] : memref<12x2x4xf32, #tpu.memory_space<vmem>>, vector<1x2x4xf32>
    %236 = vector.shape_cast %235 : vector<1x2x4xf32> to vector<2x4xf32>
    %237 = vector.shape_cast %234 : vector<2x4xf32> to vector<1x2x4xf32>
    tpu.vector_store %arg4[%c9, %c0_56, %c0_57], %237 {strides = array<i32>} : memref<12x2x4xf32, #tpu.memory_space<vmem>>, vector<1x2x4xf32>,
    %cst_58 = arith.constant 9.99999993E-9 : f32
    %238 = vector.broadcast %cst_58 : f32 to vector<2x4xf32>
    %239 = arith.addf %211, %238 : vector<2x4xf32>
    %240 = arith.divf %230, %239 : vector<2x4xf32>
    %c10 = arith.constant 10 : index
    %c0_59 = arith.constant 0 : index
    %c0_60 = arith.constant 0 : index
    %241 = vector.load %arg4[%c10, %c0_59, %c0_60] : memref<12x2x4xf32, #tpu.memory_space<vmem>>, vector<1x2x4xf32>
    %242 = vector.shape_cast %241 : vector<1x2x4xf32> to vector<2x4xf32>
    %243 = vector.shape_cast %240 : vector<2x4xf32> to vector<1x2x4xf32>
    tpu.vector_store %arg4[%c10, %c0_59, %c0_60], %243 {strides = array<i32>} : memref<12x2x4xf32, #tpu.memory_space<vmem>>, vector<1x2x4xf32>,
    %cst_61 = arith.constant 9.99999993E-9 : f32
    %244 = vector.broadcast %cst_61 : f32 to vector<2x4xf32>
    %245 = arith.addf %212, %244 : vector<2x4xf32>
    %246 = arith.divf %231, %245 : vector<2x4xf32>
    %c11 = arith.constant 11 : index
    %c0_62 = arith.constant 0 : index
    %c0_63 = arith.constant 0 : index
    %247 = vector.load %arg4[%c11, %c0_62, %c0_63] : memref<12x2x4xf32, #tpu.memory_space<vmem>>, vector<1x2x4xf32>
    %248 = vector.shape_cast %247 : vector<1x2x4xf32> to vector<2x4xf32>
    %249 = vector.shape_cast %246 : vector<2x4xf32> to vector<1x2x4xf32>
    tpu.vector_store %arg4[%c11, %c0_62, %c0_63], %249 {strides = array<i32>} : memref<12x2x4xf32, #tpu.memory_space<vmem>>, vector<1x2x4xf32>,
    %250 = arith.subf %213, %194 : vector<2x4xf32>
    %c3_64 = arith.constant 3 : index
    %c0_65 = arith.constant 0 : index
    %c0_66 = arith.constant 0 : index
    %251 = vector.load %arg5[%c3_64, %c0_65, %c0_66] : memref<4x2x4xf32, #tpu.memory_space<vmem>>, vector<1x2x4xf32>
    %252 = vector.shape_cast %251 : vector<1x2x4xf32> to vector<2x4xf32>
    %253 = vector.shape_cast %250 : vector<2x4xf32> to vector<1x2x4xf32>
    tpu.vector_store %arg5[%c3_64, %c0_65, %c0_66], %253 {strides = array<i32>} : memref<4x2x4xf32, #tpu.memory_space<vmem>>, vector<1x2x4xf32>,
    return
  }
}

module attributes {stable_mosaic.version = 11 : i64} {
  func.func @_resblock_kernel(%arg0: i32, %arg1: memref<1x4x384xf32, #tpu.memory_space<vmem>>, %arg2: memref<1x1x384xf32, #tpu.memory_space<vmem>>, %arg3: memref<1x384xf32, #tpu.memory_space<vmem>>, %arg4: memref<4x384xf32, #tpu.memory_space<vmem>>, %arg5: memref<4x36xbf16, #tpu.memory_space<vmem>>, %arg6: memref<4x1xf32, #tpu.memory_space<vmem>>, %arg7: memref<12x36xbf16, #tpu.memory_space<vmem>>, %arg8: memref<12x1xf32, #tpu.memory_space<vmem>>, %arg9: memref<12x1xf32, #tpu.memory_space<vmem>>, %arg10: memref<12x1xf32, #tpu.memory_space<vmem>>, %arg11: memref<1x12x1xf32, #tpu.memory_space<vmem>>, %arg12: memref<1x4x1xf32, #tpu.memory_space<vmem>>, %arg13: memref<4x36xbf16, #tpu.memory_space<vmem>>, %arg14: memref<4x1xf32, #tpu.memory_space<vmem>>, %arg15: memref<12x36xbf16, #tpu.memory_space<vmem>>, %arg16: memref<12x1xf32, #tpu.memory_space<vmem>>, %arg17: memref<12x1xf32, #tpu.memory_space<vmem>>, %arg18: memref<12x1xf32, #tpu.memory_space<vmem>>, %arg19: memref<1x12x1xf32, #tpu.memory_space<vmem>>, %arg20: memref<1x4x1xf32, #tpu.memory_space<vmem>>, %arg21: memref<4x1xf32, #tpu.memory_space<vmem>>, %arg22: memref<4x1xf32, #tpu.memory_space<vmem>>, %arg23: memref<1x4x384xf32, #tpu.memory_space<vmem>>, %arg24: memref<36x384xbf16, #tpu.memory_space<vmem>>) attributes {dimension_semantics = [#tpu.dimension_semantics<parallel>], iteration_bounds = array<i64: 2>, scalar_prefetch = 0 : i64, scratch_operands = 1 : i64, tpu.core_type = #tpu.core_type<tc>, window_params = [{transform_indices = @transform_0, window_bounds = array<i64: 1, 4, 384>}, {transform_indices = @transform_1, window_bounds = array<i64: 1, 1, 384>}, {pipeline_mode = #tpu.pipeline_mode<synchronous>, transform_indices = @transform_2, window_bounds = array<i64: 1, 384>}, {pipeline_mode = #tpu.pipeline_mode<synchronous>, transform_indices = @transform_3, window_bounds = array<i64: 4, 384>}, {pipeline_mode = #tpu.pipeline_mode<synchronous>, transform_indices = @transform_4, window_bounds = array<i64: 4, 36>}, {pipeline_mode = #tpu.pipeline_mode<synchronous>, transform_indices = @transform_5, window_bounds = array<i64: 4, 1>}, {pipeline_mode = #tpu.pipeline_mode<synchronous>, transform_indices = @transform_6, window_bounds = array<i64: 12, 36>}, {pipeline_mode = #tpu.pipeline_mode<synchronous>, transform_indices = @transform_7, window_bounds = array<i64: 12, 1>}, {pipeline_mode = #tpu.pipeline_mode<synchronous>, transform_indices = @transform_8, window_bounds = array<i64: 12, 1>}, {pipeline_mode = #tpu.pipeline_mode<synchronous>, transform_indices = @transform_9, window_bounds = array<i64: 12, 1>}, {transform_indices = @transform_10, window_bounds = array<i64: 1, 12, 1>}, {transform_indices = @transform_11, window_bounds = array<i64: 1, 4, 1>}, {pipeline_mode = #tpu.pipeline_mode<synchronous>, transform_indices = @transform_12, window_bounds = array<i64: 4, 36>}, {pipeline_mode = #tpu.pipeline_mode<synchronous>, transform_indices = @transform_13, window_bounds = array<i64: 4, 1>}, {pipeline_mode = #tpu.pipeline_mode<synchronous>, transform_indices = @transform_14, window_bounds = array<i64: 12, 36>}, {pipeline_mode = #tpu.pipeline_mode<synchronous>, transform_indices = @transform_15, window_bounds = array<i64: 12, 1>}, {pipeline_mode = #tpu.pipeline_mode<synchronous>, transform_indices = @transform_16, window_bounds = array<i64: 12, 1>}, {pipeline_mode = #tpu.pipeline_mode<synchronous>, transform_indices = @transform_17, window_bounds = array<i64: 12, 1>}, {transform_indices = @transform_18, window_bounds = array<i64: 1, 12, 1>}, {transform_indices = @transform_19, window_bounds = array<i64: 1, 4, 1>}, {pipeline_mode = #tpu.pipeline_mode<synchronous>, transform_indices = @transform_20, window_bounds = array<i64: 4, 1>}, {pipeline_mode = #tpu.pipeline_mode<synchronous>, transform_indices = @transform_21, window_bounds = array<i64: 4, 1>}, {transform_indices = @transform_22, window_bounds = array<i64: 1, 4, 384>}]} {
    %c0 = arith.constant 0 : index
    %c0_0 = arith.constant 0 : index
    %0 = vector.load %arg3[%c0, %c0_0] : memref<1x384xf32, #tpu.memory_space<vmem>>, vector<1x384xf32>
    %c0_1 = arith.constant 0 : index
    %c0_2 = arith.constant 0 : index
    %c0_3 = arith.constant 0 : index
    %1 = vector.load %arg2[%c0_1, %c0_2, %c0_3] : memref<1x1x384xf32, #tpu.memory_space<vmem>>, vector<1x1x384xf32>
    %2 = vector.shape_cast %1 : vector<1x1x384xf32> to vector<1x384xf32>
    %cst = arith.constant 1.000000e+00 : f32
    %3 = vector.broadcast %cst : f32 to vector<1x384xf32>
    %4 = arith.subf %3, %2 : vector<1x384xf32>
    %c0_4 = arith.constant 0 : index
    %c0_5 = arith.constant 0 : index
    %5 = vector.load %arg4[%c0_4, %c0_5] : memref<4x384xf32, #tpu.memory_space<vmem>>, vector<4x384xf32>
    %c0_6 = arith.constant 0 : index
    %c0_7 = arith.constant 0 : index
    %c0_8 = arith.constant 0 : index
    %6 = vector.load %arg1[%c0_6, %c0_7, %c0_8] : memref<1x4x384xf32, #tpu.memory_space<vmem>>, vector<1x4x384xf32>
    %7 = vector.shape_cast %6 : vector<1x4x384xf32> to vector<4x384xf32>
    %8 = vector.extract_strided_slice %5 {offsets = [0, 0], sizes = [1, 384], strides = [1, 1]} : vector<4x384xf32> to vector<1x384xf32>
    %c348_i32 = arith.constant 348 : i32
    %9 = tpu.dynamic_rotate %7 by %c348_i32 dim 1 : vector<4x384xf32>, i32 -> vector<4x384xf32>
    %10 = arith.subf %9, %7 : vector<4x384xf32>
    %11 = vector.broadcast %8 : vector<1x384xf32> to vector<4x384xf32>
    %12 = arith.mulf %11, %10 : vector<4x384xf32>
    %13 = arith.addf %7, %12 : vector<4x384xf32>
    %14 = vector.extract_strided_slice %5 {offsets = [1, 0], sizes = [1, 384], strides = [1, 1]} : vector<4x384xf32> to vector<1x384xf32>
    %c36_i32 = arith.constant 36 : i32
    %15 = tpu.dynamic_rotate %13 by %c36_i32 dim 1 : vector<4x384xf32>, i32 -> vector<4x384xf32>
    %16 = arith.subf %15, %13 : vector<4x384xf32>
    %17 = vector.broadcast %14 : vector<1x384xf32> to vector<4x384xf32>
    %18 = arith.mulf %17, %16 : vector<4x384xf32>
    %19 = arith.addf %13, %18 : vector<4x384xf32>
    %20 = vector.extract_strided_slice %5 {offsets = [2, 0], sizes = [1, 384], strides = [1, 1]} : vector<4x384xf32> to vector<1x384xf32>
    %c382_i32 = arith.constant 382 : i32
    %21 = tpu.dynamic_rotate %19 by %c382_i32 dim 1 : vector<4x384xf32>, i32 -> vector<4x384xf32>
    %22 = arith.subf %21, %19 : vector<4x384xf32>
    %23 = vector.broadcast %20 : vector<1x384xf32> to vector<4x384xf32>
    %24 = arith.mulf %23, %22 : vector<4x384xf32>
    %25 = arith.addf %19, %24 : vector<4x384xf32>
    %26 = vector.extract_strided_slice %5 {offsets = [3, 0], sizes = [1, 384], strides = [1, 1]} : vector<4x384xf32> to vector<1x384xf32>
    %c2_i32 = arith.constant 2 : i32
    %27 = tpu.dynamic_rotate %25 by %c2_i32 dim 1 : vector<4x384xf32>, i32 -> vector<4x384xf32>
    %28 = arith.subf %27, %25 : vector<4x384xf32>
    %29 = vector.broadcast %26 : vector<1x384xf32> to vector<4x384xf32>
    %30 = arith.mulf %29, %28 : vector<4x384xf32>
    %31 = arith.addf %25, %30 : vector<4x384xf32>
    %c19_i32 = arith.constant 19 : i32
    %32 = tpu.dynamic_rotate %31 by %c19_i32 dim 1 : vector<4x384xf32>, i32 -> vector<4x384xf32>
    %33 = arith.truncf %32 : vector<4x384xf32> to vector<4x384xbf16>
    %c0_9 = arith.constant 0 : index
    %c0_10 = arith.constant 0 : index
    %34 = vector.load %arg24[%c0_9, %c0_10] : memref<36x384xbf16, #tpu.memory_space<vmem>>, vector<4x384xbf16>
    tpu.vector_store %arg24[%c0_9, %c0_10], %33 {strides = array<i32>} : memref<36x384xbf16, #tpu.memory_space<vmem>>, vector<4x384xbf16>,
    %c18_i32 = arith.constant 18 : i32
    %35 = tpu.dynamic_rotate %31 by %c18_i32 dim 1 : vector<4x384xf32>, i32 -> vector<4x384xf32>
    %36 = arith.truncf %35 : vector<4x384xf32> to vector<4x384xbf16>
    %c4 = arith.constant 4 : index
    %c0_11 = arith.constant 0 : index
    %37 = vector.load %arg24[%c4, %c0_11] : memref<36x384xbf16, #tpu.memory_space<vmem>>, vector<4x384xbf16>
    tpu.vector_store %arg24[%c4, %c0_11], %36 {strides = array<i32>} : memref<36x384xbf16, #tpu.memory_space<vmem>>, vector<4x384xbf16>,
    %c17_i32 = arith.constant 17 : i32
    %38 = tpu.dynamic_rotate %31 by %c17_i32 dim 1 : vector<4x384xf32>, i32 -> vector<4x384xf32>
    %39 = arith.truncf %38 : vector<4x384xf32> to vector<4x384xbf16>
    %c8 = arith.constant 8 : index
    %c0_12 = arith.constant 0 : index
    %40 = vector.load %arg24[%c8, %c0_12] : memref<36x384xbf16, #tpu.memory_space<vmem>>, vector<4x384xbf16>
    tpu.vector_store %arg24[%c8, %c0_12], %39 {strides = array<i32>} : memref<36x384xbf16, #tpu.memory_space<vmem>>, vector<4x384xbf16>,
    %c1_i32 = arith.constant 1 : i32
    %41 = tpu.dynamic_rotate %31 by %c1_i32 dim 1 : vector<4x384xf32>, i32 -> vector<4x384xf32>
    %42 = arith.truncf %41 : vector<4x384xf32> to vector<4x384xbf16>
    %c12 = arith.constant 12 : index
    %c0_13 = arith.constant 0 : index
    %43 = vector.load %arg24[%c12, %c0_13] : memref<36x384xbf16, #tpu.memory_space<vmem>>, vector<4x384xbf16>
    tpu.vector_store %arg24[%c12, %c0_13], %42 {strides = array<i32>} : memref<36x384xbf16, #tpu.memory_space<vmem>>, vector<4x384xbf16>,
    %44 = arith.truncf %31 : vector<4x384xf32> to vector<4x384xbf16>
    %c16 = arith.constant 16 : index
    %c0_14 = arith.constant 0 : index
    %45 = vector.load %arg24[%c16, %c0_14] : memref<36x384xbf16, #tpu.memory_space<vmem>>, vector<4x384xbf16>
    tpu.vector_store %arg24[%c16, %c0_14], %44 {strides = array<i32>} : memref<36x384xbf16, #tpu.memory_space<vmem>>, vector<4x384xbf16>,
    %c383_i32 = arith.constant 383 : i32
    %46 = tpu.dynamic_rotate %31 by %c383_i32 dim 1 : vector<4x384xf32>, i32 -> vector<4x384xf32>
    %47 = arith.truncf %46 : vector<4x384xf32> to vector<4x384xbf16>
    %c20 = arith.constant 20 : index
    %c0_15 = arith.constant 0 : index
    %48 = vector.load %arg24[%c20, %c0_15] : memref<36x384xbf16, #tpu.memory_space<vmem>>, vector<4x384xbf16>
    tpu.vector_store %arg24[%c20, %c0_15], %47 {strides = array<i32>} : memref<36x384xbf16, #tpu.memory_space<vmem>>, vector<4x384xbf16>,
    %c367_i32 = arith.constant 367 : i32
    %49 = tpu.dynamic_rotate %31 by %c367_i32 dim 1 : vector<4x384xf32>, i32 -> vector<4x384xf32>
    %50 = arith.truncf %49 : vector<4x384xf32> to vector<4x384xbf16>
    %c24 = arith.constant 24 : index
    %c0_16 = arith.constant 0 : index
    %51 = vector.load %arg24[%c24, %c0_16] : memref<36x384xbf16, #tpu.memory_space<vmem>>, vector<4x384xbf16>
    tpu.vector_store %arg24[%c24, %c0_16], %50 {strides = array<i32>} : memref<36x384xbf16, #tpu.memory_space<vmem>>, vector<4x384xbf16>,
    %c366_i32 = arith.constant 366 : i32
    %52 = tpu.dynamic_rotate %31 by %c366_i32 dim 1 : vector<4x384xf32>, i32 -> vector<4x384xf32>
    %53 = arith.truncf %52 : vector<4x384xf32> to vector<4x384xbf16>
    %c28 = arith.constant 28 : index
    %c0_17 = arith.constant 0 : index
    %54 = vector.load %arg24[%c28, %c0_17] : memref<36x384xbf16, #tpu.memory_space<vmem>>, vector<4x384xbf16>
    tpu.vector_store %arg24[%c28, %c0_17], %53 {strides = array<i32>} : memref<36x384xbf16, #tpu.memory_space<vmem>>, vector<4x384xbf16>,
    %c365_i32 = arith.constant 365 : i32
    %55 = tpu.dynamic_rotate %31 by %c365_i32 dim 1 : vector<4x384xf32>, i32 -> vector<4x384xf32>
    %56 = arith.truncf %55 : vector<4x384xf32> to vector<4x384xbf16>
    %c32 = arith.constant 32 : index
    %c0_18 = arith.constant 0 : index
    %57 = vector.load %arg24[%c32, %c0_18] : memref<36x384xbf16, #tpu.memory_space<vmem>>, vector<4x384xbf16>
    tpu.vector_store %arg24[%c32, %c0_18], %56 {strides = array<i32>} : memref<36x384xbf16, #tpu.memory_space<vmem>>, vector<4x384xbf16>,
    %c0_19 = arith.constant 0 : index
    %c0_20 = arith.constant 0 : index
    %58 = vector.load %arg5[%c0_19, %c0_20] : memref<4x36xbf16, #tpu.memory_space<vmem>>, vector<4x36xbf16>
    %c0_21 = arith.constant 0 : index
    %c0_22 = arith.constant 0 : index
    %59 = vector.load %arg24[%c0_21, %c0_22] : memref<36x384xbf16, #tpu.memory_space<vmem>>, vector<36x384xbf16>
    %cst_23 = arith.constant dense<0.000000e+00> : vector<4x384xf32>
    %60 = tpu.matmul %58, %59, %cst_23 {dimension_numbers = #tpu.dot_dimension_numbers<[1], [0], [0], [1], [0, 0, 1, 1], [], []>} : vector<4x36xbf16>, vector<36x384xbf16>, vector<4x384xf32> -> vector<4x384xf32>
    %c0_24 = arith.constant 0 : index
    %c0_25 = arith.constant 0 : index
    %61 = vector.load %arg6[%c0_24, %c0_25] : memref<4x1xf32, #tpu.memory_space<vmem>>, vector<4x1xf32>
    %62 = vector.broadcast %61 : vector<4x1xf32> to vector<4x384xf32>
    %63 = arith.addf %60, %62 : vector<4x384xf32>
    %64 = vector.broadcast %0 : vector<1x384xf32> to vector<4x384xf32>
    %65 = arith.mulf %63, %64 : vector<4x384xf32>
    %c19_i32_26 = arith.constant 19 : i32
    %66 = tpu.dynamic_rotate %65 by %c19_i32_26 dim 1 : vector<4x384xf32>, i32 -> vector<4x384xf32>
    %67 = arith.truncf %66 : vector<4x384xf32> to vector<4x384xbf16>
    %c0_27 = arith.constant 0 : index
    %c0_28 = arith.constant 0 : index
    %68 = vector.load %arg24[%c0_27, %c0_28] : memref<36x384xbf16, #tpu.memory_space<vmem>>, vector<4x384xbf16>
    tpu.vector_store %arg24[%c0_27, %c0_28], %67 {strides = array<i32>} : memref<36x384xbf16, #tpu.memory_space<vmem>>, vector<4x384xbf16>,
    %c18_i32_29 = arith.constant 18 : i32
    %69 = tpu.dynamic_rotate %65 by %c18_i32_29 dim 1 : vector<4x384xf32>, i32 -> vector<4x384xf32>
    %70 = arith.truncf %69 : vector<4x384xf32> to vector<4x384xbf16>
    %c4_30 = arith.constant 4 : index
    %c0_31 = arith.constant 0 : index
    %71 = vector.load %arg24[%c4_30, %c0_31] : memref<36x384xbf16, #tpu.memory_space<vmem>>, vector<4x384xbf16>
    tpu.vector_store %arg24[%c4_30, %c0_31], %70 {strides = array<i32>} : memref<36x384xbf16, #tpu.memory_space<vmem>>, vector<4x384xbf16>,
    %c17_i32_32 = arith.constant 17 : i32
    %72 = tpu.dynamic_rotate %65 by %c17_i32_32 dim 1 : vector<4x384xf32>, i32 -> vector<4x384xf32>
    %73 = arith.truncf %72 : vector<4x384xf32> to vector<4x384xbf16>
    %c8_33 = arith.constant 8 : index
    %c0_34 = arith.constant 0 : index
    %74 = vector.load %arg24[%c8_33, %c0_34] : memref<36x384xbf16, #tpu.memory_space<vmem>>, vector<4x384xbf16>
    tpu.vector_store %arg24[%c8_33, %c0_34], %73 {strides = array<i32>} : memref<36x384xbf16, #tpu.memory_space<vmem>>, vector<4x384xbf16>,
    %c1_i32_35 = arith.constant 1 : i32
    %75 = tpu.dynamic_rotate %65 by %c1_i32_35 dim 1 : vector<4x384xf32>, i32 -> vector<4x384xf32>
    %76 = arith.truncf %75 : vector<4x384xf32> to vector<4x384xbf16>
    %c12_36 = arith.constant 12 : index
    %c0_37 = arith.constant 0 : index
    %77 = vector.load %arg24[%c12_36, %c0_37] : memref<36x384xbf16, #tpu.memory_space<vmem>>, vector<4x384xbf16>
    tpu.vector_store %arg24[%c12_36, %c0_37], %76 {strides = array<i32>} : memref<36x384xbf16, #tpu.memory_space<vmem>>, vector<4x384xbf16>,
    %78 = arith.truncf %65 : vector<4x384xf32> to vector<4x384xbf16>
    %c16_38 = arith.constant 16 : index
    %c0_39 = arith.constant 0 : index
    %79 = vector.load %arg24[%c16_38, %c0_39] : memref<36x384xbf16, #tpu.memory_space<vmem>>, vector<4x384xbf16>
    tpu.vector_store %arg24[%c16_38, %c0_39], %78 {strides = array<i32>} : memref<36x384xbf16, #tpu.memory_space<vmem>>, vector<4x384xbf16>,
    %c383_i32_40 = arith.constant 383 : i32
    %80 = tpu.dynamic_rotate %65 by %c383_i32_40 dim 1 : vector<4x384xf32>, i32 -> vector<4x384xf32>
    %81 = arith.truncf %80 : vector<4x384xf32> to vector<4x384xbf16>
    %c20_41 = arith.constant 20 : index
    %c0_42 = arith.constant 0 : index
    %82 = vector.load %arg24[%c20_41, %c0_42] : memref<36x384xbf16, #tpu.memory_space<vmem>>, vector<4x384xbf16>
    tpu.vector_store %arg24[%c20_41, %c0_42], %81 {strides = array<i32>} : memref<36x384xbf16, #tpu.memory_space<vmem>>, vector<4x384xbf16>,
    %c367_i32_43 = arith.constant 367 : i32
    %83 = tpu.dynamic_rotate %65 by %c367_i32_43 dim 1 : vector<4x384xf32>, i32 -> vector<4x384xf32>
    %84 = arith.truncf %83 : vector<4x384xf32> to vector<4x384xbf16>
    %c24_44 = arith.constant 24 : index
    %c0_45 = arith.constant 0 : index
    %85 = vector.load %arg24[%c24_44, %c0_45] : memref<36x384xbf16, #tpu.memory_space<vmem>>, vector<4x384xbf16>
    tpu.vector_store %arg24[%c24_44, %c0_45], %84 {strides = array<i32>} : memref<36x384xbf16, #tpu.memory_space<vmem>>, vector<4x384xbf16>,
    %c366_i32_46 = arith.constant 366 : i32
    %86 = tpu.dynamic_rotate %65 by %c366_i32_46 dim 1 : vector<4x384xf32>, i32 -> vector<4x384xf32>
    %87 = arith.truncf %86 : vector<4x384xf32> to vector<4x384xbf16>
    %c28_47 = arith.constant 28 : index
    %c0_48 = arith.constant 0 : index
    %88 = vector.load %arg24[%c28_47, %c0_48] : memref<36x384xbf16, #tpu.memory_space<vmem>>, vector<4x384xbf16>
    tpu.vector_store %arg24[%c28_47, %c0_48], %87 {strides = array<i32>} : memref<36x384xbf16, #tpu.memory_space<vmem>>, vector<4x384xbf16>,
    %c365_i32_49 = arith.constant 365 : i32
    %89 = tpu.dynamic_rotate %65 by %c365_i32_49 dim 1 : vector<4x384xf32>, i32 -> vector<4x384xf32>
    %90 = arith.truncf %89 : vector<4x384xf32> to vector<4x384xbf16>
    %c32_50 = arith.constant 32 : index
    %c0_51 = arith.constant 0 : index
    %91 = vector.load %arg24[%c32_50, %c0_51] : memref<36x384xbf16, #tpu.memory_space<vmem>>, vector<4x384xbf16>
    tpu.vector_store %arg24[%c32_50, %c0_51], %90 {strides = array<i32>} : memref<36x384xbf16, #tpu.memory_space<vmem>>, vector<4x384xbf16>,
    %c0_52 = arith.constant 0 : index
    %c0_53 = arith.constant 0 : index
    %92 = vector.load %arg7[%c0_52, %c0_53] : memref<12x36xbf16, #tpu.memory_space<vmem>>, vector<12x36xbf16>
    %c0_54 = arith.constant 0 : index
    %c0_55 = arith.constant 0 : index
    %93 = vector.load %arg24[%c0_54, %c0_55] : memref<36x384xbf16, #tpu.memory_space<vmem>>, vector<36x384xbf16>
    %cst_56 = arith.constant dense<0.000000e+00> : vector<12x384xf32>
    %94 = tpu.matmul %92, %93, %cst_56 {dimension_numbers = #tpu.dot_dimension_numbers<[1], [0], [0], [1], [0, 0, 1, 1], [], []>} : vector<12x36xbf16>, vector<36x384xbf16>, vector<12x384xf32> -> vector<12x384xf32>
    %c0_57 = arith.constant 0 : index
    %c0_58 = arith.constant 0 : index
    %95 = vector.load %arg8[%c0_57, %c0_58] : memref<12x1xf32, #tpu.memory_space<vmem>>, vector<12x1xf32>
    %96 = vector.broadcast %95 : vector<12x1xf32> to vector<12x384xf32>
    %97 = arith.addf %94, %96 : vector<12x384xf32>
    %c0_59 = arith.constant 0 : index
    %c0_60 = arith.constant 0 : index
    %98 = vector.load %arg9[%c0_59, %c0_60] : memref<12x1xf32, #tpu.memory_space<vmem>>, vector<12x1xf32>
    %c0_61 = arith.constant 0 : index
    %c0_62 = arith.constant 0 : index
    %99 = vector.load %arg10[%c0_61, %c0_62] : memref<12x1xf32, #tpu.memory_space<vmem>>, vector<12x1xf32>
    %c0_63 = arith.constant 0 : index
    %c0_64 = arith.constant 0 : index
    %c0_65 = arith.constant 0 : index
    %100 = vector.load %arg11[%c0_63, %c0_64, %c0_65] : memref<1x12x1xf32, #tpu.memory_space<vmem>>, vector<1x12x1xf32>
    %101 = vector.shape_cast %100 : vector<1x12x1xf32> to vector<12x1xf32>
    %cst_66 = arith.constant 0.000000e+00 : f32
    %102 = vector.broadcast %cst_66 : f32 to vector<4x384xf32>
    %103 = vector.extract_strided_slice %97 {offsets = [0, 0], sizes = [4, 384], strides = [1, 1]} : vector<12x384xf32> to vector<4x384xf32>
    %104 = vector.broadcast %0 : vector<1x384xf32> to vector<4x384xf32>
    %105 = arith.mulf %103, %104 : vector<4x384xf32>
    %106 = vector.shape_cast %105 : vector<4x384xf32> to vector<1x4x384xf32>
    %cst_67 = arith.constant dense<0.000000e+00> : vector<1xf32>
    %107 = vector.multi_reduction <add>, %106, %cst_67 [1, 2] : vector<1x4x384xf32> to vector<1xf32>
    %108 = vector.shape_cast %107 : vector<1xf32> to vector<1x1x1xf32>
    %109 = vector.extract %108[0, 0, 0] : f32 from vector<1x1x1xf32>
    %110 = arith.mulf %105, %105 : vector<4x384xf32>
    %111 = vector.shape_cast %110 : vector<4x384xf32> to vector<1x4x384xf32>
    %cst_68 = arith.constant dense<0.000000e+00> : vector<1xf32>
    %112 = vector.multi_reduction <add>, %111, %cst_68 [1, 2] : vector<1x4x384xf32> to vector<1xf32>
    %113 = vector.shape_cast %112 : vector<1xf32> to vector<1x1x1xf32>
    %114 = vector.extract %113[0, 0, 0] : f32 from vector<1x1x1xf32>
    %cst_69 = arith.constant 9.765625E-4 : f32
    %115 = arith.mulf %109, %cst_69 : f32
    %cst_70 = arith.constant 9.765625E-4 : f32
    %116 = arith.mulf %114, %cst_70 : f32
    %117 = arith.mulf %115, %115 : f32
    %118 = arith.subf %116, %117 : f32
    %cst_71 = arith.constant 0.000000e+00 : f32
    %119 = arith.maximumf %118, %cst_71 : f32
    %120 = vector.broadcast %115 : f32 to vector<4x384xf32>
    %121 = arith.subf %105, %120 : vector<4x384xf32>
    %cst_72 = arith.constant 9.99999974E-6 : f32
    %122 = arith.addf %119, %cst_72 : f32
    %123 = math.rsqrt %122 : f32
    %124 = vector.broadcast %123 : f32 to vector<4x384xf32>
    %125 = arith.mulf %121, %124 : vector<4x384xf32>
    %126 = vector.extract_strided_slice %98 {offsets = [0, 0], sizes = [4, 1], strides = [1, 1]} : vector<12x1xf32> to vector<4x1xf32>
    %127 = vector.broadcast %126 : vector<4x1xf32> to vector<4x384xf32>
    %128 = arith.mulf %125, %127 : vector<4x384xf32>
    %129 = vector.extract_strided_slice %99 {offsets = [0, 0], sizes = [4, 1], strides = [1, 1]} : vector<12x1xf32> to vector<4x1xf32>
    %130 = vector.broadcast %129 : vector<4x1xf32> to vector<4x384xf32>
    %131 = arith.addf %128, %130 : vector<4x384xf32>
    %cst_73 = arith.constant 0.000000e+00 : f32
    %132 = vector.broadcast %cst_73 : f32 to vector<4x384xf32>
    %133 = arith.maximumf %131, %132 : vector<4x384xf32>
    %134 = vector.extract_strided_slice %101 {offsets = [0, 0], sizes = [4, 1], strides = [1, 1]} : vector<12x1xf32> to vector<4x1xf32>
    %135 = vector.broadcast %134 : vector<4x1xf32> to vector<4x384xf32>
    %136 = arith.mulf %133, %135 : vector<4x384xf32>
    %137 = arith.addf %102, %136 : vector<4x384xf32>
    %138 = vector.extract_strided_slice %97 {offsets = [4, 0], sizes = [4, 384], strides = [1, 1]} : vector<12x384xf32> to vector<4x384xf32>
    %139 = vector.broadcast %0 : vector<1x384xf32> to vector<4x384xf32>
    %140 = arith.mulf %138, %139 : vector<4x384xf32>
    %141 = vector.shape_cast %140 : vector<4x384xf32> to vector<1x4x384xf32>
    %cst_74 = arith.constant dense<0.000000e+00> : vector<1xf32>
    %142 = vector.multi_reduction <add>, %141, %cst_74 [1, 2] : vector<1x4x384xf32> to vector<1xf32>
    %143 = vector.shape_cast %142 : vector<1xf32> to vector<1x1x1xf32>
    %144 = vector.extract %143[0, 0, 0] : f32 from vector<1x1x1xf32>
    %145 = arith.mulf %140, %140 : vector<4x384xf32>
    %146 = vector.shape_cast %145 : vector<4x384xf32> to vector<1x4x384xf32>
    %cst_75 = arith.constant dense<0.000000e+00> : vector<1xf32>
    %147 = vector.multi_reduction <add>, %146, %cst_75 [1, 2] : vector<1x4x384xf32> to vector<1xf32>
    %148 = vector.shape_cast %147 : vector<1xf32> to vector<1x1x1xf32>
    %149 = vector.extract %148[0, 0, 0] : f32 from vector<1x1x1xf32>
    %cst_76 = arith.constant 9.765625E-4 : f32
    %150 = arith.mulf %144, %cst_76 : f32
    %cst_77 = arith.constant 9.765625E-4 : f32
    %151 = arith.mulf %149, %cst_77 : f32
    %152 = arith.mulf %150, %150 : f32
    %153 = arith.subf %151, %152 : f32
    %cst_78 = arith.constant 0.000000e+00 : f32
    %154 = arith.maximumf %153, %cst_78 : f32
    %155 = vector.broadcast %150 : f32 to vector<4x384xf32>
    %156 = arith.subf %140, %155 : vector<4x384xf32>
    %cst_79 = arith.constant 9.99999974E-6 : f32
    %157 = arith.addf %154, %cst_79 : f32
    %158 = math.rsqrt %157 : f32
    %159 = vector.broadcast %158 : f32 to vector<4x384xf32>
    %160 = arith.mulf %156, %159 : vector<4x384xf32>
    %161 = vector.extract_strided_slice %98 {offsets = [4, 0], sizes = [4, 1], strides = [1, 1]} : vector<12x1xf32> to vector<4x1xf32>
    %162 = vector.broadcast %161 : vector<4x1xf32> to vector<4x384xf32>
    %163 = arith.mulf %160, %162 : vector<4x384xf32>
    %164 = vector.extract_strided_slice %99 {offsets = [4, 0], sizes = [4, 1], strides = [1, 1]} : vector<12x1xf32> to vector<4x1xf32>
    %165 = vector.broadcast %164 : vector<4x1xf32> to vector<4x384xf32>
    %166 = arith.addf %163, %165 : vector<4x384xf32>
    %cst_80 = arith.constant 0.000000e+00 : f32
    %167 = vector.broadcast %cst_80 : f32 to vector<4x384xf32>
    %168 = arith.maximumf %166, %167 : vector<4x384xf32>
    %169 = vector.extract_strided_slice %101 {offsets = [4, 0], sizes = [4, 1], strides = [1, 1]} : vector<12x1xf32> to vector<4x1xf32>
    %170 = vector.broadcast %169 : vector<4x1xf32> to vector<4x384xf32>
    %171 = arith.mulf %168, %170 : vector<4x384xf32>
    %172 = arith.addf %137, %171 : vector<4x384xf32>
    %173 = vector.extract_strided_slice %97 {offsets = [8, 0], sizes = [4, 384], strides = [1, 1]} : vector<12x384xf32> to vector<4x384xf32>
    %174 = vector.broadcast %0 : vector<1x384xf32> to vector<4x384xf32>
    %175 = arith.mulf %173, %174 : vector<4x384xf32>
    %176 = vector.shape_cast %175 : vector<4x384xf32> to vector<1x4x384xf32>
    %cst_81 = arith.constant dense<0.000000e+00> : vector<1xf32>
    %177 = vector.multi_reduction <add>, %176, %cst_81 [1, 2] : vector<1x4x384xf32> to vector<1xf32>
    %178 = vector.shape_cast %177 : vector<1xf32> to vector<1x1x1xf32>
    %179 = vector.extract %178[0, 0, 0] : f32 from vector<1x1x1xf32>
    %180 = arith.mulf %175, %175 : vector<4x384xf32>
    %181 = vector.shape_cast %180 : vector<4x384xf32> to vector<1x4x384xf32>
    %cst_82 = arith.constant dense<0.000000e+00> : vector<1xf32>
    %182 = vector.multi_reduction <add>, %181, %cst_82 [1, 2] : vector<1x4x384xf32> to vector<1xf32>
    %183 = vector.shape_cast %182 : vector<1xf32> to vector<1x1x1xf32>
    %184 = vector.extract %183[0, 0, 0] : f32 from vector<1x1x1xf32>
    %cst_83 = arith.constant 9.765625E-4 : f32
    %185 = arith.mulf %179, %cst_83 : f32
    %cst_84 = arith.constant 9.765625E-4 : f32
    %186 = arith.mulf %184, %cst_84 : f32
    %187 = arith.mulf %185, %185 : f32
    %188 = arith.subf %186, %187 : f32
    %cst_85 = arith.constant 0.000000e+00 : f32
    %189 = arith.maximumf %188, %cst_85 : f32
    %190 = vector.broadcast %185 : f32 to vector<4x384xf32>
    %191 = arith.subf %175, %190 : vector<4x384xf32>
    %cst_86 = arith.constant 9.99999974E-6 : f32
    %192 = arith.addf %189, %cst_86 : f32
    %193 = math.rsqrt %192 : f32
    %194 = vector.broadcast %193 : f32 to vector<4x384xf32>
    %195 = arith.mulf %191, %194 : vector<4x384xf32>
    %196 = vector.extract_strided_slice %98 {offsets = [8, 0], sizes = [4, 1], strides = [1, 1]} : vector<12x1xf32> to vector<4x1xf32>
    %197 = vector.broadcast %196 : vector<4x1xf32> to vector<4x384xf32>
    %198 = arith.mulf %195, %197 : vector<4x384xf32>
    %199 = vector.extract_strided_slice %99 {offsets = [8, 0], sizes = [4, 1], strides = [1, 1]} : vector<12x1xf32> to vector<4x1xf32>
    %200 = vector.broadcast %199 : vector<4x1xf32> to vector<4x384xf32>
    %201 = arith.addf %198, %200 : vector<4x384xf32>
    %cst_87 = arith.constant 0.000000e+00 : f32
    %202 = vector.broadcast %cst_87 : f32 to vector<4x384xf32>
    %203 = arith.maximumf %201, %202 : vector<4x384xf32>
    %204 = vector.extract_strided_slice %101 {offsets = [8, 0], sizes = [4, 1], strides = [1, 1]} : vector<12x1xf32> to vector<4x1xf32>
    %205 = vector.broadcast %204 : vector<4x1xf32> to vector<4x384xf32>
    %206 = arith.mulf %203, %205 : vector<4x384xf32>
    %207 = arith.addf %172, %206 : vector<4x384xf32>
    %c0_88 = arith.constant 0 : index
    %c0_89 = arith.constant 0 : index
    %c0_90 = arith.constant 0 : index
    %208 = vector.load %arg12[%c0_88, %c0_89, %c0_90] : memref<1x4x1xf32, #tpu.memory_space<vmem>>, vector<1x4x1xf32>
    %209 = vector.shape_cast %208 : vector<1x4x1xf32> to vector<4x1xf32>
    %210 = vector.broadcast %209 : vector<4x1xf32> to vector<4x384xf32>
    %211 = arith.addf %207, %210 : vector<4x384xf32>
    %212 = vector.broadcast %4 : vector<1x384xf32> to vector<4x384xf32>
    %213 = arith.mulf %65, %212 : vector<4x384xf32>
    %214 = vector.broadcast %2 : vector<1x384xf32> to vector<4x384xf32>
    %215 = arith.mulf %211, %214 : vector<4x384xf32>
    %216 = arith.addf %213, %215 : vector<4x384xf32>
    %217 = vector.shape_cast %216 : vector<4x384xf32> to vector<1x4x384xf32>
    %cst_91 = arith.constant dense<0.000000e+00> : vector<1xf32>
    %218 = vector.multi_reduction <add>, %217, %cst_91 [1, 2] : vector<1x4x384xf32> to vector<1xf32>
    %219 = vector.shape_cast %218 : vector<1xf32> to vector<1x1x1xf32>
    %220 = vector.extract %219[0, 0, 0] : f32 from vector<1x1x1xf32>
    %221 = arith.mulf %216, %216 : vector<4x384xf32>
    %222 = vector.shape_cast %221 : vector<4x384xf32> to vector<1x4x384xf32>
    %cst_92 = arith.constant dense<0.000000e+00> : vector<1xf32>
    %223 = vector.multi_reduction <add>, %222, %cst_92 [1, 2] : vector<1x4x384xf32> to vector<1xf32>
    %224 = vector.shape_cast %223 : vector<1xf32> to vector<1x1x1xf32>
    %225 = vector.extract %224[0, 0, 0] : f32 from vector<1x1x1xf32>
    %cst_93 = arith.constant 1.024000e+03 : f32
    %226 = arith.divf %220, %cst_93 : f32
    %cst_94 = arith.constant 1.024000e+03 : f32
    %227 = arith.mulf %cst_94, %226 : f32
    %228 = arith.mulf %227, %226 : f32
    %229 = arith.subf %225, %228 : f32
    %cst_95 = arith.constant 1.023000e+03 : f32
    %230 = arith.divf %229, %cst_95 : f32
    %cst_96 = arith.constant 0.000000e+00 : f32
    %231 = arith.maximumf %230, %cst_96 : f32
    %232 = vector.broadcast %226 : f32 to vector<4x384xf32>
    %233 = arith.subf %216, %232 : vector<4x384xf32>
    %234 = math.sqrt %231 : f32
    %cst_97 = arith.constant 9.99999974E-6 : f32
    %235 = arith.addf %234, %cst_97 : f32
    %236 = vector.broadcast %235 : f32 to vector<4x384xf32>
    %237 = arith.divf %233, %236 : vector<4x384xf32>
    %c0_98 = arith.constant 0 : index
    %c0_99 = arith.constant 0 : index
    %238 = vector.load %arg21[%c0_98, %c0_99] : memref<4x1xf32, #tpu.memory_space<vmem>>, vector<4x1xf32>
    %239 = vector.broadcast %238 : vector<4x1xf32> to vector<4x384xf32>
    %240 = arith.mulf %237, %239 : vector<4x384xf32>
    %c0_100 = arith.constant 0 : index
    %c0_101 = arith.constant 0 : index
    %241 = vector.load %arg22[%c0_100, %c0_101] : memref<4x1xf32, #tpu.memory_space<vmem>>, vector<4x1xf32>
    %242 = vector.broadcast %241 : vector<4x1xf32> to vector<4x384xf32>
    %243 = arith.addf %240, %242 : vector<4x384xf32>
    %cst_102 = arith.constant 0.000000e+00 : f32
    %244 = vector.broadcast %cst_102 : f32 to vector<4x384xf32>
    %245 = arith.cmpf oge, %243, %244 : vector<4x384xf32>
    %cst_103 = arith.constant 2.000000e-01 : f32
    %246 = vector.broadcast %cst_103 : f32 to vector<4x384xf32>
    %247 = arith.mulf %246, %243 : vector<4x384xf32>
    %248 = arith.select %245, %243, %247 : vector<4x384xi1>, vector<4x384xf32>
    %249 = vector.extract_strided_slice %5 {offsets = [0, 0], sizes = [1, 384], strides = [1, 1]} : vector<4x384xf32> to vector<1x384xf32>
    %c348_i32_104 = arith.constant 348 : i32
    %250 = tpu.dynamic_rotate %248 by %c348_i32_104 dim 1 : vector<4x384xf32>, i32 -> vector<4x384xf32>
    %251 = arith.subf %250, %248 : vector<4x384xf32>
    %252 = vector.broadcast %249 : vector<1x384xf32> to vector<4x384xf32>
    %253 = arith.mulf %252, %251 : vector<4x384xf32>
    %254 = arith.addf %248, %253 : vector<4x384xf32>
    %255 = vector.extract_strided_slice %5 {offsets = [1, 0], sizes = [1, 384], strides = [1, 1]} : vector<4x384xf32> to vector<1x384xf32>
    %c36_i32_105 = arith.constant 36 : i32
    %256 = tpu.dynamic_rotate %254 by %c36_i32_105 dim 1 : vector<4x384xf32>, i32 -> vector<4x384xf32>
    %257 = arith.subf %256, %254 : vector<4x384xf32>
    %258 = vector.broadcast %255 : vector<1x384xf32> to vector<4x384xf32>
    %259 = arith.mulf %258, %257 : vector<4x384xf32>
    %260 = arith.addf %254, %259 : vector<4x384xf32>
    %261 = vector.extract_strided_slice %5 {offsets = [2, 0], sizes = [1, 384], strides = [1, 1]} : vector<4x384xf32> to vector<1x384xf32>
    %c382_i32_106 = arith.constant 382 : i32
    %262 = tpu.dynamic_rotate %260 by %c382_i32_106 dim 1 : vector<4x384xf32>, i32 -> vector<4x384xf32>
    %263 = arith.subf %262, %260 : vector<4x384xf32>
    %264 = vector.broadcast %261 : vector<1x384xf32> to vector<4x384xf32>
    %265 = arith.mulf %264, %263 : vector<4x384xf32>
    %266 = arith.addf %260, %265 : vector<4x384xf32>
    %267 = vector.extract_strided_slice %5 {offsets = [3, 0], sizes = [1, 384], strides = [1, 1]} : vector<4x384xf32> to vector<1x384xf32>
    %c2_i32_107 = arith.constant 2 : i32
    %268 = tpu.dynamic_rotate %266 by %c2_i32_107 dim 1 : vector<4x384xf32>, i32 -> vector<4x384xf32>
    %269 = arith.subf %268, %266 : vector<4x384xf32>
    %270 = vector.broadcast %267 : vector<1x384xf32> to vector<4x384xf32>
    %271 = arith.mulf %270, %269 : vector<4x384xf32>
    %272 = arith.addf %266, %271 : vector<4x384xf32>
    %c19_i32_108 = arith.constant 19 : i32
    %273 = tpu.dynamic_rotate %272 by %c19_i32_108 dim 1 : vector<4x384xf32>, i32 -> vector<4x384xf32>
    %274 = arith.truncf %273 : vector<4x384xf32> to vector<4x384xbf16>
    %c0_109 = arith.constant 0 : index
    %c0_110 = arith.constant 0 : index
    %275 = vector.load %arg24[%c0_109, %c0_110] : memref<36x384xbf16, #tpu.memory_space<vmem>>, vector<4x384xbf16>
    tpu.vector_store %arg24[%c0_109, %c0_110], %274 {strides = array<i32>} : memref<36x384xbf16, #tpu.memory_space<vmem>>, vector<4x384xbf16>,
    %c18_i32_111 = arith.constant 18 : i32
    %276 = tpu.dynamic_rotate %272 by %c18_i32_111 dim 1 : vector<4x384xf32>, i32 -> vector<4x384xf32>
    %277 = arith.truncf %276 : vector<4x384xf32> to vector<4x384xbf16>
    %c4_112 = arith.constant 4 : index
    %c0_113 = arith.constant 0 : index
    %278 = vector.load %arg24[%c4_112, %c0_113] : memref<36x384xbf16, #tpu.memory_space<vmem>>, vector<4x384xbf16>
    tpu.vector_store %arg24[%c4_112, %c0_113], %277 {strides = array<i32>} : memref<36x384xbf16, #tpu.memory_space<vmem>>, vector<4x384xbf16>,
    %c17_i32_114 = arith.constant 17 : i32
    %279 = tpu.dynamic_rotate %272 by %c17_i32_114 dim 1 : vector<4x384xf32>, i32 -> vector<4x384xf32>
    %280 = arith.truncf %279 : vector<4x384xf32> to vector<4x384xbf16>
    %c8_115 = arith.constant 8 : index
    %c0_116 = arith.constant 0 : index
    %281 = vector.load %arg24[%c8_115, %c0_116] : memref<36x384xbf16, #tpu.memory_space<vmem>>, vector<4x384xbf16>
    tpu.vector_store %arg24[%c8_115, %c0_116], %280 {strides = array<i32>} : memref<36x384xbf16, #tpu.memory_space<vmem>>, vector<4x384xbf16>,
    %c1_i32_117 = arith.constant 1 : i32
    %282 = tpu.dynamic_rotate %272 by %c1_i32_117 dim 1 : vector<4x384xf32>, i32 -> vector<4x384xf32>
    %283 = arith.truncf %282 : vector<4x384xf32> to vector<4x384xbf16>
    %c12_118 = arith.constant 12 : index
    %c0_119 = arith.constant 0 : index
    %284 = vector.load %arg24[%c12_118, %c0_119] : memref<36x384xbf16, #tpu.memory_space<vmem>>, vector<4x384xbf16>
    tpu.vector_store %arg24[%c12_118, %c0_119], %283 {strides = array<i32>} : memref<36x384xbf16, #tpu.memory_space<vmem>>, vector<4x384xbf16>,
    %285 = arith.truncf %272 : vector<4x384xf32> to vector<4x384xbf16>
    %c16_120 = arith.constant 16 : index
    %c0_121 = arith.constant 0 : index
    %286 = vector.load %arg24[%c16_120, %c0_121] : memref<36x384xbf16, #tpu.memory_space<vmem>>, vector<4x384xbf16>
    tpu.vector_store %arg24[%c16_120, %c0_121], %285 {strides = array<i32>} : memref<36x384xbf16, #tpu.memory_space<vmem>>, vector<4x384xbf16>,
    %c383_i32_122 = arith.constant 383 : i32
    %287 = tpu.dynamic_rotate %272 by %c383_i32_122 dim 1 : vector<4x384xf32>, i32 -> vector<4x384xf32>
    %288 = arith.truncf %287 : vector<4x384xf32> to vector<4x384xbf16>
    %c20_123 = arith.constant 20 : index
    %c0_124 = arith.constant 0 : index
    %289 = vector.load %arg24[%c20_123, %c0_124] : memref<36x384xbf16, #tpu.memory_space<vmem>>, vector<4x384xbf16>
    tpu.vector_store %arg24[%c20_123, %c0_124], %288 {strides = array<i32>} : memref<36x384xbf16, #tpu.memory_space<vmem>>, vector<4x384xbf16>,
    %c367_i32_125 = arith.constant 367 : i32
    %290 = tpu.dynamic_rotate %272 by %c367_i32_125 dim 1 : vector<4x384xf32>, i32 -> vector<4x384xf32>
    %291 = arith.truncf %290 : vector<4x384xf32> to vector<4x384xbf16>
    %c24_126 = arith.constant 24 : index
    %c0_127 = arith.constant 0 : index
    %292 = vector.load %arg24[%c24_126, %c0_127] : memref<36x384xbf16, #tpu.memory_space<vmem>>, vector<4x384xbf16>
    tpu.vector_store %arg24[%c24_126, %c0_127], %291 {strides = array<i32>} : memref<36x384xbf16, #tpu.memory_space<vmem>>, vector<4x384xbf16>,
    %c366_i32_128 = arith.constant 366 : i32
    %293 = tpu.dynamic_rotate %272 by %c366_i32_128 dim 1 : vector<4x384xf32>, i32 -> vector<4x384xf32>
    %294 = arith.truncf %293 : vector<4x384xf32> to vector<4x384xbf16>
    %c28_129 = arith.constant 28 : index
    %c0_130 = arith.constant 0 : index
    %295 = vector.load %arg24[%c28_129, %c0_130] : memref<36x384xbf16, #tpu.memory_space<vmem>>, vector<4x384xbf16>
    tpu.vector_store %arg24[%c28_129, %c0_130], %294 {strides = array<i32>} : memref<36x384xbf16, #tpu.memory_space<vmem>>, vector<4x384xbf16>,
    %c365_i32_131 = arith.constant 365 : i32
    %296 = tpu.dynamic_rotate %272 by %c365_i32_131 dim 1 : vector<4x384xf32>, i32 -> vector<4x384xf32>
    %297 = arith.truncf %296 : vector<4x384xf32> to vector<4x384xbf16>
    %c32_132 = arith.constant 32 : index
    %c0_133 = arith.constant 0 : index
    %298 = vector.load %arg24[%c32_132, %c0_133] : memref<36x384xbf16, #tpu.memory_space<vmem>>, vector<4x384xbf16>
    tpu.vector_store %arg24[%c32_132, %c0_133], %297 {strides = array<i32>} : memref<36x384xbf16, #tpu.memory_space<vmem>>, vector<4x384xbf16>,
    %c0_134 = arith.constant 0 : index
    %c0_135 = arith.constant 0 : index
    %299 = vector.load %arg13[%c0_134, %c0_135] : memref<4x36xbf16, #tpu.memory_space<vmem>>, vector<4x36xbf16>
    %c0_136 = arith.constant 0 : index
    %c0_137 = arith.constant 0 : index
    %300 = vector.load %arg24[%c0_136, %c0_137] : memref<36x384xbf16, #tpu.memory_space<vmem>>, vector<36x384xbf16>
    %cst_138 = arith.constant dense<0.000000e+00> : vector<4x384xf32>
    %301 = tpu.matmul %299, %300, %cst_138 {dimension_numbers = #tpu.dot_dimension_numbers<[1], [0], [0], [1], [0, 0, 1, 1], [], []>} : vector<4x36xbf16>, vector<36x384xbf16>, vector<4x384xf32> -> vector<4x384xf32>
    %c0_139 = arith.constant 0 : index
    %c0_140 = arith.constant 0 : index
    %302 = vector.load %arg14[%c0_139, %c0_140] : memref<4x1xf32, #tpu.memory_space<vmem>>, vector<4x1xf32>
    %303 = vector.broadcast %302 : vector<4x1xf32> to vector<4x384xf32>
    %304 = arith.addf %301, %303 : vector<4x384xf32>
    %305 = vector.broadcast %0 : vector<1x384xf32> to vector<4x384xf32>
    %306 = arith.mulf %304, %305 : vector<4x384xf32>
    %c19_i32_141 = arith.constant 19 : i32
    %307 = tpu.dynamic_rotate %306 by %c19_i32_141 dim 1 : vector<4x384xf32>, i32 -> vector<4x384xf32>
    %308 = arith.truncf %307 : vector<4x384xf32> to vector<4x384xbf16>
    %c0_142 = arith.constant 0 : index
    %c0_143 = arith.constant 0 : index
    %309 = vector.load %arg24[%c0_142, %c0_143] : memref<36x384xbf16, #tpu.memory_space<vmem>>, vector<4x384xbf16>
    tpu.vector_store %arg24[%c0_142, %c0_143], %308 {strides = array<i32>} : memref<36x384xbf16, #tpu.memory_space<vmem>>, vector<4x384xbf16>,
    %c18_i32_144 = arith.constant 18 : i32
    %310 = tpu.dynamic_rotate %306 by %c18_i32_144 dim 1 : vector<4x384xf32>, i32 -> vector<4x384xf32>
    %311 = arith.truncf %310 : vector<4x384xf32> to vector<4x384xbf16>
    %c4_145 = arith.constant 4 : index
    %c0_146 = arith.constant 0 : index
    %312 = vector.load %arg24[%c4_145, %c0_146] : memref<36x384xbf16, #tpu.memory_space<vmem>>, vector<4x384xbf16>
    tpu.vector_store %arg24[%c4_145, %c0_146], %311 {strides = array<i32>} : memref<36x384xbf16, #tpu.memory_space<vmem>>, vector<4x384xbf16>,
    %c17_i32_147 = arith.constant 17 : i32
    %313 = tpu.dynamic_rotate %306 by %c17_i32_147 dim 1 : vector<4x384xf32>, i32 -> vector<4x384xf32>
    %314 = arith.truncf %313 : vector<4x384xf32> to vector<4x384xbf16>
    %c8_148 = arith.constant 8 : index
    %c0_149 = arith.constant 0 : index
    %315 = vector.load %arg24[%c8_148, %c0_149] : memref<36x384xbf16, #tpu.memory_space<vmem>>, vector<4x384xbf16>
    tpu.vector_store %arg24[%c8_148, %c0_149], %314 {strides = array<i32>} : memref<36x384xbf16, #tpu.memory_space<vmem>>, vector<4x384xbf16>,
    %c1_i32_150 = arith.constant 1 : i32
    %316 = tpu.dynamic_rotate %306 by %c1_i32_150 dim 1 : vector<4x384xf32>, i32 -> vector<4x384xf32>
    %317 = arith.truncf %316 : vector<4x384xf32> to vector<4x384xbf16>
    %c12_151 = arith.constant 12 : index
    %c0_152 = arith.constant 0 : index
    %318 = vector.load %arg24[%c12_151, %c0_152] : memref<36x384xbf16, #tpu.memory_space<vmem>>, vector<4x384xbf16>
    tpu.vector_store %arg24[%c12_151, %c0_152], %317 {strides = array<i32>} : memref<36x384xbf16, #tpu.memory_space<vmem>>, vector<4x384xbf16>,
    %319 = arith.truncf %306 : vector<4x384xf32> to vector<4x384xbf16>
    %c16_153 = arith.constant 16 : index
    %c0_154 = arith.constant 0 : index
    %320 = vector.load %arg24[%c16_153, %c0_154] : memref<36x384xbf16, #tpu.memory_space<vmem>>, vector<4x384xbf16>
    tpu.vector_store %arg24[%c16_153, %c0_154], %319 {strides = array<i32>} : memref<36x384xbf16, #tpu.memory_space<vmem>>, vector<4x384xbf16>,
    %c383_i32_155 = arith.constant 383 : i32
    %321 = tpu.dynamic_rotate %306 by %c383_i32_155 dim 1 : vector<4x384xf32>, i32 -> vector<4x384xf32>
    %322 = arith.truncf %321 : vector<4x384xf32> to vector<4x384xbf16>
    %c20_156 = arith.constant 20 : index
    %c0_157 = arith.constant 0 : index
    %323 = vector.load %arg24[%c20_156, %c0_157] : memref<36x384xbf16, #tpu.memory_space<vmem>>, vector<4x384xbf16>
    tpu.vector_store %arg24[%c20_156, %c0_157], %322 {strides = array<i32>} : memref<36x384xbf16, #tpu.memory_space<vmem>>, vector<4x384xbf16>,
    %c367_i32_158 = arith.constant 367 : i32
    %324 = tpu.dynamic_rotate %306 by %c367_i32_158 dim 1 : vector<4x384xf32>, i32 -> vector<4x384xf32>
    %325 = arith.truncf %324 : vector<4x384xf32> to vector<4x384xbf16>
    %c24_159 = arith.constant 24 : index
    %c0_160 = arith.constant 0 : index
    %326 = vector.load %arg24[%c24_159, %c0_160] : memref<36x384xbf16, #tpu.memory_space<vmem>>, vector<4x384xbf16>
    tpu.vector_store %arg24[%c24_159, %c0_160], %325 {strides = array<i32>} : memref<36x384xbf16, #tpu.memory_space<vmem>>, vector<4x384xbf16>,
    %c366_i32_161 = arith.constant 366 : i32
    %327 = tpu.dynamic_rotate %306 by %c366_i32_161 dim 1 : vector<4x384xf32>, i32 -> vector<4x384xf32>
    %328 = arith.truncf %327 : vector<4x384xf32> to vector<4x384xbf16>
    %c28_162 = arith.constant 28 : index
    %c0_163 = arith.constant 0 : index
    %329 = vector.load %arg24[%c28_162, %c0_163] : memref<36x384xbf16, #tpu.memory_space<vmem>>, vector<4x384xbf16>
    tpu.vector_store %arg24[%c28_162, %c0_163], %328 {strides = array<i32>} : memref<36x384xbf16, #tpu.memory_space<vmem>>, vector<4x384xbf16>,
    %c365_i32_164 = arith.constant 365 : i32
    %330 = tpu.dynamic_rotate %306 by %c365_i32_164 dim 1 : vector<4x384xf32>, i32 -> vector<4x384xf32>
    %331 = arith.truncf %330 : vector<4x384xf32> to vector<4x384xbf16>
    %c32_165 = arith.constant 32 : index
    %c0_166 = arith.constant 0 : index
    %332 = vector.load %arg24[%c32_165, %c0_166] : memref<36x384xbf16, #tpu.memory_space<vmem>>, vector<4x384xbf16>
    tpu.vector_store %arg24[%c32_165, %c0_166], %331 {strides = array<i32>} : memref<36x384xbf16, #tpu.memory_space<vmem>>, vector<4x384xbf16>,
    %c0_167 = arith.constant 0 : index
    %c0_168 = arith.constant 0 : index
    %333 = vector.load %arg15[%c0_167, %c0_168] : memref<12x36xbf16, #tpu.memory_space<vmem>>, vector<12x36xbf16>
    %c0_169 = arith.constant 0 : index
    %c0_170 = arith.constant 0 : index
    %334 = vector.load %arg24[%c0_169, %c0_170] : memref<36x384xbf16, #tpu.memory_space<vmem>>, vector<36x384xbf16>
    %cst_171 = arith.constant dense<0.000000e+00> : vector<12x384xf32>
    %335 = tpu.matmul %333, %334, %cst_171 {dimension_numbers = #tpu.dot_dimension_numbers<[1], [0], [0], [1], [0, 0, 1, 1], [], []>} : vector<12x36xbf16>, vector<36x384xbf16>, vector<12x384xf32> -> vector<12x384xf32>
    %c0_172 = arith.constant 0 : index
    %c0_173 = arith.constant 0 : index
    %336 = vector.load %arg16[%c0_172, %c0_173] : memref<12x1xf32, #tpu.memory_space<vmem>>, vector<12x1xf32>
    %337 = vector.broadcast %336 : vector<12x1xf32> to vector<12x384xf32>
    %338 = arith.addf %335, %337 : vector<12x384xf32>
    %c0_174 = arith.constant 0 : index
    %c0_175 = arith.constant 0 : index
    %339 = vector.load %arg17[%c0_174, %c0_175] : memref<12x1xf32, #tpu.memory_space<vmem>>, vector<12x1xf32>
    %c0_176 = arith.constant 0 : index
    %c0_177 = arith.constant 0 : index
    %340 = vector.load %arg18[%c0_176, %c0_177] : memref<12x1xf32, #tpu.memory_space<vmem>>, vector<12x1xf32>
    %c0_178 = arith.constant 0 : index
    %c0_179 = arith.constant 0 : index
    %c0_180 = arith.constant 0 : index
    %341 = vector.load %arg19[%c0_178, %c0_179, %c0_180] : memref<1x12x1xf32, #tpu.memory_space<vmem>>, vector<1x12x1xf32>
    %342 = vector.shape_cast %341 : vector<1x12x1xf32> to vector<12x1xf32>
    %cst_181 = arith.constant 0.000000e+00 : f32
    %343 = vector.broadcast %cst_181 : f32 to vector<4x384xf32>
    %344 = vector.extract_strided_slice %338 {offsets = [0, 0], sizes = [4, 384], strides = [1, 1]} : vector<12x384xf32> to vector<4x384xf32>
    %345 = vector.broadcast %0 : vector<1x384xf32> to vector<4x384xf32>
    %346 = arith.mulf %344, %345 : vector<4x384xf32>
    %347 = vector.shape_cast %346 : vector<4x384xf32> to vector<1x4x384xf32>
    %cst_182 = arith.constant dense<0.000000e+00> : vector<1xf32>
    %348 = vector.multi_reduction <add>, %347, %cst_182 [1, 2] : vector<1x4x384xf32> to vector<1xf32>
    %349 = vector.shape_cast %348 : vector<1xf32> to vector<1x1x1xf32>
    %350 = vector.extract %349[0, 0, 0] : f32 from vector<1x1x1xf32>
    %351 = arith.mulf %346, %346 : vector<4x384xf32>
    %352 = vector.shape_cast %351 : vector<4x384xf32> to vector<1x4x384xf32>
    %cst_183 = arith.constant dense<0.000000e+00> : vector<1xf32>
    %353 = vector.multi_reduction <add>, %352, %cst_183 [1, 2] : vector<1x4x384xf32> to vector<1xf32>
    %354 = vector.shape_cast %353 : vector<1xf32> to vector<1x1x1xf32>
    %355 = vector.extract %354[0, 0, 0] : f32 from vector<1x1x1xf32>
    %cst_184 = arith.constant 9.765625E-4 : f32
    %356 = arith.mulf %350, %cst_184 : f32
    %cst_185 = arith.constant 9.765625E-4 : f32
    %357 = arith.mulf %355, %cst_185 : f32
    %358 = arith.mulf %356, %356 : f32
    %359 = arith.subf %357, %358 : f32
    %cst_186 = arith.constant 0.000000e+00 : f32
    %360 = arith.maximumf %359, %cst_186 : f32
    %361 = vector.broadcast %356 : f32 to vector<4x384xf32>
    %362 = arith.subf %346, %361 : vector<4x384xf32>
    %cst_187 = arith.constant 9.99999974E-6 : f32
    %363 = arith.addf %360, %cst_187 : f32
    %364 = math.rsqrt %363 : f32
    %365 = vector.broadcast %364 : f32 to vector<4x384xf32>
    %366 = arith.mulf %362, %365 : vector<4x384xf32>
    %367 = vector.extract_strided_slice %339 {offsets = [0, 0], sizes = [4, 1], strides = [1, 1]} : vector<12x1xf32> to vector<4x1xf32>
    %368 = vector.broadcast %367 : vector<4x1xf32> to vector<4x384xf32>
    %369 = arith.mulf %366, %368 : vector<4x384xf32>
    %370 = vector.extract_strided_slice %340 {offsets = [0, 0], sizes = [4, 1], strides = [1, 1]} : vector<12x1xf32> to vector<4x1xf32>
    %371 = vector.broadcast %370 : vector<4x1xf32> to vector<4x384xf32>
    %372 = arith.addf %369, %371 : vector<4x384xf32>
    %cst_188 = arith.constant 0.000000e+00 : f32
    %373 = vector.broadcast %cst_188 : f32 to vector<4x384xf32>
    %374 = arith.maximumf %372, %373 : vector<4x384xf32>
    %375 = vector.extract_strided_slice %342 {offsets = [0, 0], sizes = [4, 1], strides = [1, 1]} : vector<12x1xf32> to vector<4x1xf32>
    %376 = vector.broadcast %375 : vector<4x1xf32> to vector<4x384xf32>
    %377 = arith.mulf %374, %376 : vector<4x384xf32>
    %378 = arith.addf %343, %377 : vector<4x384xf32>
    %379 = vector.extract_strided_slice %338 {offsets = [4, 0], sizes = [4, 384], strides = [1, 1]} : vector<12x384xf32> to vector<4x384xf32>
    %380 = vector.broadcast %0 : vector<1x384xf32> to vector<4x384xf32>
    %381 = arith.mulf %379, %380 : vector<4x384xf32>
    %382 = vector.shape_cast %381 : vector<4x384xf32> to vector<1x4x384xf32>
    %cst_189 = arith.constant dense<0.000000e+00> : vector<1xf32>
    %383 = vector.multi_reduction <add>, %382, %cst_189 [1, 2] : vector<1x4x384xf32> to vector<1xf32>
    %384 = vector.shape_cast %383 : vector<1xf32> to vector<1x1x1xf32>
    %385 = vector.extract %384[0, 0, 0] : f32 from vector<1x1x1xf32>
    %386 = arith.mulf %381, %381 : vector<4x384xf32>
    %387 = vector.shape_cast %386 : vector<4x384xf32> to vector<1x4x384xf32>
    %cst_190 = arith.constant dense<0.000000e+00> : vector<1xf32>
    %388 = vector.multi_reduction <add>, %387, %cst_190 [1, 2] : vector<1x4x384xf32> to vector<1xf32>
    %389 = vector.shape_cast %388 : vector<1xf32> to vector<1x1x1xf32>
    %390 = vector.extract %389[0, 0, 0] : f32 from vector<1x1x1xf32>
    %cst_191 = arith.constant 9.765625E-4 : f32
    %391 = arith.mulf %385, %cst_191 : f32
    %cst_192 = arith.constant 9.765625E-4 : f32
    %392 = arith.mulf %390, %cst_192 : f32
    %393 = arith.mulf %391, %391 : f32
    %394 = arith.subf %392, %393 : f32
    %cst_193 = arith.constant 0.000000e+00 : f32
    %395 = arith.maximumf %394, %cst_193 : f32
    %396 = vector.broadcast %391 : f32 to vector<4x384xf32>
    %397 = arith.subf %381, %396 : vector<4x384xf32>
    %cst_194 = arith.constant 9.99999974E-6 : f32
    %398 = arith.addf %395, %cst_194 : f32
    %399 = math.rsqrt %398 : f32
    %400 = vector.broadcast %399 : f32 to vector<4x384xf32>
    %401 = arith.mulf %397, %400 : vector<4x384xf32>
    %402 = vector.extract_strided_slice %339 {offsets = [4, 0], sizes = [4, 1], strides = [1, 1]} : vector<12x1xf32> to vector<4x1xf32>
    %403 = vector.broadcast %402 : vector<4x1xf32> to vector<4x384xf32>
    %404 = arith.mulf %401, %403 : vector<4x384xf32>
    %405 = vector.extract_strided_slice %340 {offsets = [4, 0], sizes = [4, 1], strides = [1, 1]} : vector<12x1xf32> to vector<4x1xf32>
    %406 = vector.broadcast %405 : vector<4x1xf32> to vector<4x384xf32>
    %407 = arith.addf %404, %406 : vector<4x384xf32>
    %cst_195 = arith.constant 0.000000e+00 : f32
    %408 = vector.broadcast %cst_195 : f32 to vector<4x384xf32>
    %409 = arith.maximumf %407, %408 : vector<4x384xf32>
    %410 = vector.extract_strided_slice %342 {offsets = [4, 0], sizes = [4, 1], strides = [1, 1]} : vector<12x1xf32> to vector<4x1xf32>
    %411 = vector.broadcast %410 : vector<4x1xf32> to vector<4x384xf32>
    %412 = arith.mulf %409, %411 : vector<4x384xf32>
    %413 = arith.addf %378, %412 : vector<4x384xf32>
    %414 = vector.extract_strided_slice %338 {offsets = [8, 0], sizes = [4, 384], strides = [1, 1]} : vector<12x384xf32> to vector<4x384xf32>
    %415 = vector.broadcast %0 : vector<1x384xf32> to vector<4x384xf32>
    %416 = arith.mulf %414, %415 : vector<4x384xf32>
    %417 = vector.shape_cast %416 : vector<4x384xf32> to vector<1x4x384xf32>
    %cst_196 = arith.constant dense<0.000000e+00> : vector<1xf32>
    %418 = vector.multi_reduction <add>, %417, %cst_196 [1, 2] : vector<1x4x384xf32> to vector<1xf32>
    %419 = vector.shape_cast %418 : vector<1xf32> to vector<1x1x1xf32>
    %420 = vector.extract %419[0, 0, 0] : f32 from vector<1x1x1xf32>
    %421 = arith.mulf %416, %416 : vector<4x384xf32>
    %422 = vector.shape_cast %421 : vector<4x384xf32> to vector<1x4x384xf32>
    %cst_197 = arith.constant dense<0.000000e+00> : vector<1xf32>
    %423 = vector.multi_reduction <add>, %422, %cst_197 [1, 2] : vector<1x4x384xf32> to vector<1xf32>
    %424 = vector.shape_cast %423 : vector<1xf32> to vector<1x1x1xf32>
    %425 = vector.extract %424[0, 0, 0] : f32 from vector<1x1x1xf32>
    %cst_198 = arith.constant 9.765625E-4 : f32
    %426 = arith.mulf %420, %cst_198 : f32
    %cst_199 = arith.constant 9.765625E-4 : f32
    %427 = arith.mulf %425, %cst_199 : f32
    %428 = arith.mulf %426, %426 : f32
    %429 = arith.subf %427, %428 : f32
    %cst_200 = arith.constant 0.000000e+00 : f32
    %430 = arith.maximumf %429, %cst_200 : f32
    %431 = vector.broadcast %426 : f32 to vector<4x384xf32>
    %432 = arith.subf %416, %431 : vector<4x384xf32>
    %cst_201 = arith.constant 9.99999974E-6 : f32
    %433 = arith.addf %430, %cst_201 : f32
    %434 = math.rsqrt %433 : f32
    %435 = vector.broadcast %434 : f32 to vector<4x384xf32>
    %436 = arith.mulf %432, %435 : vector<4x384xf32>
    %437 = vector.extract_strided_slice %339 {offsets = [8, 0], sizes = [4, 1], strides = [1, 1]} : vector<12x1xf32> to vector<4x1xf32>
    %438 = vector.broadcast %437 : vector<4x1xf32> to vector<4x384xf32>
    %439 = arith.mulf %436, %438 : vector<4x384xf32>
    %440 = vector.extract_strided_slice %340 {offsets = [8, 0], sizes = [4, 1], strides = [1, 1]} : vector<12x1xf32> to vector<4x1xf32>
    %441 = vector.broadcast %440 : vector<4x1xf32> to vector<4x384xf32>
    %442 = arith.addf %439, %441 : vector<4x384xf32>
    %cst_202 = arith.constant 0.000000e+00 : f32
    %443 = vector.broadcast %cst_202 : f32 to vector<4x384xf32>
    %444 = arith.maximumf %442, %443 : vector<4x384xf32>
    %445 = vector.extract_strided_slice %342 {offsets = [8, 0], sizes = [4, 1], strides = [1, 1]} : vector<12x1xf32> to vector<4x1xf32>
    %446 = vector.broadcast %445 : vector<4x1xf32> to vector<4x384xf32>
    %447 = arith.mulf %444, %446 : vector<4x384xf32>
    %448 = arith.addf %413, %447 : vector<4x384xf32>
    %c0_203 = arith.constant 0 : index
    %c0_204 = arith.constant 0 : index
    %c0_205 = arith.constant 0 : index
    %449 = vector.load %arg20[%c0_203, %c0_204, %c0_205] : memref<1x4x1xf32, #tpu.memory_space<vmem>>, vector<1x4x1xf32>
    %450 = vector.shape_cast %449 : vector<1x4x1xf32> to vector<4x1xf32>
    %451 = vector.broadcast %450 : vector<4x1xf32> to vector<4x384xf32>
    %452 = arith.addf %448, %451 : vector<4x384xf32>
    %453 = vector.broadcast %4 : vector<1x384xf32> to vector<4x384xf32>
    %454 = arith.mulf %306, %453 : vector<4x384xf32>
    %455 = vector.broadcast %2 : vector<1x384xf32> to vector<4x384xf32>
    %456 = arith.mulf %452, %455 : vector<4x384xf32>
    %457 = arith.addf %454, %456 : vector<4x384xf32>
    %458 = vector.shape_cast %457 : vector<4x384xf32> to vector<1x4x384xf32>
    %cst_206 = arith.constant dense<0.000000e+00> : vector<1xf32>
    %459 = vector.multi_reduction <add>, %458, %cst_206 [1, 2] : vector<1x4x384xf32> to vector<1xf32>
    %460 = vector.shape_cast %459 : vector<1xf32> to vector<1x1x1xf32>
    %461 = vector.extract %460[0, 0, 0] : f32 from vector<1x1x1xf32>
    %462 = arith.mulf %457, %457 : vector<4x384xf32>
    %463 = vector.shape_cast %462 : vector<4x384xf32> to vector<1x4x384xf32>
    %cst_207 = arith.constant dense<0.000000e+00> : vector<1xf32>
    %464 = vector.multi_reduction <add>, %463, %cst_207 [1, 2] : vector<1x4x384xf32> to vector<1xf32>
    %465 = vector.shape_cast %464 : vector<1xf32> to vector<1x1x1xf32>
    %466 = vector.extract %465[0, 0, 0] : f32 from vector<1x1x1xf32>
    %cst_208 = arith.constant 1.024000e+03 : f32
    %467 = arith.divf %461, %cst_208 : f32
    %cst_209 = arith.constant 1.024000e+03 : f32
    %468 = arith.mulf %cst_209, %467 : f32
    %469 = arith.mulf %468, %467 : f32
    %470 = arith.subf %466, %469 : f32
    %cst_210 = arith.constant 1.023000e+03 : f32
    %471 = arith.divf %470, %cst_210 : f32
    %cst_211 = arith.constant 0.000000e+00 : f32
    %472 = arith.maximumf %471, %cst_211 : f32
    %473 = vector.broadcast %467 : f32 to vector<4x384xf32>
    %474 = arith.subf %457, %473 : vector<4x384xf32>
    %475 = math.sqrt %472 : f32
    %cst_212 = arith.constant 9.99999974E-6 : f32
    %476 = arith.addf %475, %cst_212 : f32
    %477 = vector.broadcast %476 : f32 to vector<4x384xf32>
    %478 = arith.divf %474, %477 : vector<4x384xf32>
    %c0_213 = arith.constant 0 : index
    %c0_214 = arith.constant 0 : index
    %479 = vector.load %arg21[%c0_213, %c0_214] : memref<4x1xf32, #tpu.memory_space<vmem>>, vector<4x1xf32>
    %480 = vector.broadcast %479 : vector<4x1xf32> to vector<4x384xf32>
    %481 = arith.mulf %478, %480 : vector<4x384xf32>
    %c0_215 = arith.constant 0 : index
    %c0_216 = arith.constant 0 : index
    %482 = vector.load %arg22[%c0_215, %c0_216] : memref<4x1xf32, #tpu.memory_space<vmem>>, vector<4x1xf32>
    %483 = vector.broadcast %482 : vector<4x1xf32> to vector<4x384xf32>
    %484 = arith.addf %481, %483 : vector<4x384xf32>
    %485 = arith.addf %484, %7 : vector<4x384xf32>
    %c0_217 = arith.constant 0 : index
    %c0_218 = arith.constant 0 : index
    %c0_219 = arith.constant 0 : index
    %486 = vector.load %arg23[%c0_217, %c0_218, %c0_219] : memref<1x4x384xf32, #tpu.memory_space<vmem>>, vector<1x4x384xf32>
    %487 = vector.shape_cast %486 : vector<1x4x384xf32> to vector<4x384xf32>
    %488 = vector.shape_cast %485 : vector<4x384xf32> to vector<1x4x384xf32>
    tpu.vector_store %arg23[%c0_217, %c0_218, %c0_219], %488 {strides = array<i32>} : memref<1x4x384xf32, #tpu.memory_space<vmem>>, vector<1x4x384xf32>,
    return
  }
  func.func @transform_0(%arg0: i32) -> (i32, i32, i32) {
    %c0_i32 = arith.constant 0 : i32
    %c0_i32_0 = arith.constant 0 : i32
    %c0_i32_1 = arith.constant 0 : i32
    return %arg0, %c0_i32, %c0_i32_0 : i32, i32, i32
  }
  func.func @transform_1(%arg0: i32) -> (i32, i32, i32) {
    %c0_i32 = arith.constant 0 : i32
    %c0_i32_0 = arith.constant 0 : i32
    %c0_i32_1 = arith.constant 0 : i32
    return %arg0, %c0_i32, %c0_i32_0 : i32, i32, i32
  }
  func.func @transform_2(%arg0: i32) -> (i32, i32) {
    %c0_i32 = arith.constant 0 : i32
    %c0_i32_0 = arith.constant 0 : i32
    %c0_i32_1 = arith.constant 0 : i32
    return %c0_i32, %c0_i32_0 : i32, i32
  }
  func.func @transform_3(%arg0: i32) -> (i32, i32) {
    %c0_i32 = arith.constant 0 : i32
    %c0_i32_0 = arith.constant 0 : i32
    %c0_i32_1 = arith.constant 0 : i32
    return %c0_i32, %c0_i32_0 : i32, i32
  }
  func.func @transform_4(%arg0: i32) -> (i32, i32) {
    %c0_i32 = arith.constant 0 : i32
    %c0_i32_0 = arith.constant 0 : i32
    %c0_i32_1 = arith.constant 0 : i32
    return %c0_i32, %c0_i32_0 : i32, i32
  }
  func.func @transform_5(%arg0: i32) -> (i32, i32) {
    %c0_i32 = arith.constant 0 : i32
    %c0_i32_0 = arith.constant 0 : i32
    %c0_i32_1 = arith.constant 0 : i32
    return %c0_i32, %c0_i32_0 : i32, i32
  }
  func.func @transform_6(%arg0: i32) -> (i32, i32) {
    %c0_i32 = arith.constant 0 : i32
    %c0_i32_0 = arith.constant 0 : i32
    %c0_i32_1 = arith.constant 0 : i32
    return %c0_i32, %c0_i32_0 : i32, i32
  }
  func.func @transform_7(%arg0: i32) -> (i32, i32) {
    %c0_i32 = arith.constant 0 : i32
    %c0_i32_0 = arith.constant 0 : i32
    %c0_i32_1 = arith.constant 0 : i32
    return %c0_i32, %c0_i32_0 : i32, i32
  }
  func.func @transform_8(%arg0: i32) -> (i32, i32) {
    %c0_i32 = arith.constant 0 : i32
    %c0_i32_0 = arith.constant 0 : i32
    %c0_i32_1 = arith.constant 0 : i32
    return %c0_i32, %c0_i32_0 : i32, i32
  }
  func.func @transform_9(%arg0: i32) -> (i32, i32) {
    %c0_i32 = arith.constant 0 : i32
    %c0_i32_0 = arith.constant 0 : i32
    %c0_i32_1 = arith.constant 0 : i32
    return %c0_i32, %c0_i32_0 : i32, i32
  }
  func.func @transform_10(%arg0: i32) -> (i32, i32, i32) {
    %c0_i32 = arith.constant 0 : i32
    %c0_i32_0 = arith.constant 0 : i32
    %c0_i32_1 = arith.constant 0 : i32
    return %arg0, %c0_i32, %c0_i32_0 : i32, i32, i32
  }
  func.func @transform_11(%arg0: i32) -> (i32, i32, i32) {
    %c0_i32 = arith.constant 0 : i32
    %c0_i32_0 = arith.constant 0 : i32
    %c0_i32_1 = arith.constant 0 : i32
    return %arg0, %c0_i32, %c0_i32_0 : i32, i32, i32
  }
  func.func @transform_12(%arg0: i32) -> (i32, i32) {
    %c0_i32 = arith.constant 0 : i32
    %c0_i32_0 = arith.constant 0 : i32
    %c0_i32_1 = arith.constant 0 : i32
    return %c0_i32, %c0_i32_0 : i32, i32
  }
  func.func @transform_13(%arg0: i32) -> (i32, i32) {
    %c0_i32 = arith.constant 0 : i32
    %c0_i32_0 = arith.constant 0 : i32
    %c0_i32_1 = arith.constant 0 : i32
    return %c0_i32, %c0_i32_0 : i32, i32
  }
  func.func @transform_14(%arg0: i32) -> (i32, i32) {
    %c0_i32 = arith.constant 0 : i32
    %c0_i32_0 = arith.constant 0 : i32
    %c0_i32_1 = arith.constant 0 : i32
    return %c0_i32, %c0_i32_0 : i32, i32
  }
  func.func @transform_15(%arg0: i32) -> (i32, i32) {
    %c0_i32 = arith.constant 0 : i32
    %c0_i32_0 = arith.constant 0 : i32
    %c0_i32_1 = arith.constant 0 : i32
    return %c0_i32, %c0_i32_0 : i32, i32
  }
  func.func @transform_16(%arg0: i32) -> (i32, i32) {
    %c0_i32 = arith.constant 0 : i32
    %c0_i32_0 = arith.constant 0 : i32
    %c0_i32_1 = arith.constant 0 : i32
    return %c0_i32, %c0_i32_0 : i32, i32
  }
  func.func @transform_17(%arg0: i32) -> (i32, i32) {
    %c0_i32 = arith.constant 0 : i32
    %c0_i32_0 = arith.constant 0 : i32
    %c0_i32_1 = arith.constant 0 : i32
    return %c0_i32, %c0_i32_0 : i32, i32
  }
  func.func @transform_18(%arg0: i32) -> (i32, i32, i32) {
    %c0_i32 = arith.constant 0 : i32
    %c0_i32_0 = arith.constant 0 : i32
    %c0_i32_1 = arith.constant 0 : i32
    return %arg0, %c0_i32, %c0_i32_0 : i32, i32, i32
  }
  func.func @transform_19(%arg0: i32) -> (i32, i32, i32) {
    %c0_i32 = arith.constant 0 : i32
    %c0_i32_0 = arith.constant 0 : i32
    %c0_i32_1 = arith.constant 0 : i32
    return %arg0, %c0_i32, %c0_i32_0 : i32, i32, i32
  }
  func.func @transform_20(%arg0: i32) -> (i32, i32) {
    %c0_i32 = arith.constant 0 : i32
    %c0_i32_0 = arith.constant 0 : i32
    %c0_i32_1 = arith.constant 0 : i32
    return %c0_i32, %c0_i32_0 : i32, i32
  }
  func.func @transform_21(%arg0: i32) -> (i32, i32) {
    %c0_i32 = arith.constant 0 : i32
    %c0_i32_0 = arith.constant 0 : i32
    %c0_i32_1 = arith.constant 0 : i32
    return %c0_i32, %c0_i32_0 : i32, i32
  }
  func.func @transform_22(%arg0: i32) -> (i32, i32, i32) {
    %c0_i32 = arith.constant 0 : i32
    %c0_i32_0 = arith.constant 0 : i32
    %c0_i32_1 = arith.constant 0 : i32
    return %arg0, %c0_i32, %c0_i32_0 : i32, i32, i32
  }
}

</mosaic_0001>

<llo_original>
// kernel: lighting_res_blocks_forward.3
$region0: #{lighting_res_blocks_forward.3}
  #allocation0 [shape = 'u32[]', space=smem, size = 0x4, offset = 0x4, fixed_abs, tag = 'smem constant byte address 0x4 - core index']
  #allocation1 [shape = 'u32[72,128]{1,0:T(1,128)}', space=vmem, size = 0x9000, scoped, tag = 'internal scratch']
  %s0 = inlined_call_operand.vmem [shape: f32[2,8], index: 0, kind: input, shape index: {}]
  %s1 = inlined_call_operand.vmem [shape: f32[2,8], index: 1, kind: input, shape index: {}]
  %s2 = inlined_call_operand.vmem [shape: f32[8,64], index: 2, kind: input, shape index: {}]
  %s3 = inlined_call_operand.vmem [shape: f32[1,64], index: 3, kind: input, shape index: {}]
  %s4 = inlined_call_operand.vmem [shape: f32[12,2,4], index: 4, kind: output, shape index: {0}]
  %s5 = inlined_call_operand.vmem [shape: f32[4,2,4], index: 5, kind: output, shape index: {1}]
  %6 = xla_tuple %s4, %s5
  %s7 = sld [smem:[#allocation0]]
  $region34: #{lighting_res_blocks_forward.3} parent=0
    _
  %s9 = ssub.s32 1, %s7
  %s10 = scalar_select 0, %s9, %s7
  // Predicated region
  $region2: #{lighting_res_blocks_forward.3} parent=0 // pred_check
    _
  $region3: #{lighting_res_blocks_forward.3} parent=0 // pred_check_branch
    %12 = sbr.rel (0) target = $region5
  $region4: #{lighting_res_blocks_forward.3} parent=0 // pred_region
    _
  $region5: #{lighting_res_blocks_forward.3} parent=0 // pred_fallthru
    _
  // Predicated region
  $region6: #{lighting_res_blocks_forward.3} parent=0 // pred_check
    _
  $region7: #{lighting_res_blocks_forward.3} parent=0 // pred_check_branch
    %14 = sbr.rel (0) target = $region9
  $region8: #{lighting_res_blocks_forward.3} parent=0 // pred_region
    _
  $region9: #{lighting_res_blocks_forward.3} parent=0 // pred_fallthru
    _
  // Predicated region
  $region10: #{lighting_res_blocks_forward.3} parent=0 // pred_check
    _
  $region11: #{lighting_res_blocks_forward.3} parent=0 // pred_check_branch
    %16 = sbr.rel (0) target = $region13
  $region12: #{lighting_res_blocks_forward.3} parent=0 // pred_region
    _
  $region13: #{lighting_res_blocks_forward.3} parent=0 // pred_fallthru
    _
  // Predicated region
  $region14: #{lighting_res_blocks_forward.3} parent=0 // pred_check
    _
  $region15: #{lighting_res_blocks_forward.3} parent=0 // pred_check_branch
    %18 = sbr.rel (0) target = $region17
  $region16: #{lighting_res_blocks_forward.3} parent=0 // pred_region
    _
  $region17: #{lighting_res_blocks_forward.3} parent=0 // pred_fallthru
    _
  %v19 = vld [vmem:[%s2] sm:$0xff]
  %v20 = vld [vmem:[%s3] sm:$0x1]
  %v21 = vld [vmem:[%s0] sm:$0x3]
  %v23 = vperm.slane %v20, 0
  %vm25 = vcmask 64512
  %v27 = vsel %vm25, %v21, 0
  %29 = vmatpush.msra.mxu0 0.0
  %30 = vmatpush.msra.mxu0 0.0
  %31 = vmatpush.msra.mxu0 0.0
  %32 = vmatpush.msra.mxu0 0.0
  %33 = vmatpush.msra.mxu0 0.0
  %34 = vmatpush.msra.mxu0 0.0
  %35 = vmatpush.msra.mxu0 0.0
  %36 = vmatpush.msra.mxu0 0.0
  %37 = vmatpush.msra.mxu0 0.0
  %38 = vmatpush.msra.mxu0 0.0
  %39 = vmatpush.msra.mxu0 0.0
  %40 = vmatpush.msra.mxu0 0.0
  %41 = vmatpush.msra.mxu0 0.0
  %42 = vmatpush.msra.mxu0 0.0
  %43 = vmatpush.msra.mxu0 0.0
  %44 = vmatpush.msra.mxu0 %v19
  %45 = vmatmul.f32.gmra.mxu0 %v27
  %v46 = vpop.f32.mrf.mxu0
  %v47 = vadd.f32 %v23, %v46
  %48 = vdwg.mxu0
  %v49 = vmax.f32 %v47, 0.0
  %v50 = vld [vmem:[%s1] sm:$0x3]
  %v52 = vsel %vm25, %v50, 0
  %54 = vmatpush.msra.mxu0 0.0
  %55 = vmatpush.msra.mxu0 0.0
  %56 = vmatpush.msra.mxu0 0.0
  %57 = vmatpush.msra.mxu0 0.0
  %58 = vmatpush.msra.mxu0 0.0
  %59 = vmatpush.msra.mxu0 0.0
  %60 = vmatpush.msra.mxu0 0.0
  %61 = vmatpush.msra.mxu0 0.0
  %62 = vmatpush.msra.mxu0 0.0
  %63 = vmatpush.msra.mxu0 0.0
  %64 = vmatpush.msra.mxu0 0.0
  %65 = vmatpush.msra.mxu0 0.0
  %66 = vmatpush.msra.mxu0 0.0
  %67 = vmatpush.msra.mxu0 0.0
  %68 = vmatpush.msra.mxu0 0.0
  %69 = vmatpush.msra.mxu0 %v19
  %70 = vmatmul.f32.gmra.mxu0 %v52
  %v71 = vpop.f32.mrf.mxu0
  %v72 = vadd.f32 %v23, %v71
  %73 = vdwg.mxu0
  %v74 = vmax.f32 %v72, 0.0
  %76 = vrot.lane.b32.xlu0 %v49, 124
  %v77 = vpop.permute.xlu0 %76
  %v79 = vmax.f32 %v49, %v77
  %80 = vrot.lane.b32.xlu0 %v49, 120
  %v81 = vpop.permute.xlu0 %80
  %v83 = vmax.f32 %v79, %v81
  %v84 = vsub.f32 %v49, %v83
  %v85 = vmul.f32 %v84, 1.442695
  %v86 = vpow.pop %v85
  %88 = vrot.lane.b32.xlu0 %v83, 4
  %v89 = vpop.permute.xlu0 %88
  %v91 = vsub.f32 %v49, %v89
  %v92 = vmul.f32 %v91, 1.442695
  %v93 = vpow.pop %v92
  %94 = vrot.lane.b32.xlu0 %v83, 8
  %v95 = vpop.permute.xlu0 %94
  %v97 = vsub.f32 %v49, %v95
  %v98 = vmul.f32 %v97, 1.442695
  %v99 = vpow.pop %v98
  %101 = vrot.lane.b32.xlu0 %v93, 124
  %v102 = vpop.permute.xlu0 %101
  %v104 = vadd.f32 %v86, %v102
  %106 = vrot.lane.b32.xlu0 %v99, 120
  %v107 = vpop.permute.xlu0 %106
  %v109 = vadd.f32 %v104, %v107
  %v110 = vrcp.pop %v109
  %v111 = vmul.f32 %v109, %v110
  %v112 = vsub.f32 1.0, %v111
  %v113 = vmul.f32 %v110, %v112
  %v114 = vadd.f32 %v110, %v113
  %vm115 = vweird.f32 %v109
  %vm116 = vweird.f32 %v110
  %vm117 = vmor %vm115, %vm116
  %v118 = vsel %vm117, %v110, %v114
  %v119 = vand.u32 2147483647, %v109
  %vm120 = vcmp.eq.f32.partialorder %v119, 8.507059e+37
  %v121 = vand.u32 %v109, 2147483648
  %v122 = vor.u32 1.1754944e-38, %v121
  %v123 = vsel %vm120, %v122, %v118
  %v124 = vmul.f32 1.0, %v123
  %v125 = vmul.f32 %v86, %v124
  %127 = vrot.lane.b32.xlu0 %v124, 4
  %v128 = vpop.permute.xlu0 %127
  %v130 = vmul.f32 %v93, %v128
  %131 = vrot.lane.b32.xlu0 %v124, 8
  %v132 = vpop.permute.xlu0 %131
  %v134 = vmul.f32 %v99, %v132
  %136 = vrot.lane.b32.xlu0 %v74, 124
  %v137 = vpop.permute.xlu0 %136
  %v139 = vmax.f32 %v74, %v137
  %140 = vrot.lane.b32.xlu0 %v74, 120
  %v141 = vpop.permute.xlu0 %140
  %v143 = vmax.f32 %v139, %v141
  %v144 = vsub.f32 %v74, %v143
  %v145 = vmul.f32 %v144, 1.442695
  %v146 = vpow.pop %v145
  %148 = vrot.lane.b32.xlu0 %v143, 4
  %v149 = vpop.permute.xlu0 %148
  %v151 = vsub.f32 %v74, %v149
  %v152 = vmul.f32 %v151, 1.442695
  %v153 = vpow.pop %v152
  %154 = vrot.lane.b32.xlu0 %v143, 8
  %v155 = vpop.permute.xlu0 %154
  %v157 = vsub.f32 %v74, %v155
  %v158 = vmul.f32 %v157, 1.442695
  %v159 = vpow.pop %v158
  %161 = vrot.lane.b32.xlu0 %v153, 124
  %v162 = vpop.permute.xlu0 %161
  %v164 = vadd.f32 %v146, %v162
  %166 = vrot.lane.b32.xlu0 %v159, 120
  %v167 = vpop.permute.xlu0 %166
  %v169 = vadd.f32 %v164, %v167
  %v170 = vrcp.pop %v169
  %v171 = vmul.f32 %v169, %v170
  %v172 = vsub.f32 1.0, %v171
  %v173 = vmul.f32 %v170, %v172
  %v174 = vadd.f32 %v170, %v173
  %vm175 = vweird.f32 %v169
  %vm176 = vweird.f32 %v170
  %vm177 = vmor %vm175, %vm176
  %v178 = vsel %vm177, %v170, %v174
  %v179 = vand.u32 2147483647, %v169
  %vm180 = vcmp.eq.f32.partialorder %v179, 8.507059e+37
  %v181 = vand.u32 %v169, 2147483648
  %v182 = vor.u32 1.1754944e-38, %v181
  %v183 = vsel %vm180, %v182, %v178
  %v184 = vmul.f32 1.0, %v183
  %v185 = vmul.f32 %v146, %v184
  %187 = vrot.lane.b32.xlu0 %v184, 4
  %v188 = vpop.permute.xlu0 %187
  %v190 = vmul.f32 %v153, %v188
  %191 = vrot.lane.b32.xlu0 %v184, 8
  %v192 = vpop.permute.xlu0 %191
  %v194 = vmul.f32 %v159, %v192
  %v195 = vadd.f32 %v125, 1e-08
  %v196 = vrcp.pop %v195
  %v197 = vmul.f32 %v195, %v196
  %v198 = vsub.f32 1.0, %v197
  %v199 = vmul.f32 %v196, %v198
  %v200 = vadd.f32 %v196, %v199
  %vm201 = vweird.f32 %v195
  %vm202 = vweird.f32 %v196
  %vm203 = vmor %vm201, %vm202
  %v204 = vsel %vm203, %v196, %v200
  %v205 = vand.u32 2147483647, %v195
  %vm206 = vcmp.eq.f32.partialorder %v205, 8.507059e+37
  %v207 = vand.u32 %v195, 2147483648
  %v208 = vor.u32 1.1754944e-38, %v207
  %v209 = vsel %vm206, %v208, %v204
  %v210 = vmul.f32 %v185, %v209
  %212 = vrot.lane.b32.xlu0 %v210, 124
  %v213 = vpop.permute.xlu0 %212
  %vm215 = vcmask 25600
  %216 = vst.msk [vmem:[%s4] sm:$0x3] %vm215, %v213
  %v217 = vadd.f32 %v130, 1e-08
  %v218 = vrcp.pop %v217
  %v219 = vmul.f32 %v217, %v218
  %v220 = vsub.f32 1.0, %v219
  %v221 = vmul.f32 %v218, %v220
  %v222 = vadd.f32 %v218, %v221
  %vm223 = vweird.f32 %v217
  %vm224 = vweird.f32 %v218
  %vm225 = vmor %vm223, %vm224
  %v226 = vsel %vm225, %v218, %v222
  %v227 = vand.u32 2147483647, %v217
  %vm228 = vcmp.eq.f32.partialorder %v227, 8.507059e+37
  %v229 = vand.u32 %v217, 2147483648
  %v230 = vor.u32 1.1754944e-38, %v229
  %v231 = vsel %vm228, %v230, %v226
  %v232 = vmul.f32 %v190, %v231
  %234 = vrot.lane.b32.xlu0 %v232, 120
  %v235 = vpop.permute.xlu0 %234
  %s237 = scalar_lea.vmem %s4, 2
  %238 = vst.msk [vmem:[%s237] sm:$0x3] %vm215, %v235
  %v239 = vadd.f32 %v134, 1e-08
  %v240 = vrcp.pop %v239
  %v241 = vmul.f32 %v239, %v240
  %v242 = vsub.f32 1.0, %v241
  %v243 = vmul.f32 %v240, %v242
  %v244 = vadd.f32 %v240, %v243
  %vm245 = vweird.f32 %v239
  %vm246 = vweird.f32 %v240
  %vm247 = vmor %vm245, %vm246
  %v248 = vsel %vm247, %v240, %v244
  %v249 = vand.u32 2147483647, %v239
  %vm250 = vcmp.eq.f32.partialorder %v249, 8.507059e+37
  %v251 = vand.u32 %v239, 2147483648
  %v252 = vor.u32 1.1754944e-38, %v251
  %v253 = vsel %vm250, %v252, %v248
  %v254 = vmul.f32 %v194, %v253
  %256 = vrot.lane.b32.xlu0 %v254, 116
  %v257 = vpop.permute.xlu0 %256
  %s259 = scalar_lea.vmem %s4, 4
  %260 = vst.msk [vmem:[%s259] sm:$0x3] %vm215, %v257
  %v261 = vsub.f32 %v74, %v49
  %262 = vst.msk [vmem:[%s5] sm:$0x3] %vm215, %v261
  %263 = vrot.lane.b32.xlu0 %v210, 108
  %v264 = vpop.permute.xlu0 %263
  %s266 = scalar_lea.vmem %s4, 6
  %267 = vst.msk [vmem:[%s266] sm:$0x3] %vm215, %v264
  %268 = vrot.lane.b32.xlu0 %v232, 104
  %v269 = vpop.permute.xlu0 %268
  %s271 = scalar_lea.vmem %s4, 8
  %272 = vst.msk [vmem:[%s271] sm:$0x3] %vm215, %v269
  %273 = vrot.lane.b32.xlu0 %v254, 100
  %v274 = vpop.permute.xlu0 %273
  %s276 = scalar_lea.vmem %s4, 10
  %277 = vst.msk [vmem:[%s276] sm:$0x3] %vm215, %v274
  %279 = vrot.lane.b32.xlu0 %v261, 112
  %v280 = vpop.permute.xlu0 %279
  %s282 = scalar_lea.vmem %s5, 2
  %283 = vst.msk [vmem:[%s282] sm:$0x3] %vm215, %v280
  %284 = vrot.lane.b32.xlu0 %v210, 92
  %v285 = vpop.permute.xlu0 %284
  %s287 = scalar_lea.vmem %s4, 12
  %288 = vst.msk [vmem:[%s287] sm:$0x3] %vm215, %v285
  %289 = vrot.lane.b32.xlu0 %v232, 88
  %v290 = vpop.permute.xlu0 %289
  %s292 = scalar_lea.vmem %s4, 14
  %293 = vst.msk [vmem:[%s292] sm:$0x3] %vm215, %v290
  %294 = vrot.lane.b32.xlu0 %v254, 84
  %v295 = vpop.permute.xlu0 %294
  %s297 = scalar_lea.vmem %s4, 16
  %298 = vst.msk [vmem:[%s297] sm:$0x3] %vm215, %v295
  %299 = vrot.lane.b32.xlu0 %v261, 96
  %v300 = vpop.permute.xlu0 %299
  %s302 = scalar_lea.vmem %s5, 4
  %303 = vst.msk [vmem:[%s302] sm:$0x3] %vm215, %v300
  %304 = vrot.lane.b32.xlu0 %v210, 76
  %v305 = vpop.permute.xlu0 %304
  %s307 = scalar_lea.vmem %s4, 18
  %308 = vst.msk [vmem:[%s307] sm:$0x3] %vm215, %v305
  %309 = vrot.lane.b32.xlu0 %v232, 72
  %v310 = vpop.permute.xlu0 %309
  %s312 = scalar_lea.vmem %s4, 20
  %313 = vst.msk [vmem:[%s312] sm:$0x3] %vm215, %v310
  %314 = vrot.lane.b32.xlu0 %v254, 68
  %v315 = vpop.permute.xlu0 %314
  %s317 = scalar_lea.vmem %s4, 22
  %318 = vst.msk [vmem:[%s317] sm:$0x3] %vm215, %v315
  %319 = vrot.lane.b32.xlu0 %v261, 80
  %v320 = vpop.permute.xlu0 %319
  %s322 = scalar_lea.vmem %s5, 6
  %323 = vst.msk [vmem:[%s322] sm:$0x3] %vm215, %v320
  // Predicated region
  $region18: #{lighting_res_blocks_forward.3} parent=0 // pred_check
    _
  $region19: #{lighting_res_blocks_forward.3} parent=0 // pred_check_branch
    %325 = sbr.rel (0) target = $region21
  $region20: #{lighting_res_blocks_forward.3} parent=0 // pred_region
    _
  $region21: #{lighting_res_blocks_forward.3} parent=0 // pred_fallthru
    _
  // Predicated region
  $region22: #{lighting_res_blocks_forward.3} parent=0 // pred_check
    _
  $region23: #{lighting_res_blocks_forward.3} parent=0 // pred_check_branch
    %327 = sbr.rel (0) target = $region25
  $region24: #{lighting_res_blocks_forward.3} parent=0 // pred_region
    _
  $region25: #{lighting_res_blocks_forward.3} parent=0 // pred_fallthru
    _
  // Predicated region
  $region26: #{lighting_res_blocks_forward.3} parent=0 // pred_check
    _
  $region27: #{lighting_res_blocks_forward.3} parent=0 // pred_check_branch
    %329 = sbr.rel (0) target = $region29
  $region28: #{lighting_res_blocks_forward.3} parent=0 // pred_region
    _
  $region29: #{lighting_res_blocks_forward.3} parent=0 // pred_fallthru
    _
  // Predicated region
  $region30: #{lighting_res_blocks_forward.3} parent=0 // pred_check
    _
  $region31: #{lighting_res_blocks_forward.3} parent=0 // pred_check_branch
    %331 = sbr.rel (0) target = $region33
  $region32: #{lighting_res_blocks_forward.3} parent=0 // pred_region
    _
  $region33: #{lighting_res_blocks_forward.3} parent=0 // pred_fallthru
    _

// kernel: lighting_res_blocks_forward.4
$region0: #{lighting_res_blocks_forward.4}
  #allocation0 [shape = 'u32[]', space=smem, size = 0x4, offset = 0x4, fixed_abs, tag = 'smem constant byte address 0x4 - core index']
  #allocation1 [shape = 'u32[72,128]{1,0:T(1,128)}', space=vmem, size = 0x9000, scoped, tag = 'internal scratch']
  #allocation2 [shape = 'bf16[36,384]{1,0:T(8,128)(2,1)}', space=vmem, size = 0x7800, scoped, tag = 'scratch operand']
  %s0 = inlined_call_operand.vmem [shape: f32[2,4,384], index: 0, kind: input, shape index: {}]
  %s1 = inlined_call_operand.vmem [shape: f32[2,1,384], index: 1, kind: input, shape index: {}]
  %s2 = inlined_call_operand.vmem [shape: f32[1,384], index: 2, kind: input, shape index: {}]
  %s3 = inlined_call_operand.vmem [shape: f32[4,384], index: 3, kind: input, shape index: {}]
  %s4 = inlined_call_operand.vmem [shape: bf16[4,36], index: 4, kind: input, shape index: {}]
  %s5 = inlined_call_operand.vmem [shape: f32[4,1], index: 5, kind: input, shape index: {}]
  %s6 = inlined_call_operand.vmem [shape: bf16[12,36], index: 6, kind: input, shape index: {}]
  %s7 = inlined_call_operand.vmem [shape: f32[12,1], index: 7, kind: input, shape index: {}]
  %s8 = inlined_call_operand.vmem [shape: f32[12,1], index: 8, kind: input, shape index: {}]
  %s9 = inlined_call_operand.vmem [shape: f32[12,1], index: 9, kind: input, shape index: {}]
  %s10 = inlined_call_operand.vmem [shape: f32[2,12,1], index: 10, kind: input, shape index: {}]
  %s11 = inlined_call_operand.vmem [shape: f32[2,4,1], index: 11, kind: input, shape index: {}]
  %s12 = inlined_call_operand.vmem [shape: bf16[4,36], index: 12, kind: input, shape index: {}]
  %s13 = inlined_call_operand.vmem [shape: f32[4,1], index: 13, kind: input, shape index: {}]
  %s14 = inlined_call_operand.vmem [shape: bf16[12,36], index: 14, kind: input, shape index: {}]
  %s15 = inlined_call_operand.vmem [shape: f32[12,1], index: 15, kind: input, shape index: {}]
  %s16 = inlined_call_operand.vmem [shape: f32[12,1], index: 16, kind: input, shape index: {}]
  %s17 = inlined_call_operand.vmem [shape: f32[12,1], index: 17, kind: input, shape index: {}]
  %s18 = inlined_call_operand.vmem [shape: f32[2,12,1], index: 18, kind: input, shape index: {}]
  %s19 = inlined_call_operand.vmem [shape: f32[2,4,1], index: 19, kind: input, shape index: {}]
  %s20 = inlined_call_operand.vmem [shape: f32[4,1], index: 20, kind: input, shape index: {}]
  %s21 = inlined_call_operand.vmem [shape: f32[4,1], index: 21, kind: input, shape index: {}]
  %s22 = inlined_call_operand.vmem [shape: f32[2,4,384], index: 22, kind: output, shape index: {}]
  %s23 = sld [smem:[#allocation0]]
  $region121: #{lighting_res_blocks_forward.4} parent=0
    _
  %s25 = ssub.s32 1, %s23
  %s26 = scalar_select 0, %s25, %s23
  loop: start=0, step=1, limit=4
  $region2: #{lighting_res_blocks_forward.4} parent=0 // loop_pre_header
    _
  $region3: #{lighting_res_blocks_forward.4} parent=0 // loop_header
    %s28 = sphi 0, %s32
    %p29 = scmp.ge.s32.totalorder %s28, 4
    %s38 = sphi 0, %s40
    %s41 = sphi 0, %s38
    %s42 = sphi 0, %s41
    %s58 = sphi 0, %s42
    %s64 = sphi 0, %s66
    %s67 = sphi 0, %s64
    %s68 = sphi 0, %s67
    %s84 = sphi 0, %s68
    %s88 = sphi 0, %s88
    %s90 = sphi 0, %s88
    %s91 = sphi 0, %s90
    %s105 = sphi 0, %s91
    %s109 = sphi 0, %s109
    %s111 = sphi 0, %s109
    %s112 = sphi 0, %s111
    %s126 = sphi 0, %s112
    %s130 = sphi 0, %s130
    %s132 = sphi 0, %s130
    %s133 = sphi 0, %s132
    %s147 = sphi 0, %s133
    %s151 = sphi 0, %s151
    %s153 = sphi 0, %s151
    %s154 = sphi 0, %s153
    %s168 = sphi 0, %s154
    %s172 = sphi 0, %s172
    %s174 = sphi 0, %s172
    %s175 = sphi 0, %s174
    %s189 = sphi 0, %s175
    %s193 = sphi 0, %s193
    %s195 = sphi 0, %s193
    %s196 = sphi 0, %s195
    %s210 = sphi 0, %s196
    %s214 = sphi 0, %s214
    %s216 = sphi 0, %s214
    %s217 = sphi 0, %s216
    %s231 = sphi 0, %s217
    %s235 = sphi 0, %s235
    %s237 = sphi 0, %s235
    %s238 = sphi 0, %s237
    %s252 = sphi 0, %s238
    %s258 = sphi 0, %s260
    %s261 = sphi 0, %s258
    %s262 = sphi 0, %s261
    %s278 = sphi 0, %s262
    %s284 = sphi 0, %s286
    %s287 = sphi 0, %s284
    %s288 = sphi 0, %s287
    %s304 = sphi 0, %s288
    %s308 = sphi 0, %s308
    %s310 = sphi 0, %s308
    %s311 = sphi 0, %s310
    %s325 = sphi 0, %s311
    %s329 = sphi 0, %s329
    %s331 = sphi 0, %s329
    %s332 = sphi 0, %s331
    %s346 = sphi 0, %s332
    %s350 = sphi 0, %s350
    %s352 = sphi 0, %s350
    %s353 = sphi 0, %s352
    %s367 = sphi 0, %s353
    %s371 = sphi 0, %s371
    %s373 = sphi 0, %s371
    %s374 = sphi 0, %s373
    %s388 = sphi 0, %s374
    %s392 = sphi 0, %s392
    %s394 = sphi 0, %s392
    %s395 = sphi 0, %s394
    %s409 = sphi 0, %s395
    %s413 = sphi 0, %s413
    %s415 = sphi 0, %s413
    %s416 = sphi 0, %s415
    %s430 = sphi 0, %s416
    %s436 = sphi 0, %s438
    %s439 = sphi 0, %s436
    %s440 = sphi 0, %s439
    %s456 = sphi 0, %s440
    %s462 = sphi 0, %s464
    %s465 = sphi 0, %s462
    %s466 = sphi 0, %s465
    %s482 = sphi 0, %s466
    %s486 = sphi 0, %s486
    %s488 = sphi 0, %s486
    %s489 = sphi 0, %s488
    %s503 = sphi 0, %s489
    %s507 = sphi 0, %s507
    %s509 = sphi 0, %s507
    %s510 = sphi 0, %s509
    %s524 = sphi 0, %s510
    %s530 = sphi 0, %s532
    %s533 = sphi 0, %s530
    %s534 = sphi 0, %s533
    %s550 = sphi 0, %s534
  $region4: #{lighting_res_blocks_forward.4} parent=0 // loop_header_branch
    %31 = sbr.rel (%p29) target = $region8
  $region5: #{lighting_res_blocks_forward.4} parent=0 // loop_body
    %s33 = ssub.s32 %s28, 1
    %s34 = ssub.s32 %s28, 2
    %s35 = sadd.s32 %s28, 1
    %s36 = ssub.s32 %s28, %s35
    %p37 = scmp.eq.s32.totalorder %s36, 0
    %s39 = sadd.s32 %s38, 1
    %s40 = scalar_select %p37, %s38, %s39
    %p43 = pneg %p37
    %p44 = scmp.eq.s32.totalorder %s28, 1
    %p45 = por %p43, %p44
    %p46 = scmp.ne.s32.totalorder %s38, %s41
    %p47 = scmp.eq.s32.totalorder %s28, 0
    %p48 = por %p46, %p47
    %p49 = scmp.ne.s32.totalorder %s38, %s41
    %p50 = scmp.eq.s32.totalorder %s33, 1
    %p51 = por %p49, %p50
    %p52 = scmp.ne.s32.totalorder %s41, %s42
    %p53 = scmp.eq.s32.totalorder %s33, 0
    %p54 = por %p52, %p53
    %p55 = scmp.ne.s32.totalorder %s41, %s42
    %p56 = scmp.eq.s32.totalorder %s34, 1
    %p57 = por %p55, %p56
    %p59 = scmp.ne.s32.totalorder %s42, %s58
    %p60 = scmp.eq.s32.totalorder %s34, 0
    %p61 = por %p59, %p60
    %s62 = ssub.s32 %s28, %s35
    %p63 = scmp.eq.s32.totalorder %s62, 0
    %s65 = sadd.s32 %s64, 1
    %s66 = scalar_select %p63, %s64, %s65
    %p69 = pneg %p63
    %p70 = scmp.eq.s32.totalorder %s28, 1
    %p71 = por %p69, %p70
    %p72 = scmp.ne.s32.totalorder %s64, %s67
    %p73 = scmp.eq.s32.totalorder %s28, 0
    %p74 = por %p72, %p73
    %p75 = scmp.ne.s32.totalorder %s64, %s67
    %p76 = scmp.eq.s32.totalorder %s33, 1
    %p77 = por %p75, %p76
    %p78 = scmp.ne.s32.totalorder %s67, %s68
    %p79 = scmp.eq.s32.totalorder %s33, 0
    %p80 = por %p78, %p79
    %p81 = scmp.ne.s32.totalorder %s67, %s68
    %p82 = scmp.eq.s32.totalorder %s34, 1
    %p83 = por %p81, %p82
    %p85 = scmp.ne.s32.totalorder %s68, %s84
    %p86 = scmp.eq.s32.totalorder %s34, 0
    %p87 = por %p85, %p86
    %s89 = sadd.s32 %s88, 1
    %p92 = scmp.eq.s32.totalorder %s28, 1
    %p93 = scmp.ne.s32.totalorder %s88, %s90
    %p94 = scmp.eq.s32.totalorder %s28, 0
    %p95 = por %p93, %p94
    %p96 = scmp.ne.s32.totalorder %s88, %s90
    %p97 = scmp.eq.s32.totalorder %s33, 1
    %p98 = por %p96, %p97
    %p99 = scmp.ne.s32.totalorder %s90, %s91
    %p100 = scmp.eq.s32.totalorder %s33, 0
    %p101 = por %p99, %p100
    %p102 = scmp.ne.s32.totalorder %s90, %s91
    %p103 = scmp.eq.s32.totalorder %s34, 1
    %p104 = por %p102, %p103
    %p106 = scmp.ne.s32.totalorder %s91, %s105
    %p107 = scmp.eq.s32.totalorder %s34, 0
    %p108 = por %p106, %p107
    %s110 = sadd.s32 %s109, 1
    %p113 = scmp.eq.s32.totalorder %s28, 1
    %p114 = scmp.ne.s32.totalorder %s109, %s111
    %p115 = scmp.eq.s32.totalorder %s28, 0
    %p116 = por %p114, %p115
    %p117 = scmp.ne.s32.totalorder %s109, %s111
    %p118 = scmp.eq.s32.totalorder %s33, 1
    %p119 = por %p117, %p118
    %p120 = scmp.ne.s32.totalorder %s111, %s112
    %p121 = scmp.eq.s32.totalorder %s33, 0
    %p122 = por %p120, %p121
    %p123 = scmp.ne.s32.totalorder %s111, %s112
    %p124 = scmp.eq.s32.totalorder %s34, 1
    %p125 = por %p123, %p124
    %p127 = scmp.ne.s32.totalorder %s112, %s126
    %p128 = scmp.eq.s32.totalorder %s34, 0
    %p129 = por %p127, %p128
    %s131 = sadd.s32 %s130, 1
    %p134 = scmp.eq.s32.totalorder %s28, 1
    %p135 = scmp.ne.s32.totalorder %s130, %s132
    %p136 = scmp.eq.s32.totalorder %s28, 0
    %p137 = por %p135, %p136
    %p138 = scmp.ne.s32.totalorder %s130, %s132
    %p139 = scmp.eq.s32.totalorder %s33, 1
    %p140 = por %p138, %p139
    %p141 = scmp.ne.s32.totalorder %s132, %s133
    %p142 = scmp.eq.s32.totalorder %s33, 0
    %p143 = por %p141, %p142
    %p144 = scmp.ne.s32.totalorder %s132, %s133
    %p145 = scmp.eq.s32.totalorder %s34, 1
    %p146 = por %p144, %p145
    %p148 = scmp.ne.s32.totalorder %s133, %s147
    %p149 = scmp.eq.s32.totalorder %s34, 0
    %p150 = por %p148, %p149
    %s152 = sadd.s32 %s151, 1
    %p155 = scmp.eq.s32.totalorder %s28, 1
    %p156 = scmp.ne.s32.totalorder %s151, %s153
    %p157 = scmp.eq.s32.totalorder %s28, 0
    %p158 = por %p156, %p157
    %p159 = scmp.ne.s32.totalorder %s151, %s153
    %p160 = scmp.eq.s32.totalorder %s33, 1
    %p161 = por %p159, %p160
    %p162 = scmp.ne.s32.totalorder %s153, %s154
    %p163 = scmp.eq.s32.totalorder %s33, 0
    %p164 = por %p162, %p163
    %p165 = scmp.ne.s32.totalorder %s153, %s154
    %p166 = scmp.eq.s32.totalorder %s34, 1
    %p167 = por %p165, %p166
    %p169 = scmp.ne.s32.totalorder %s154, %s168
    %p170 = scmp.eq.s32.totalorder %s34, 0
    %p171 = por %p169, %p170
    %s173 = sadd.s32 %s172, 1
    %p176 = scmp.eq.s32.totalorder %s28, 1
    %p177 = scmp.ne.s32.totalorder %s172, %s174
    %p178 = scmp.eq.s32.totalorder %s28, 0
    %p179 = por %p177, %p178
    %p180 = scmp.ne.s32.totalorder %s172, %s174
    %p181 = scmp.eq.s32.totalorder %s33, 1
    %p182 = por %p180, %p181
    %p183 = scmp.ne.s32.totalorder %s174, %s175
    %p184 = scmp.eq.s32.totalorder %s33, 0
    %p185 = por %p183, %p184
    %p186 = scmp.ne.s32.totalorder %s174, %s175
    %p187 = scmp.eq.s32.totalorder %s34, 1
    %p188 = por %p186, %p187
    %p190 = scmp.ne.s32.totalorder %s175, %s189
    %p191 = scmp.eq.s32.totalorder %s34, 0
    %p192 = por %p190, %p191
    %s194 = sadd.s32 %s193, 1
    %p197 = scmp.eq.s32.totalorder %s28, 1
    %p198 = scmp.ne.s32.totalorder %s193, %s195
    %p199 = scmp.eq.s32.totalorder %s28, 0
    %p200 = por %p198, %p199
    %p201 = scmp.ne.s32.totalorder %s193, %s195
    %p202 = scmp.eq.s32.totalorder %s33, 1
    %p203 = por %p201, %p202
    %p204 = scmp.ne.s32.totalorder %s195, %s196
    %p205 = scmp.eq.s32.totalorder %s33, 0
    %p206 = por %p204, %p205
    %p207 = scmp.ne.s32.totalorder %s195, %s196
    %p208 = scmp.eq.s32.totalorder %s34, 1
    %p209 = por %p207, %p208
    %p211 = scmp.ne.s32.totalorder %s196, %s210
    %p212 = scmp.eq.s32.totalorder %s34, 0
    %p213 = por %p211, %p212
    %s215 = sadd.s32 %s214, 1
    %p218 = scmp.eq.s32.totalorder %s28, 1
    %p219 = scmp.ne.s32.totalorder %s214, %s216
    %p220 = scmp.eq.s32.totalorder %s28, 0
    %p221 = por %p219, %p220
    %p222 = scmp.ne.s32.totalorder %s214, %s216
    %p223 = scmp.eq.s32.totalorder %s33, 1
    %p224 = por %p222, %p223
    %p225 = scmp.ne.s32.totalorder %s216, %s217
    %p226 = scmp.eq.s32.totalorder %s33, 0
    %p227 = por %p225, %p226
    %p228 = scmp.ne.s32.totalorder %s216, %s217
    %p229 = scmp.eq.s32.totalorder %s34, 1
    %p230 = por %p228, %p229
    %p232 = scmp.ne.s32.totalorder %s217, %s231
    %p233 = scmp.eq.s32.totalorder %s34, 0
    %p234 = por %p232, %p233
    %s236 = sadd.s32 %s235, 1
    %p239 = scmp.eq.s32.totalorder %s28, 1
    %p240 = scmp.ne.s32.totalorder %s235, %s237
    %p241 = scmp.eq.s32.totalorder %s28, 0
    %p242 = por %p240, %p241
    %p243 = scmp.ne.s32.totalorder %s235, %s237
    %p244 = scmp.eq.s32.totalorder %s33, 1
    %p245 = por %p243, %p244
    %p246 = scmp.ne.s32.totalorder %s237, %s238
    %p247 = scmp.eq.s32.totalorder %s33, 0
    %p248 = por %p246, %p247
    %p249 = scmp.ne.s32.totalorder %s237, %s238
    %p250 = scmp.eq.s32.totalorder %s34, 1
    %p251 = por %p249, %p250
    %p253 = scmp.ne.s32.totalorder %s238, %s252
    %p254 = scmp.eq.s32.totalorder %s34, 0
    %p255 = por %p253, %p254
    %s256 = ssub.s32 %s28, %s35
    %p257 = scmp.eq.s32.totalorder %s256, 0
    %s259 = sadd.s32 %s258, 1
    %s260 = scalar_select %p257, %s258, %s259
    %p263 = pneg %p257
    %p264 = scmp.eq.s32.totalorder %s28, 1
    %p265 = por %p263, %p264
    %p266 = scmp.ne.s32.totalorder %s258, %s261
    %p267 = scmp.eq.s32.totalorder %s28, 0
    %p268 = por %p266, %p267
    %p269 = scmp.ne.s32.totalorder %s258, %s261
    %p270 = scmp.eq.s32.totalorder %s33, 1
    %p271 = por %p269, %p270
    %p272 = scmp.ne.s32.totalorder %s261, %s262
    %p273 = scmp.eq.s32.totalorder %s33, 0
    %p274 = por %p272, %p273
    %p275 = scmp.ne.s32.totalorder %s261, %s262
    %p276 = scmp.eq.s32.totalorder %s34, 1
    %p277 = por %p275, %p276
    %p279 = scmp.ne.s32.totalorder %s262, %s278
    %p280 = scmp.eq.s32.totalorder %s34, 0
    %p281 = por %p279, %p280
    %s282 = ssub.s32 %s28, %s35
    %p283 = scmp.eq.s32.totalorder %s282, 0
    %s285 = sadd.s32 %s284, 1
    %s286 = scalar_select %p283, %s284, %s285
    %p289 = pneg %p283
    %p290 = scmp.eq.s32.totalorder %s28, 1
    %p291 = por %p289, %p290
    %p292 = scmp.ne.s32.totalorder %s284, %s287
    %p293 = scmp.eq.s32.totalorder %s28, 0
    %p294 = por %p292, %p293
    %p295 = scmp.ne.s32.totalorder %s284, %s287
    %p296 = scmp.eq.s32.totalorder %s33, 1
    %p297 = por %p295, %p296
    %p298 = scmp.ne.s32.totalorder %s287, %s288
    %p299 = scmp.eq.s32.totalorder %s33, 0
    %p300 = por %p298, %p299
    %p301 = scmp.ne.s32.totalorder %s287, %s288
    %p302 = scmp.eq.s32.totalorder %s34, 1
    %p303 = por %p301, %p302
    %p305 = scmp.ne.s32.totalorder %s288, %s304
    %p306 = scmp.eq.s32.totalorder %s34, 0
    %p307 = por %p305, %p306
    %s309 = sadd.s32 %s308, 1
    %p312 = scmp.eq.s32.totalorder %s28, 1
    %p313 = scmp.ne.s32.totalorder %s308, %s310
    %p314 = scmp.eq.s32.totalorder %s28, 0
    %p315 = por %p313, %p314
    %p316 = scmp.ne.s32.totalorder %s308, %s310
    %p317 = scmp.eq.s32.totalorder %s33, 1
    %p318 = por %p316, %p317
    %p319 = scmp.ne.s32.totalorder %s310, %s311
    %p320 = scmp.eq.s32.totalorder %s33, 0
    %p321 = por %p319, %p320
    %p322 = scmp.ne.s32.totalorder %s310, %s311
    %p323 = scmp.eq.s32.totalorder %s34, 1
    %p324 = por %p322, %p323
    %p326 = scmp.ne.s32.totalorder %s311, %s325
    %p327 = scmp.eq.s32.totalorder %s34, 0
    %p328 = por %p326, %p327
    %s330 = sadd.s32 %s329, 1
    %p333 = scmp.eq.s32.totalorder %s28, 1
    %p334 = scmp.ne.s32.totalorder %s329, %s331
    %p335 = scmp.eq.s32.totalorder %s28, 0
    %p336 = por %p334, %p335
    %p337 = scmp.ne.s32.totalorder %s329, %s331
    %p338 = scmp.eq.s32.totalorder %s33, 1
    %p339 = por %p337, %p338
    %p340 = scmp.ne.s32.totalorder %s331, %s332
    %p341 = scmp.eq.s32.totalorder %s33, 0
    %p342 = por %p340, %p341
    %p343 = scmp.ne.s32.totalorder %s331, %s332
    %p344 = scmp.eq.s32.totalorder %s34, 1
    %p345 = por %p343, %p344
    %p347 = scmp.ne.s32.totalorder %s332, %s346
    %p348 = scmp.eq.s32.totalorder %s34, 0
    %p349 = por %p347, %p348
    %s351 = sadd.s32 %s350, 1
    %p354 = scmp.eq.s32.totalorder %s28, 1
    %p355 = scmp.ne.s32.totalorder %s350, %s352
    %p356 = scmp.eq.s32.totalorder %s28, 0
    %p357 = por %p355, %p356
    %p358 = scmp.ne.s32.totalorder %s350, %s352
    %p359 = scmp.eq.s32.totalorder %s33, 1
    %p360 = por %p358, %p359
    %p361 = scmp.ne.s32.totalorder %s352, %s353
    %p362 = scmp.eq.s32.totalorder %s33, 0
    %p363 = por %p361, %p362
    %p364 = scmp.ne.s32.totalorder %s352, %s353
    %p365 = scmp.eq.s32.totalorder %s34, 1
    %p366 = por %p364, %p365
    %p368 = scmp.ne.s32.totalorder %s353, %s367
    %p369 = scmp.eq.s32.totalorder %s34, 0
    %p370 = por %p368, %p369
    %s372 = sadd.s32 %s371, 1
    %p375 = scmp.eq.s32.totalorder %s28, 1
    %p376 = scmp.ne.s32.totalorder %s371, %s373
    %p377 = scmp.eq.s32.totalorder %s28, 0
    %p378 = por %p376, %p377
    %p379 = scmp.ne.s32.totalorder %s371, %s373
    %p380 = scmp.eq.s32.totalorder %s33, 1
    %p381 = por %p379, %p380
    %p382 = scmp.ne.s32.totalorder %s373, %s374
    %p383 = scmp.eq.s32.totalorder %s33, 0
    %p384 = por %p382, %p383
    %p385 = scmp.ne.s32.totalorder %s373, %s374
    %p386 = scmp.eq.s32.totalorder %s34, 1
    %p387 = por %p385, %p386
    %p389 = scmp.ne.s32.totalorder %s374, %s388
    %p390 = scmp.eq.s32.totalorder %s34, 0
    %p391 = por %p389, %p390
    %s393 = sadd.s32 %s392, 1
    %p396 = scmp.eq.s32.totalorder %s28, 1
    %p397 = scmp.ne.s32.totalorder %s392, %s394
    %p398 = scmp.eq.s32.totalorder %s28, 0
    %p399 = por %p397, %p398
    %p400 = scmp.ne.s32.totalorder %s392, %s394
    %p401 = scmp.eq.s32.totalorder %s33, 1
    %p402 = por %p400, %p401
    %p403 = scmp.ne.s32.totalorder %s394, %s395
    %p404 = scmp.eq.s32.totalorder %s33, 0
    %p405 = por %p403, %p404
    %p406 = scmp.ne.s32.totalorder %s394, %s395
    %p407 = scmp.eq.s32.totalorder %s34, 1
    %p408 = por %p406, %p407
    %p410 = scmp.ne.s32.totalorder %s395, %s409
    %p411 = scmp.eq.s32.totalorder %s34, 0
    %p412 = por %p410, %p411
    %s414 = sadd.s32 %s413, 1
    %p417 = scmp.eq.s32.totalorder %s28, 1
    %p418 = scmp.ne.s32.totalorder %s413, %s415
    %p419 = scmp.eq.s32.totalorder %s28, 0
    %p420 = por %p418, %p419
    %p421 = scmp.ne.s32.totalorder %s413, %s415
    %p422 = scmp.eq.s32.totalorder %s33, 1
    %p423 = por %p421, %p422
    %p424 = scmp.ne.s32.totalorder %s415, %s416
    %p425 = scmp.eq.s32.totalorder %s33, 0
    %p426 = por %p424, %p425
    %p427 = scmp.ne.s32.totalorder %s415, %s416
    %p428 = scmp.eq.s32.totalorder %s34, 1
    %p429 = por %p427, %p428
    %p431 = scmp.ne.s32.totalorder %s416, %s430
    %p432 = scmp.eq.s32.totalorder %s34, 0
    %p433 = por %p431, %p432
    %s434 = ssub.s32 %s28, %s35
    %p435 = scmp.eq.s32.totalorder %s434, 0
    %s437 = sadd.s32 %s436, 1
    %s438 = scalar_select %p435, %s436, %s437
    %p441 = pneg %p435
    %p442 = scmp.eq.s32.totalorder %s28, 1
    %p443 = por %p441, %p442
    %p444 = scmp.ne.s32.totalorder %s436, %s439
    %p445 = scmp.eq.s32.totalorder %s28, 0
    %p446 = por %p444, %p445
    %p447 = scmp.ne.s32.totalorder %s436, %s439
    %p448 = scmp.eq.s32.totalorder %s33, 1
    %p449 = por %p447, %p448
    %p450 = scmp.ne.s32.totalorder %s439, %s440
    %p451 = scmp.eq.s32.totalorder %s33, 0
    %p452 = por %p450, %p451
    %p453 = scmp.ne.s32.totalorder %s439, %s440
    %p454 = scmp.eq.s32.totalorder %s34, 1
    %p455 = por %p453, %p454
    %p457 = scmp.ne.s32.totalorder %s440, %s456
    %p458 = scmp.eq.s32.totalorder %s34, 0
    %p459 = por %p457, %p458
    %s460 = ssub.s32 %s28, %s35
    %p461 = scmp.eq.s32.totalorder %s460, 0
    %s463 = sadd.s32 %s462, 1
    %s464 = scalar_select %p461, %s462, %s463
    %p467 = pneg %p461
    %p468 = scmp.eq.s32.totalorder %s28, 1
    %p469 = por %p467, %p468
    %p470 = scmp.ne.s32.totalorder %s462, %s465
    %p471 = scmp.eq.s32.totalorder %s28, 0
    %p472 = por %p470, %p471
    %p473 = scmp.ne.s32.totalorder %s462, %s465
    %p474 = scmp.eq.s32.totalorder %s33, 1
    %p475 = por %p473, %p474
    %p476 = scmp.ne.s32.totalorder %s465, %s466
    %p477 = scmp.eq.s32.totalorder %s33, 0
    %p478 = por %p476, %p477
    %p479 = scmp.ne.s32.totalorder %s465, %s466
    %p480 = scmp.eq.s32.totalorder %s34, 1
    %p481 = por %p479, %p480
    %p483 = scmp.ne.s32.totalorder %s466, %s482
    %p484 = scmp.eq.s32.totalorder %s34, 0
    %p485 = por %p483, %p484
    %s487 = sadd.s32 %s486, 1
    %p490 = scmp.eq.s32.totalorder %s28, 1
    %p491 = scmp.ne.s32.totalorder %s486, %s488
    %p492 = scmp.eq.s32.totalorder %s28, 0
    %p493 = por %p491, %p492
    %p494 = scmp.ne.s32.totalorder %s486, %s488
    %p495 = scmp.eq.s32.totalorder %s33, 1
    %p496 = por %p494, %p495
    %p497 = scmp.ne.s32.totalorder %s488, %s489
    %p498 = scmp.eq.s32.totalorder %s33, 0
    %p499 = por %p497, %p498
    %p500 = scmp.ne.s32.totalorder %s488, %s489
    %p501 = scmp.eq.s32.totalorder %s34, 1
    %p502 = por %p500, %p501
    %p504 = scmp.ne.s32.totalorder %s489, %s503
    %p505 = scmp.eq.s32.totalorder %s34, 0
    %p506 = por %p504, %p505
    %s508 = sadd.s32 %s507, 1
    %p511 = scmp.eq.s32.totalorder %s28, 1
    %p512 = scmp.ne.s32.totalorder %s507, %s509
    %p513 = scmp.eq.s32.totalorder %s28, 0
    %p514 = por %p512, %p513
    %p515 = scmp.ne.s32.totalorder %s507, %s509
    %p516 = scmp.eq.s32.totalorder %s33, 1
    %p517 = por %p515, %p516
    %p518 = scmp.ne.s32.totalorder %s509, %s510
    %p519 = scmp.eq.s32.totalorder %s33, 0
    %p520 = por %p518, %p519
    %p521 = scmp.ne.s32.totalorder %s509, %s510
    %p522 = scmp.eq.s32.totalorder %s34, 1
    %p523 = por %p521, %p522
    %p525 = scmp.ne.s32.totalorder %s510, %s524
    %p526 = scmp.eq.s32.totalorder %s34, 0
    %p527 = por %p525, %p526
    %s528 = ssub.s32 %s28, %s35
    %p529 = scmp.eq.s32.totalorder %s528, 0
    %s531 = sadd.s32 %s530, 1
    %s532 = scalar_select %p529, %s530, %s531
    %p535 = pneg %p529
    %p536 = scmp.eq.s32.totalorder %s28, 1
    %p537 = por %p535, %p536
    %p538 = scmp.ne.s32.totalorder %s530, %s533
    %p539 = scmp.eq.s32.totalorder %s28, 0
    %p540 = por %p538, %p539
    %p541 = scmp.ne.s32.totalorder %s530, %s533
    %p542 = scmp.eq.s32.totalorder %s33, 1
    %p543 = por %p541, %p542
    %p544 = scmp.ne.s32.totalorder %s533, %s534
    %p545 = scmp.eq.s32.totalorder %s33, 0
    %p546 = por %p544, %p545
    %p547 = scmp.ne.s32.totalorder %s533, %s534
    %p548 = scmp.eq.s32.totalorder %s34, 1
    %p549 = por %p547, %p548
    %p551 = scmp.ne.s32.totalorder %s534, %s550
    %p552 = scmp.eq.s32.totalorder %s34, 0
    %p553 = por %p551, %p552
    %p554 = scmp.le.s32.totalorder 1, %s28
    %p555 = scmp.lt.s32.totalorder %s28, 3
    %p556 = pnand %p554, %p555
    %p557 = pneg %p556
    // Predicated region
    $region9: #{lighting_res_blocks_forward.4} parent=5 // pred_check
      _
    $region10: #{lighting_res_blocks_forward.4} parent=5 // pred_check_branch
      %559 = sbr.rel (%p556) target = $region12
    $region11: #{lighting_res_blocks_forward.4} parent=5 // pred_region
      %s560 = ssub.s32 %s28, 1
      // Predicated region
      $region13: #{lighting_res_blocks_forward.4} parent=11 // pred_check
        %p561 = pneg %p101
      $region14: #{lighting_res_blocks_forward.4} parent=11 // pred_check_branch
        %563 = sbr.rel (%p561) target = $region16
      $region15: #{lighting_res_blocks_forward.4} parent=11 // pred_region
        _
      $region16: #{lighting_res_blocks_forward.4} parent=11 // pred_fallthru
        _
      // Predicated region
      $region17: #{lighting_res_blocks_forward.4} parent=11 // pred_check
        %p564 = pneg %p122
      $region18: #{lighting_res_blocks_forward.4} parent=11 // pred_check_branch
        %566 = sbr.rel (%p564) target = $region20
      $region19: #{lighting_res_blocks_forward.4} parent=11 // pred_region
        _
      $region20: #{lighting_res_blocks_forward.4} parent=11 // pred_fallthru
        _
      // Predicated region
      $region21: #{lighting_res_blocks_forward.4} parent=11 // pred_check
        %p567 = pneg %p143
      $region22: #{lighting_res_blocks_forward.4} parent=11 // pred_check_branch
        %569 = sbr.rel (%p567) target = $region24
      $region23: #{lighting_res_blocks_forward.4} parent=11 // pred_region
        _
      $region24: #{lighting_res_blocks_forward.4} parent=11 // pred_fallthru
        _
      // Predicated region
      $region25: #{lighting_res_blocks_forward.4} parent=11 // pred_check
        %p570 = pneg %p164
      $region26: #{lighting_res_blocks_forward.4} parent=11 // pred_check_branch
        %572 = sbr.rel (%p570) target = $region28
      $region27: #{lighting_res_blocks_forward.4} parent=11 // pred_region
        _
      $region28: #{lighting_res_blocks_forward.4} parent=11 // pred_fallthru
        _
      // Predicated region
      $region29: #{lighting_res_blocks_forward.4} parent=11 // pred_check
        %p573 = pneg %p185
      $region30: #{lighting_res_blocks_forward.4} parent=11 // pred_check_branch
        %575 = sbr.rel (%p573) target = $region32
      $region31: #{lighting_res_blocks_forward.4} parent=11 // pred_region
        _
      $region32: #{lighting_res_blocks_forward.4} parent=11 // pred_fallthru
        _
      // Predicated region
      $region33: #{lighting_res_blocks_forward.4} parent=11 // pred_check
        %p576 = pneg %p206
      $region34: #{lighting_res_blocks_forward.4} parent=11 // pred_check_branch
        %578 = sbr.rel (%p576) target = $region36
      $region35: #{lighting_res_blocks_forward.4} parent=11 // pred_region
        _
      $region36: #{lighting_res_blocks_forward.4} parent=11 // pred_fallthru
        _
      // Predicated region
      $region37: #{lighting_res_blocks_forward.4} parent=11 // pred_check
        %p579 = pneg %p227
      $region38: #{lighting_res_blocks_forward.4} parent=11 // pred_check_branch
        %581 = sbr.rel (%p579) target = $region40
      $region39: #{lighting_res_blocks_forward.4} parent=11 // pred_region
        _
      $region40: #{lighting_res_blocks_forward.4} parent=11 // pred_fallthru
        _
      // Predicated region
      $region41: #{lighting_res_blocks_forward.4} parent=11 // pred_check
        %p582 = pneg %p248
      $region42: #{lighting_res_blocks_forward.4} parent=11 // pred_check_branch
        %584 = sbr.rel (%p582) target = $region44
      $region43: #{lighting_res_blocks_forward.4} parent=11 // pred_region
        _
      $region44: #{lighting_res_blocks_forward.4} parent=11 // pred_fallthru
        _
      // Predicated region
      $region45: #{lighting_res_blocks_forward.4} parent=11 // pred_check
        %p585 = pneg %p321
      $region46: #{lighting_res_blocks_forward.4} parent=11 // pred_check_branch
        %587 = sbr.rel (%p585) target = $region48
      $region47: #{lighting_res_blocks_forward.4} parent=11 // pred_region
        _
      $region48: #{lighting_res_blocks_forward.4} parent=11 // pred_fallthru
        _
      // Predicated region
      $region49: #{lighting_res_blocks_forward.4} parent=11 // pred_check
        %p588 = pneg %p342
      $region50: #{lighting_res_blocks_forward.4} parent=11 // pred_check_branch
        %590 = sbr.rel (%p588) target = $region52
      $region51: #{lighting_res_blocks_forward.4} parent=11 // pred_region
        _
      $region52: #{lighting_res_blocks_forward.4} parent=11 // pred_fallthru
        _
      // Predicated region
      $region53: #{lighting_res_blocks_forward.4} parent=11 // pred_check
        %p591 = pneg %p363
      $region54: #{lighting_res_blocks_forward.4} parent=11 // pred_check_branch
        %593 = sbr.rel (%p591) target = $region56
      $region55: #{lighting_res_blocks_forward.4} parent=11 // pred_region
        _
      $region56: #{lighting_res_blocks_forward.4} parent=11 // pred_fallthru
        _
      // Predicated region
      $region57: #{lighting_res_blocks_forward.4} parent=11 // pred_check
        %p594 = pneg %p384
      $region58: #{lighting_res_blocks_forward.4} parent=11 // pred_check_branch
        %596 = sbr.rel (%p594) target = $region60
      $region59: #{lighting_res_blocks_forward.4} parent=11 // pred_region
        _
      $region60: #{lighting_res_blocks_forward.4} parent=11 // pred_fallthru
        _
      // Predicated region
      $region61: #{lighting_res_blocks_forward.4} parent=11 // pred_check
        %p597 = pneg %p405
      $region62: #{lighting_res_blocks_forward.4} parent=11 // pred_check_branch
        %599 = sbr.rel (%p597) target = $region64
      $region63: #{lighting_res_blocks_forward.4} parent=11 // pred_region
        _
      $region64: #{lighting_res_blocks_forward.4} parent=11 // pred_fallthru
        _
      // Predicated region
      $region65: #{lighting_res_blocks_forward.4} parent=11 // pred_check
        %p600 = pneg %p426
      $region66: #{lighting_res_blocks_forward.4} parent=11 // pred_check_branch
        %602 = sbr.rel (%p600) target = $region68
      $region67: #{lighting_res_blocks_forward.4} parent=11 // pred_region
        _
      $region68: #{lighting_res_blocks_forward.4} parent=11 // pred_fallthru
        _
      // Predicated region
      $region69: #{lighting_res_blocks_forward.4} parent=11 // pred_check
        %p603 = pneg %p499
      $region70: #{lighting_res_blocks_forward.4} parent=11 // pred_check_branch
        %605 = sbr.rel (%p603) target = $region72
      $region71: #{lighting_res_blocks_forward.4} parent=11 // pred_region
        _
      $region72: #{lighting_res_blocks_forward.4} parent=11 // pred_fallthru
        _
      // Predicated region
      $region73: #{lighting_res_blocks_forward.4} parent=11 // pred_check
        %p606 = pneg %p520
      $region74: #{lighting_res_blocks_forward.4} parent=11 // pred_check_branch
        %608 = sbr.rel (%p606) target = $region76
      $region75: #{lighting_res_blocks_forward.4} parent=11 // pred_region
        _
      $region76: #{lighting_res_blocks_forward.4} parent=11 // pred_fallthru
        _
    $region12: #{lighting_res_blocks_forward.4} parent=5 // pred_fallthru
      _
    %p609 = scmp.lt.s32.totalorder %s28, 2
    // Predicated region
    $region77: #{lighting_res_blocks_forward.4} parent=5 // pred_check
      %p610 = pneg %p609
    $region78: #{lighting_res_blocks_forward.4} parent=5 // pred_check_branch
      %612 = sbr.rel (%p610) target = $region80
    $region79: #{lighting_res_blocks_forward.4} parent=5 // pred_region
      // Predicated region
      $region81: #{lighting_res_blocks_forward.4} parent=79 // pred_check
        %p613 = pneg %p48
      $region82: #{lighting_res_blocks_forward.4} parent=79 // pred_check_branch
        %615 = sbr.rel (%p613) target = $region84
      $region83: #{lighting_res_blocks_forward.4} parent=79 // pred_region
        %p616 = scmp.lt.s32.totalorder %s28, 1
        %s617 = scalar_select %p616, %s28, 1
        %s618 = smul.addr %s617, 3
        %s619 = smul.addr %s618, 4
        %s620 = scalar_lea.vmem %s0, %s619
      $region84: #{lighting_res_blocks_forward.4} parent=79 // pred_fallthru
        _
      // Predicated region
      $region85: #{lighting_res_blocks_forward.4} parent=79 // pred_check
        %p621 = pneg %p74
      $region86: #{lighting_res_blocks_forward.4} parent=79 // pred_check_branch
        %623 = sbr.rel (%p621) target = $region88
      $region87: #{lighting_res_blocks_forward.4} parent=79 // pred_region
        %p624 = scmp.lt.s32.totalorder %s28, 1
        %s625 = scalar_select %p624, %s28, 1
        %s626 = smul.addr %s625, 3
        %s627 = scalar_lea.vmem %s1, %s626
      $region88: #{lighting_res_blocks_forward.4} parent=79 // pred_fallthru
        _
      // Predicated region
      $region89: #{lighting_res_blocks_forward.4} parent=79 // pred_check
        %p628 = pneg %p268
      $region90: #{lighting_res_blocks_forward.4} parent=79 // pred_check_branch
        %630 = sbr.rel (%p628) target = $region92
      $region91: #{lighting_res_blocks_forward.4} parent=79 // pred_region
        %p631 = scmp.lt.s32.totalorder %s28, 1
        %s632 = scalar_select %p631, %s28, 1
        %s633 = smul.addr %s632, 2
        %s634 = smul.addr %s633, 8
        %s635 = scalar_lea.vmem %s10, %s634
      $region92: #{lighting_res_blocks_forward.4} parent=79 // pred_fallthru
        _
      // Predicated region
      $region93: #{lighting_res_blocks_forward.4} parent=79 // pred_check
        %p636 = pneg %p294
      $region94: #{lighting_res_blocks_forward.4} parent=79 // pred_check_branch
        %638 = sbr.rel (%p636) target = $region96
      $region95: #{lighting_res_blocks_forward.4} parent=79 // pred_region
        %p639 = scmp.lt.s32.totalorder %s28, 1
        %s640 = scalar_select %p639, %s28, 1
        %s641 = smul.addr %s640, 4
        %s642 = scalar_lea.vmem %s11, %s641
      $region96: #{lighting_res_blocks_forward.4} parent=79 // pred_fallthru
        _
      // Predicated region
      $region97: #{lighting_res_blocks_forward.4} parent=79 // pred_check
        %p643 = pneg %p446
      $region98: #{lighting_res_blocks_forward.4} parent=79 // pred_check_branch
        %645 = sbr.rel (%p643) target = $region100
      $region99: #{lighting_res_blocks_forward.4} parent=79 // pred_region
        %p646 = scmp.lt.s32.totalorder %s28, 1
        %s647 = scalar_select %p646, %s28, 1
        %s648 = smul.addr %s647, 2
        %s649 = smul.addr %s648, 8
        %s650 = scalar_lea.vmem %s18, %s649
      $region100: #{lighting_res_blocks_forward.4} parent=79 // pred_fallthru
        _
      // Predicated region
      $region101: #{lighting_res_blocks_forward.4} parent=79 // pred_check
        %p651 = pneg %p472
      $region102: #{lighting_res_blocks_forward.4} parent=79 // pred_check_branch
        %653 = sbr.rel (%p651) target = $region104
      $region103: #{lighting_res_blocks_forward.4} parent=79 // pred_region
        %p654 = scmp.lt.s32.totalorder %s28, 1
        %s655 = scalar_select %p654, %s28, 1
        %s656 = smul.addr %s655, 4
        %s657 = scalar_lea.vmem %s19, %s656
      $region104: #{lighting_res_blocks_forward.4} parent=79 // pred_fallthru
        _
    $region80: #{lighting_res_blocks_forward.4} parent=5 // pred_fallthru
      _
    %p658 = scmp.le.s32.totalorder 1, %s28
    %p659 = scmp.lt.s32.totalorder %s28, 3
    %p660 = pnand %p658, %p659
    %p661 = pneg %p660
    // Predicated region
    $region105: #{lighting_res_blocks_forward.4} parent=5 // pred_check
      _
    $region106: #{lighting_res_blocks_forward.4} parent=5 // pred_check_branch
      %663 = sbr.rel (%p660) target = $region108
    $region107: #{lighting_res_blocks_forward.4} parent=5 // pred_region
      %s664 = ssub.s32 %s28, 1
      %p665 = scmp.lt.s32.totalorder %s33, 1
      %s666 = scalar_select %p665, %s33, 1
      %s667 = smul.addr %s666, 3
      %s668 = smul.addr %s667, 4
      %s669 = scalar_lea.vmem %s0, %s668
      %p670 = pneg %p54
      %p671 = pneg %p51
      %p672 = scmp.lt.s32.totalorder %s33, 1
      %s673 = scalar_select %p672, %s33, 1
      %s674 = smul.addr %s673, 3
      %s675 = scalar_lea.vmem %s1, %s674
      %p676 = pneg %p80
      %p677 = pneg %p77
      %p678 = pneg %p101
      %p679 = pneg %p98
      %p680 = pneg %p122
      %p681 = pneg %p119
      %p682 = pneg %p143
      %p683 = pneg %p140
      %p684 = pneg %p164
      %p685 = pneg %p161
      %p686 = pneg %p185
      %p687 = pneg %p182
      %p688 = pneg %p206
      %p689 = pneg %p203
      %p690 = pneg %p227
      %p691 = pneg %p224
      %p692 = pneg %p248
      %p693 = pneg %p245
      %p694 = scmp.lt.s32.totalorder %s33, 1
      %s695 = scalar_select %p694, %s33, 1
      %s696 = smul.addr %s695, 2
      %s697 = smul.addr %s696, 8
      %s698 = scalar_lea.vmem %s10, %s697
      %p699 = pneg %p274
      %p700 = pneg %p271
      %p701 = scmp.lt.s32.totalorder %s33, 1
      %s702 = scalar_select %p701, %s33, 1
      %s703 = smul.addr %s702, 4
      %s704 = scalar_lea.vmem %s11, %s703
      %p705 = pneg %p300
      %p706 = pneg %p297
      %p707 = pneg %p321
      %p708 = pneg %p318
      %p709 = pneg %p342
      %p710 = pneg %p339
      %p711 = pneg %p363
      %p712 = pneg %p360
      %p713 = pneg %p384
      %p714 = pneg %p381
      %p715 = pneg %p405
      %p716 = pneg %p402
      %p717 = pneg %p426
      %p718 = pneg %p423
      %p719 = scmp.lt.s32.totalorder %s33, 1
      %s720 = scalar_select %p719, %s33, 1
      %s721 = smul.addr %s720, 2
      %s722 = smul.addr %s721, 8
      %s723 = scalar_lea.vmem %s18, %s722
      %p724 = pneg %p452
      %p725 = pneg %p449
      %p726 = scmp.lt.s32.totalorder %s33, 1
      %s727 = scalar_select %p726, %s33, 1
      %s728 = smul.addr %s727, 4
      %s729 = scalar_lea.vmem %s19, %s728
      %p730 = pneg %p478
      %p731 = pneg %p475
      %p732 = pneg %p499
      %p733 = pneg %p496
      %p734 = pneg %p520
      %p735 = pneg %p517
      %p736 = pneg %p546
      %p737 = pneg %p543
      %p738 = scmp.lt.s32.totalorder %s33, 1
      %s739 = scalar_select %p738, %s33, 1
      %s740 = smul.addr %s739, 3
      %s741 = smul.addr %s740, 4
      %s742 = scalar_lea.vmem %s22, %s741
      %p743 = scmp.lt.s32.totalorder %s33, 1
      %s744 = scalar_select %p743, %s33, 1
      %s745 = smul.addr %s744, 3
      %s746 = smul.addr %s745, 4
      %s747 = scalar_lea.vmem %s0, %s746
      %p748 = scmp.lt.s32.totalorder %s33, 1
      %s749 = scalar_select %p748, %s33, 1
      %s750 = smul.addr %s749, 3
      %s751 = scalar_lea.vmem %s1, %s750
      %p752 = scmp.lt.s32.totalorder %s33, 1
      %s753 = scalar_select %p752, %s33, 1
      %s754 = smul.addr %s753, 2
      %s755 = smul.addr %s754, 8
      %s756 = scalar_lea.vmem %s10, %s755
      %p757 = scmp.lt.s32.totalorder %s33, 1
      %s758 = scalar_select %p757, %s33, 1
      %s759 = smul.addr %s758, 4
      %s760 = scalar_lea.vmem %s11, %s759
      %p761 = scmp.lt.s32.totalorder %s33, 1
      %s762 = scalar_select %p761, %s33, 1
      %s763 = smul.addr %s762, 2
      %s764 = smul.addr %s763, 8
      %s765 = scalar_lea.vmem %s18, %s764
      %p766 = scmp.lt.s32.totalorder %s33, 1
      %s767 = scalar_select %p766, %s33, 1
      %s768 = smul.addr %s767, 4
      %s769 = scalar_lea.vmem %s19, %s768
      %p770 = scmp.lt.s32.totalorder %s33, 1
      %s771 = scalar_select %p770, %s33, 1
      %s772 = smul.addr %s771, 3
      %s773 = smul.addr %s772, 4
      %s774 = scalar_lea.vmem %s22, %s773
      %v776 = vld [vmem:[%s2] sm:$0x7]
      %v777 = vld [vmem:[%s751] sm:$0x7]
      %v778 = vsub.f32 1.0, %v777
      %v779 = vld [vmem:[%s3] sm:$0xff]
      %v780 = vld [vmem:[%s3 + $0x8] sm:$0xf]
      %v781 = vld [vmem:[%s747] sm:$0xff]
      %v782 = vld [vmem:[%s747 + $0x8] sm:$0xf]
      %785 = vst [vmem:[#allocation1] ss:$2 sm:$0xff] %v781
      %s786 = scalar_lea.vmem [#allocation1], 16
      %787 = vst [vmem:[%s786] ss:$2 sm:$0xff] %v782
      %v788 = vld.sshfl [vmem:[#allocation1] sm:$0xff pattern:$0x75316420]
      %v789 = vld.sshfl [vmem:[#allocation1 + $0x8] sm:$0xff pattern:$0x75316420]
      %v790 = vld.sshfl [vmem:[#allocation1 + $0x10] sm:$0xff pattern:$0x75316420]
      %794 = vrot.lane.b32.xlu0 %v788, 92
      %v795 = vpop.permute.xlu0 %794
      %796 = vrot.lane.b32.xlu0 %v789, 92
      %v797 = vpop.permute.xlu0 %796
      %798 = vrot.lane.b32.xlu0 %v790, 92
      %v799 = vpop.permute.xlu0 %798
      %v800 = vlaneseq
      %v801 = vand.u32 %v800, 127
      %vm802 = vcmp.lt.s32.totalorder %v801, 92
      %v803 = vsel %vm802, %v797, %v799
      %v804 = vsel %vm802, %v795, %v797
      %v805 = vsel %vm802, %v799, %v795
      %806 = vst [vmem:[#allocation1] ss:$2 sm:$0xff] %v781
      %s807 = scalar_lea.vmem [#allocation1], 16
      %808 = vst [vmem:[%s807] ss:$2 sm:$0xff] %v782
      %v809 = vld.sshfl [vmem:[#allocation1] sm:$0xff pattern:$0x75316420]
      %v810 = vld.sshfl [vmem:[#allocation1 + $0x8] sm:$0xff pattern:$0x75316420]
      %v811 = vld.sshfl [vmem:[#allocation1 + $0x10] sm:$0xff pattern:$0x75316420]
      %v815 = vsub.f32 %v804, %v809
      %v816 = vsub.f32 %v803, %v810
      %v817 = vsub.f32 %v805, %v811
      %v820 = vperm.slane %v779, 0
      %v821 = vperm.slane %v779, 4
      %v822 = vperm.slane %v780, 0
      %v826 = vperm.slane %v820, 0
      %v827 = vperm.slane %v821, 0
      %v828 = vperm.slane %v822, 0
      %v829 = vmul.f32 %v826, %v815
      %v830 = vmul.f32 %v827, %v816
      %v831 = vmul.f32 %v828, %v817
      %v834 = vrot.slane %v830, 4
      %vm835 = vcmask 1043456
      %v836 = vsel %vm835, %v829, %v834
      %v838 = vadd.f32 %v781, %v836
      %v839 = vadd.f32 %v782, %v831
      %842 = vst [vmem:[#allocation1] ss:$2 sm:$0xff] %v838
      %s843 = scalar_lea.vmem [#allocation1], 16
      %844 = vst [vmem:[%s843] ss:$2 sm:$0xff] %v839
      %v845 = vld.sshfl [vmem:[#allocation1] sm:$0xff pattern:$0x75316420]
      %v846 = vld.sshfl [vmem:[#allocation1 + $0x8] sm:$0xff pattern:$0x75316420]
      %v847 = vld.sshfl [vmem:[#allocation1 + $0x10] sm:$0xff pattern:$0x75316420]
      %851 = vrot.lane.b32.xlu0 %v845, 36
      %v852 = vpop.permute.xlu0 %851
      %853 = vrot.lane.b32.xlu0 %v846, 36
      %v854 = vpop.permute.xlu0 %853
      %855 = vrot.lane.b32.xlu0 %v847, 36
      %v856 = vpop.permute.xlu0 %855
      %vm857 = vcmp.lt.s32.totalorder %v801, 36
      %v858 = vsel %vm857, %v854, %v856
      %v859 = vsel %vm857, %v852, %v854
      %v860 = vsel %vm857, %v856, %v852
      %861 = vst [vmem:[#allocation1] ss:$2 sm:$0xff] %v838
      %s862 = scalar_lea.vmem [#allocation1], 16
      %863 = vst [vmem:[%s862] ss:$2 sm:$0xff] %v839
      %v864 = vld.sshfl [vmem:[#allocation1] sm:$0xff pattern:$0x75316420]
      %v865 = vld.sshfl [vmem:[#allocation1 + $0x8] sm:$0xff pattern:$0x75316420]
      %v866 = vld.sshfl [vmem:[#allocation1 + $0x10] sm:$0xff pattern:$0x75316420]
      %v870 = vsub.f32 %v860, %v864
      %v871 = vsub.f32 %v859, %v865
      %v872 = vsub.f32 %v858, %v866
      %v873 = vperm.slane %v779, 1
      %v874 = vperm.slane %v779, 5
      %v875 = vperm.slane %v780, 1
      %v879 = vperm.slane %v873, 1
      %v880 = vperm.slane %v874, 1
      %v881 = vperm.slane %v875, 1
      %v882 = vmul.f32 %v879, %v870
      %v883 = vmul.f32 %v880, %v871
      %v884 = vmul.f32 %v881, %v872
      %v887 = vrot.slane %v883, 4
      %v888 = vsel %vm835, %v882, %v887
      %v890 = vadd.f32 %v838, %v888
      %v891 = vadd.f32 %v839, %v884
      %894 = vst [vmem:[#allocation1] ss:$2 sm:$0xff] %v890
      %s895 = scalar_lea.vmem [#allocation1], 16
      %896 = vst [vmem:[%s895] ss:$2 sm:$0xff] %v891
      %v897 = vld.sshfl [vmem:[#allocation1] sm:$0xff pattern:$0x75316420]
      %v898 = vld.sshfl [vmem:[#allocation1 + $0x8] sm:$0xff pattern:$0x75316420]
      %v899 = vld.sshfl [vmem:[#allocation1 + $0x10] sm:$0xff pattern:$0x75316420]
      %903 = vrot.lane.b32.xlu0 %v897, 126
      %v904 = vpop.permute.xlu0 %903
      %905 = vrot.lane.b32.xlu0 %v898, 126
      %v906 = vpop.permute.xlu0 %905
      %907 = vrot.lane.b32.xlu0 %v899, 126
      %v908 = vpop.permute.xlu0 %907
      %vm909 = vcmp.lt.s32.totalorder %v801, 126
      %v910 = vsel %vm909, %v906, %v908
      %v911 = vsel %vm909, %v904, %v906
      %v912 = vsel %vm909, %v908, %v904
      %913 = vst [vmem:[#allocation1] ss:$2 sm:$0xff] %v890
      %s914 = scalar_lea.vmem [#allocation1], 16
      %915 = vst [vmem:[%s914] ss:$2 sm:$0xff] %v891
      %v916 = vld.sshfl [vmem:[#allocation1] sm:$0xff pattern:$0x75316420]
      %v917 = vld.sshfl [vmem:[#allocation1 + $0x8] sm:$0xff pattern:$0x75316420]
      %v918 = vld.sshfl [vmem:[#allocation1 + $0x10] sm:$0xff pattern:$0x75316420]
      %v922 = vsub.f32 %v911, %v916
      %v923 = vsub.f32 %v910, %v917
      %v924 = vsub.f32 %v912, %v918
      %v925 = vperm.slane %v779, 2
      %v926 = vperm.slane %v779, 6
      %v927 = vperm.slane %v780, 2
      %v931 = vperm.slane %v925, 2
      %v932 = vperm.slane %v926, 2
      %v933 = vperm.slane %v927, 2
      %v934 = vmul.f32 %v931, %v922
      %v935 = vmul.f32 %v932, %v923
      %v936 = vmul.f32 %v933, %v924
      %v939 = vrot.slane %v935, 4
      %v940 = vsel %vm835, %v934, %v939
      %v942 = vadd.f32 %v890, %v940
      %v943 = vadd.f32 %v891, %v936
      %946 = vst [vmem:[#allocation1] ss:$2 sm:$0xff] %v942
      %s947 = scalar_lea.vmem [#allocation1], 16
      %948 = vst [vmem:[%s947] ss:$2 sm:$0xff] %v943
      %v949 = vld.sshfl [vmem:[#allocation1] sm:$0xff pattern:$0x75316420]
      %v950 = vld.sshfl [vmem:[#allocation1 + $0x8] sm:$0xff pattern:$0x75316420]
      %v951 = vld.sshfl [vmem:[#allocation1 + $0x10] sm:$0xff pattern:$0x75316420]
      %955 = vrot.lane.b32.xlu0 %v949, 2
      %v956 = vpop.permute.xlu0 %955
      %957 = vrot.lane.b32.xlu0 %v950, 2
      %v958 = vpop.permute.xlu0 %957
      %959 = vrot.lane.b32.xlu0 %v951, 2
      %v960 = vpop.permute.xlu0 %959
      %vm961 = vcmp.lt.s32.totalorder %v801, 2
      %v962 = vsel %vm961, %v958, %v960
      %v963 = vsel %vm961, %v956, %v958
      %v964 = vsel %vm961, %v960, %v956
      %965 = vst [vmem:[#allocation1] ss:$2 sm:$0xff] %v942
      %s966 = scalar_lea.vmem [#allocation1], 16
      %967 = vst [vmem:[%s966] ss:$2 sm:$0xff] %v943
      %v968 = vld.sshfl [vmem:[#allocation1] sm:$0xff pattern:$0x75316420]
      %v969 = vld.sshfl [vmem:[#allocation1 + $0x8] sm:$0xff pattern:$0x75316420]
      %v970 = vld.sshfl [vmem:[#allocation1 + $0x10] sm:$0xff pattern:$0x75316420]
      %v974 = vsub.f32 %v964, %v968
      %v975 = vsub.f32 %v963, %v969
      %v976 = vsub.f32 %v962, %v970
      %v977 = vperm.slane %v779, 3
      %v978 = vperm.slane %v779, 7
      %v979 = vperm.slane %v780, 3
      %v983 = vperm.slane %v977, 3
      %v984 = vperm.slane %v978, 3
      %v985 = vperm.slane %v979, 3
      %v986 = vmul.f32 %v983, %v974
      %v987 = vmul.f32 %v984, %v975
      %v988 = vmul.f32 %v985, %v976
      %v991 = vrot.slane %v987, 4
      %v992 = vsel %vm835, %v986, %v991
      %v994 = vadd.f32 %v942, %v992
      %v995 = vadd.f32 %v943, %v988
      %998 = vst [vmem:[#allocation1] ss:$2 sm:$0xff] %v994
      %s999 = scalar_lea.vmem [#allocation1], 16
      %1000 = vst [vmem:[%s999] ss:$2 sm:$0xff] %v995
      %v1001 = vld.sshfl [vmem:[#allocation1] sm:$0xff pattern:$0x75316420]
      %v1002 = vld.sshfl [vmem:[#allocation1 + $0x8] sm:$0xff pattern:$0x75316420]
      %v1003 = vld.sshfl [vmem:[#allocation1 + $0x10] sm:$0xff pattern:$0x75316420]
      %1007 = vrot.lane.b32.xlu0 %v1001, 19
      %v1008 = vpop.permute.xlu0 %1007
      %1009 = vrot.lane.b32.xlu0 %v1002, 19
      %v1010 = vpop.permute.xlu0 %1009
      %1011 = vrot.lane.b32.xlu0 %v1003, 19
      %v1012 = vpop.permute.xlu0 %1011
      %vm1013 = vcmp.lt.s32.totalorder %v801, 19
      %v1014 = vsel %vm1013, %v1010, %v1012
      %v1015 = vsel %vm1013, %v1008, %v1010
      %v1016 = vsel %vm1013, %v1012, %v1008
      %v1017 = vpack.c.bf16 %v1015, %v1016
      %v1018 = vpack.c.bf16 %v1014, %v1014
      %1019 = vst [vmem:[#allocation2] sm:$0x33] %v1017
      %1020 = vst [vmem:[#allocation2 + $0x8] sm:$0x3] %v1018
      %1021 = vst [vmem:[#allocation1] ss:$2 sm:$0xff] %v994
      %s1022 = scalar_lea.vmem [#allocation1], 16
      %1023 = vst [vmem:[%s1022] ss:$2 sm:$0xff] %v995
      %v1024 = vld.sshfl [vmem:[#allocation1] sm:$0xff pattern:$0x75316420]
      %v1025 = vld.sshfl [vmem:[#allocation1 + $0x8] sm:$0xff pattern:$0x75316420]
      %v1026 = vld.sshfl [vmem:[#allocation1 + $0x10] sm:$0xff pattern:$0x75316420]
      %1030 = vrot.lane.b32.xlu0 %v1024, 18
      %v1031 = vpop.permute.xlu0 %1030
      %1032 = vrot.lane.b32.xlu0 %v1025, 18
      %v1033 = vpop.permute.xlu0 %1032
      %1034 = vrot.lane.b32.xlu0 %v1026, 18
      %v1035 = vpop.permute.xlu0 %1034
      %vm1036 = vcmp.lt.s32.totalorder %v801, 18
      %v1037 = vsel %vm1036, %v1033, %v1035
      %v1038 = vsel %vm1036, %v1031, %v1033
      %v1039 = vsel %vm1036, %v1035, %v1031
      %v1040 = vpack.c.bf16 %v1038, %v1039
      %v1041 = vpack.c.bf16 %v1037, %v1037
      %v1044 = vrot.slane %v1040, 6
      %v1045 = vrot.slane %v1041, 6
      %1048 = vst [vmem:[#allocation2] sm:$0xcc] %v1044
      %1049 = vst [vmem:[#allocation2 + $0x8] sm:$0xc] %v1045
      %1050 = vst [vmem:[#allocation1] ss:$2 sm:$0xff] %v994
      %s1051 = scalar_lea.vmem [#allocation1], 16
      %1052 = vst [vmem:[%s1051] ss:$2 sm:$0xff] %v995
      %v1053 = vld.sshfl [vmem:[#allocation1] sm:$0xff pattern:$0x75316420]
      %v1054 = vld.sshfl [vmem:[#allocation1 + $0x8] sm:$0xff pattern:$0x75316420]
      %v1055 = vld.sshfl [vmem:[#allocation1 + $0x10] sm:$0xff pattern:$0x75316420]
      %1059 = vrot.lane.b32.xlu0 %v1053, 17
      %v1060 = vpop.permute.xlu0 %1059
      %1061 = vrot.lane.b32.xlu0 %v1054, 17
      %v1062 = vpop.permute.xlu0 %1061
      %1063 = vrot.lane.b32.xlu0 %v1055, 17
      %v1064 = vpop.permute.xlu0 %1063
      %vm1065 = vcmp.lt.s32.totalorder %v801, 17
      %v1066 = vsel %vm1065, %v1062, %v1064
      %v1067 = vsel %vm1065, %v1060, %v1062
      %v1068 = vsel %vm1065, %v1064, %v1060
      %v1069 = vpack.c.bf16 %v1067, %v1068
      %v1070 = vpack.c.bf16 %v1066, %v1066
      %1071 = vst [vmem:[#allocation2 + $0xc] sm:$0x33] %v1069
      %1072 = vst [vmem:[#allocation2 + $0x14] sm:$0x3] %v1070
      %1073 = vst [vmem:[#allocation1] ss:$2 sm:$0xff] %v994
      %s1074 = scalar_lea.vmem [#allocation1], 16
      %1075 = vst [vmem:[%s1074] ss:$2 sm:$0xff] %v995
      %v1076 = vld.sshfl [vmem:[#allocation1] sm:$0xff pattern:$0x75316420]
      %v1077 = vld.sshfl [vmem:[#allocation1 + $0x8] sm:$0xff pattern:$0x75316420]
      %v1078 = vld.sshfl [vmem:[#allocation1 + $0x10] sm:$0xff pattern:$0x75316420]
      %1082 = vrot.lane.b32.xlu0 %v1076, 1
      %v1083 = vpop.permute.xlu0 %1082
      %1084 = vrot.lane.b32.xlu0 %v1077, 1
      %v1085 = vpop.permute.xlu0 %1084
      %1086 = vrot.lane.b32.xlu0 %v1078, 1
      %v1087 = vpop.permute.xlu0 %1086
      %vm1088 = vcmp.lt.s32.totalorder %v801, 1
      %v1089 = vsel %vm1088, %v1085, %v1087
      %v1090 = vsel %vm1088, %v1083, %v1085
      %v1091 = vsel %vm1088, %v1087, %v1083
      %v1092 = vpack.c.bf16 %v1090, %v1091
      %v1093 = vpack.c.bf16 %v1089, %v1089
      %v1096 = vrot.slane %v1092, 6
      %v1097 = vrot.slane %v1093, 6
      %1100 = vst [vmem:[#allocation2 + $0xc] sm:$0xcc] %v1096
      %1101 = vst [vmem:[#allocation2 + $0x14] sm:$0xc] %v1097
      %1102 = vst [vmem:[#allocation1] ss:$2 sm:$0xff] %v994
      %s1103 = scalar_lea.vmem [#allocation1], 16
      %1104 = vst [vmem:[%s1103] ss:$2 sm:$0xff] %v995
      %v1105 = vld.sshfl [vmem:[#allocation1] sm:$0xff pattern:$0x75316420]
      %v1106 = vld.sshfl [vmem:[#allocation1 + $0x8] sm:$0xff pattern:$0x75316420]
      %v1107 = vld.sshfl [vmem:[#allocation1 + $0x10] sm:$0xff pattern:$0x75316420]
      %v1111 = vpack.c.bf16 %v1106, %v1105
      %v1112 = vpack.c.bf16 %v1107, %v1107
      %1113 = vst [vmem:[#allocation2 + $0x18] sm:$0x33] %v1111
      %1114 = vst [vmem:[#allocation2 + $0x20] sm:$0x3] %v1112
      %1115 = vst [vmem:[#allocation1] ss:$2 sm:$0xff] %v994
      %s1116 = scalar_lea.vmem [#allocation1], 16
      %1117 = vst [vmem:[%s1116] ss:$2 sm:$0xff] %v995
      %v1118 = vld.sshfl [vmem:[#allocation1] sm:$0xff pattern:$0x75316420]
      %v1119 = vld.sshfl [vmem:[#allocation1 + $0x8] sm:$0xff pattern:$0x75316420]
      %v1120 = vld.sshfl [vmem:[#allocation1 + $0x10] sm:$0xff pattern:$0x75316420]
      %1124 = vrot.lane.b32.xlu0 %v1118, 127
      %v1125 = vpop.permute.xlu0 %1124
      %1126 = vrot.lane.b32.xlu0 %v1119, 127
      %v1127 = vpop.permute.xlu0 %1126
      %1128 = vrot.lane.b32.xlu0 %v1120, 127
      %v1129 = vpop.permute.xlu0 %1128
      %vm1130 = vcmp.lt.s32.totalorder %v801, 127
      %v1131 = vsel %vm1130, %v1127, %v1129
      %v1132 = vsel %vm1130, %v1125, %v1127
      %v1133 = vsel %vm1130, %v1129, %v1125
      %v1134 = vpack.c.bf16 %v1131, %v1132
      %v1135 = vpack.c.bf16 %v1133, %v1133
      %v1138 = vrot.slane %v1134, 6
      %v1139 = vrot.slane %v1135, 6
      %1142 = vst [vmem:[#allocation2 + $0x18] sm:$0xcc] %v1138
      %1143 = vst [vmem:[#allocation2 + $0x20] sm:$0xc] %v1139
      %1144 = vst [vmem:[#allocation1] ss:$2 sm:$0xff] %v994
      %s1145 = scalar_lea.vmem [#allocation1], 16
      %1146 = vst [vmem:[%s1145] ss:$2 sm:$0xff] %v995
      %v1147 = vld.sshfl [vmem:[#allocation1] sm:$0xff pattern:$0x75316420]
      %v1148 = vld.sshfl [vmem:[#allocation1 + $0x8] sm:$0xff pattern:$0x75316420]
      %v1149 = vld.sshfl [vmem:[#allocation1 + $0x10] sm:$0xff pattern:$0x75316420]
      %1153 = vrot.lane.b32.xlu0 %v1147, 111
      %v1154 = vpop.permute.xlu0 %1153
      %1155 = vrot.lane.b32.xlu0 %v1148, 111
      %v1156 = vpop.permute.xlu0 %1155
      %1157 = vrot.lane.b32.xlu0 %v1149, 111
      %v1158 = vpop.permute.xlu0 %1157
      %vm1159 = vcmp.lt.s32.totalorder %v801, 111
      %v1160 = vsel %vm1159, %v1156, %v1158
      %v1161 = vsel %vm1159, %v1154, %v1156
      %v1162 = vsel %vm1159, %v1158, %v1154
      %v1163 = vpack.c.bf16 %v1160, %v1161
      %v1164 = vpack.c.bf16 %v1162, %v1162
      %1165 = vst [vmem:[#allocation2 + $0x24] sm:$0x33] %v1163
      %1166 = vst [vmem:[#allocation2 + $0x2c] sm:$0x3] %v1164
      %1167 = vst [vmem:[#allocation1] ss:$2 sm:$0xff] %v994
      %s1168 = scalar_lea.vmem [#allocation1], 16
      %1169 = vst [vmem:[%s1168] ss:$2 sm:$0xff] %v995
      %v1170 = vld.sshfl [vmem:[#allocation1] sm:$0xff pattern:$0x75316420]
      %v1171 = vld.sshfl [vmem:[#allocation1 + $0x8] sm:$0xff pattern:$0x75316420]
      %v1172 = vld.sshfl [vmem:[#allocation1 + $0x10] sm:$0xff pattern:$0x75316420]
      %1176 = vrot.lane.b32.xlu0 %v1170, 110
      %v1177 = vpop.permute.xlu0 %1176
      %1178 = vrot.lane.b32.xlu0 %v1171, 110
      %v1179 = vpop.permute.xlu0 %1178
      %1180 = vrot.lane.b32.xlu0 %v1172, 110
      %v1181 = vpop.permute.xlu0 %1180
      %vm1182 = vcmp.lt.s32.totalorder %v801, 110
      %v1183 = vsel %vm1182, %v1179, %v1181
      %v1184 = vsel %vm1182, %v1177, %v1179
      %v1185 = vsel %vm1182, %v1181, %v1177
      %v1186 = vpack.c.bf16 %v1183, %v1184
      %v1187 = vpack.c.bf16 %v1185, %v1185
      %v1190 = vrot.slane %v1186, 6
      %v1191 = vrot.slane %v1187, 6
      %1194 = vst [vmem:[#allocation2 + $0x24] sm:$0xcc] %v1190
      %1195 = vst [vmem:[#allocation2 + $0x2c] sm:$0xc] %v1191
      %1196 = vst [vmem:[#allocation1] ss:$2 sm:$0xff] %v994
      %s1197 = scalar_lea.vmem [#allocation1], 16
      %1198 = vst [vmem:[%s1197] ss:$2 sm:$0xff] %v995
      %v1199 = vld.sshfl [vmem:[#allocation1] sm:$0xff pattern:$0x75316420]
      %v1200 = vld.sshfl [vmem:[#allocation1 + $0x8] sm:$0xff pattern:$0x75316420]
      %v1201 = vld.sshfl [vmem:[#allocation1 + $0x10] sm:$0xff pattern:$0x75316420]
      %1205 = vrot.lane.b32.xlu0 %v1199, 109
      %v1206 = vpop.permute.xlu0 %1205
      %1207 = vrot.lane.b32.xlu0 %v1200, 109
      %v1208 = vpop.permute.xlu0 %1207
      %1209 = vrot.lane.b32.xlu0 %v1201, 109
      %v1210 = vpop.permute.xlu0 %1209
      %vm1211 = vcmp.lt.s32.totalorder %v801, 109
      %v1212 = vsel %vm1211, %v1208, %v1210
      %v1213 = vsel %vm1211, %v1206, %v1208
      %v1214 = vsel %vm1211, %v1210, %v1206
      %v1215 = vpack.c.bf16 %v1212, %v1213
      %v1216 = vpack.c.bf16 %v1214, %v1214
      %1217 = vst [vmem:[#allocation2 + $0x30] sm:$0x33] %v1215
      %1218 = vst [vmem:[#allocation2 + $0x38] sm:$0x3] %v1216
      %v1219 = vld [vmem:[%s4] sm:$0x3]
      %v1220 = vld [vmem:[#allocation2] sm:$0xff]
      %v1221 = vld [vmem:[#allocation2 + $0x8] sm:$0xf]
      %v1222 = vld [vmem:[#allocation2 + $0xc] sm:$0xff]
      %v1223 = vld [vmem:[#allocation2 + $0x14] sm:$0xf]
      %v1224 = vld [vmem:[#allocation2 + $0x18] sm:$0xff]
      %v1225 = vld [vmem:[#allocation2 + $0x20] sm:$0xf]
      %v1226 = vld [vmem:[#allocation2 + $0x24] sm:$0xff]
      %v1227 = vld [vmem:[#allocation2 + $0x2c] sm:$0xf]
      %v1228 = vld [vmem:[#allocation2 + $0x30] sm:$0x33]
      %v1229 = vld [vmem:[#allocation2 + $0x38] sm:$0x3]
      %v1230 = vld [vmem:[%s5] sm:$0xf]
      %1232 = vset.pattern.permute.xlu0 0
      %1233 = vperm.xlu0 %1232, %v1230
      %v1234 = vpop.permute.xlu0 %1233
      %v1246 = vunpack.c.l.b16 %v1220
      %v1247 = vunpack.c.h.b16 %v1220
      %v1248 = vunpack.c.l.b16 %v1221
      %v1249 = vunpack.c.l.b16 %v1222
      %v1250 = vunpack.c.h.b16 %v1222
      %v1251 = vunpack.c.l.b16 %v1223
      %v1252 = vunpack.c.l.b16 %v1224
      %v1253 = vunpack.c.h.b16 %v1224
      %v1254 = vunpack.c.l.b16 %v1225
      %v1255 = vunpack.c.l.b16 %v1226
      %v1256 = vunpack.c.h.b16 %v1226
      %v1257 = vunpack.c.l.b16 %v1227
      %v1258 = vunpack.c.l.b16 %v1228
      %v1259 = vunpack.c.h.b16 %v1228
      %v1260 = vunpack.c.l.b16 %v1229
      %v1261 = vpack.c.b16 %v1249, %v1246
      %v1262 = vpack.c.b16 %v1250, %v1247
      %v1263 = vpack.c.b16 %v1251, %v1248
      %v1264 = vpack.c.b16 %v1255, %v1252
      %v1265 = vpack.c.b16 %v1256, %v1253
      %v1266 = vpack.c.b16 %v1257, %v1254
      %v1267 = vpack.c.b16 %v1258, %v1258
      %v1268 = vpack.c.b16 %v1259, %v1259
      %v1269 = vpack.c.b16 %v1260, %v1260
      %vm1276 = vcmask 293888
      %v1278 = vsel %vm1276, %v1219, 0
      %vm1280 = vcmask 1041408
      %v1282 = vsel %vm1280, %v1267, 0
      %v1285 = vsel %vm1280, %v1268, 0
      %v1288 = vsel %vm1280, %v1269, 0
      %1290 = vmatpush.bf16.msra.mxu0 0
      %1291 = vmatpush.bf16.msra.mxu0 0
      %1292 = vmatpush.bf16.msra.mxu0 0
      %1293 = vmatpush.bf16.msra.mxu0 0
      %1294 = vmatpush.bf16.msra.mxu0 0
      %1295 = vmatpush.bf16.msra.mxu0 %v1282
      %1296 = vmatpush.bf16.msra.mxu0 %v1264
      %1297 = vmatpush.bf16.msra.mxu0 %v1261
      %1298 = vmatmul.bf16.gmra.mxu0 %v1278
      %v1299 = vpop.f32.mrf.mxu0
      %v1300 = vadd.f32 %v1234, %v1299
      %v1301 = vpop.f32.mrf.mxu0
      %1302 = vdwg.mxu0
      %1303 = vmatpush.bf16.msra.mxu0 0
      %1304 = vmatpush.bf16.msra.mxu0 0
      %1305 = vmatpush.bf16.msra.mxu0 0
      %1306 = vmatpush.bf16.msra.mxu0 0
      %1307 = vmatpush.bf16.msra.mxu0 0
      %1308 = vmatpush.bf16.msra.mxu0 %v1285
      %1309 = vmatpush.bf16.msra.mxu0 %v1265
      %1310 = vmatpush.bf16.msra.mxu0 %v1262
      %1311 = vmatmul.bf16.gmra.mxu0 %v1278
      %v1312 = vpop.f32.mrf.mxu0
      %v1313 = vadd.f32 %v1234, %v1312
      %v1314 = vpop.f32.mrf.mxu0
      %1315 = vdwg.mxu0
      %1316 = vmatpush.bf16.msra.mxu0 0
      %1317 = vmatpush.bf16.msra.mxu0 0
      %1318 = vmatpush.bf16.msra.mxu0 0
      %1319 = vmatpush.bf16.msra.mxu0 0
      %1320 = vmatpush.bf16.msra.mxu0 0
      %1321 = vmatpush.bf16.msra.mxu0 %v1288
      %1322 = vmatpush.bf16.msra.mxu0 %v1266
      %1323 = vmatpush.bf16.msra.mxu0 %v1263
      %1324 = vmatmul.bf16.gmra.mxu0 %v1278
      %v1325 = vpop.f32.mrf.mxu0
      %v1326 = vadd.f32 %v1234, %v1325
      %v1327 = vpop.f32.mrf.mxu0
      %1328 = vdwg.mxu0
      %v1330 = vperm.slane %v776, 0
      %v1331 = vperm.slane %v776, 1
      %v1332 = vperm.slane %v776, 2
      %v1336 = vmul.f32 %v1300, %v1330
      %v1337 = vmul.f32 %v1313, %v1331
      %v1338 = vmul.f32 %v1326, %v1332
      %1339 = vrot.lane.b32.xlu0 %v1336, 19
      %v1340 = vpop.permute.xlu0 %1339
      %1341 = vrot.lane.b32.xlu0 %v1337, 19
      %v1342 = vpop.permute.xlu0 %1341
      %1343 = vrot.lane.b32.xlu0 %v1338, 19
      %v1344 = vpop.permute.xlu0 %1343
      %v1345 = vsel %vm1013, %v1342, %v1344
      %v1346 = vsel %vm1013, %v1340, %v1342
      %v1347 = vsel %vm1013, %v1344, %v1340
      %v1348 = vpack.c.bf16 %v1346, %v1347
      %v1349 = vpack.c.bf16 %v1345, %v1345
      %1350 = vst [vmem:[#allocation2] sm:$0x33] %v1348
      %1351 = vst [vmem:[#allocation2 + $0x8] sm:$0x3] %v1349
      %1352 = vrot.lane.b32.xlu0 %v1336, 18
      %v1353 = vpop.permute.xlu0 %1352
      %1354 = vrot.lane.b32.xlu0 %v1337, 18
      %v1355 = vpop.permute.xlu0 %1354
      %1356 = vrot.lane.b32.xlu0 %v1338, 18
      %v1357 = vpop.permute.xlu0 %1356
      %v1358 = vsel %vm1036, %v1355, %v1357
      %v1359 = vsel %vm1036, %v1353, %v1355
      %v1360 = vsel %vm1036, %v1357, %v1353
      %v1361 = vpack.c.bf16 %v1359, %v1360
      %v1362 = vpack.c.bf16 %v1358, %v1358
      %v1365 = vrot.slane %v1361, 6
      %v1366 = vrot.slane %v1362, 6
      %1369 = vst [vmem:[#allocation2] sm:$0xcc] %v1365
      %1370 = vst [vmem:[#allocation2 + $0x8] sm:$0xc] %v1366
      %1371 = vrot.lane.b32.xlu0 %v1336, 17
      %v1372 = vpop.permute.xlu0 %1371
      %1373 = vrot.lane.b32.xlu0 %v1337, 17
      %v1374 = vpop.permute.xlu0 %1373
      %1375 = vrot.lane.b32.xlu0 %v1338, 17
      %v1376 = vpop.permute.xlu0 %1375
      %v1377 = vsel %vm1065, %v1374, %v1376
      %v1378 = vsel %vm1065, %v1372, %v1374
      %v1379 = vsel %vm1065, %v1376, %v1372
      %v1380 = vpack.c.bf16 %v1378, %v1379
      %v1381 = vpack.c.bf16 %v1377, %v1377
      %1382 = vst [vmem:[#allocation2 + $0xc] sm:$0x33] %v1380
      %1383 = vst [vmem:[#allocation2 + $0x14] sm:$0x3] %v1381
      %1384 = vrot.lane.b32.xlu0 %v1336, 1
      %v1385 = vpop.permute.xlu0 %1384
      %1386 = vrot.lane.b32.xlu0 %v1337, 1
      %v1387 = vpop.permute.xlu0 %1386
      %1388 = vrot.lane.b32.xlu0 %v1338, 1
      %v1389 = vpop.permute.xlu0 %1388
      %v1390 = vsel %vm1088, %v1387, %v1389
      %v1391 = vsel %vm1088, %v1385, %v1387
      %v1392 = vsel %vm1088, %v1389, %v1385
      %v1393 = vpack.c.bf16 %v1391, %v1392
      %v1394 = vpack.c.bf16 %v1390, %v1390
      %v1397 = vrot.slane %v1393, 6
      %v1398 = vrot.slane %v1394, 6
      %1401 = vst [vmem:[#allocation2 + $0xc] sm:$0xcc] %v1397
      %1402 = vst [vmem:[#allocation2 + $0x14] sm:$0xc] %v1398
      %v1403 = vpack.c.bf16 %v1337, %v1336
      %v1404 = vpack.c.bf16 %v1338, %v1338
      %1405 = vst [vmem:[#allocation2 + $0x18] sm:$0x33] %v1403
      %1406 = vst [vmem:[#allocation2 + $0x20] sm:$0x3] %v1404
      %1407 = vrot.lane.b32.xlu0 %v1336, 127
      %v1408 = vpop.permute.xlu0 %1407
      %1409 = vrot.lane.b32.xlu0 %v1337, 127
      %v1410 = vpop.permute.xlu0 %1409
      %1411 = vrot.lane.b32.xlu0 %v1338, 127
      %v1412 = vpop.permute.xlu0 %1411
      %v1413 = vsel %vm1130, %v1410, %v1412
      %v1414 = vsel %vm1130, %v1408, %v1410
      %v1415 = vsel %vm1130, %v1412, %v1408
      %v1416 = vpack.c.bf16 %v1413, %v1414
      %v1417 = vpack.c.bf16 %v1415, %v1415
      %v1420 = vrot.slane %v1416, 6
      %v1421 = vrot.slane %v1417, 6
      %1424 = vst [vmem:[#allocation2 + $0x18] sm:$0xcc] %v1420
      %1425 = vst [vmem:[#allocation2 + $0x20] sm:$0xc] %v1421
      %1426 = vrot.lane.b32.xlu0 %v1336, 111
      %v1427 = vpop.permute.xlu0 %1426
      %1428 = vrot.lane.b32.xlu0 %v1337, 111
      %v1429 = vpop.permute.xlu0 %1428
      %1430 = vrot.lane.b32.xlu0 %v1338, 111
      %v1431 = vpop.permute.xlu0 %1430
      %v1432 = vsel %vm1159, %v1429, %v1431
      %v1433 = vsel %vm1159, %v1427, %v1429
      %v1434 = vsel %vm1159, %v1431, %v1427
      %v1435 = vpack.c.bf16 %v1432, %v1433
      %v1436 = vpack.c.bf16 %v1434, %v1434
      %1437 = vst [vmem:[#allocation2 + $0x24] sm:$0x33] %v1435
      %1438 = vst [vmem:[#allocation2 + $0x2c] sm:$0x3] %v1436
      %1439 = vrot.lane.b32.xlu0 %v1336, 110
      %v1440 = vpop.permute.xlu0 %1439
      %1441 = vrot.lane.b32.xlu0 %v1337, 110
      %v1442 = vpop.permute.xlu0 %1441
      %1443 = vrot.lane.b32.xlu0 %v1338, 110
      %v1444 = vpop.permute.xlu0 %1443
      %v1445 = vsel %vm1182, %v1442, %v1444
      %v1446 = vsel %vm1182, %v1440, %v1442
      %v1447 = vsel %vm1182, %v1444, %v1440
      %v1448 = vpack.c.bf16 %v1445, %v1446
      %v1449 = vpack.c.bf16 %v1447, %v1447
      %v1452 = vrot.slane %v1448, 6
      %v1453 = vrot.slane %v1449, 6
      %1456 = vst [vmem:[#allocation2 + $0x24] sm:$0xcc] %v1452
      %1457 = vst [vmem:[#allocation2 + $0x2c] sm:$0xc] %v1453
      %1458 = vrot.lane.b32.xlu0 %v1336, 109
      %v1459 = vpop.permute.xlu0 %1458
      %1460 = vrot.lane.b32.xlu0 %v1337, 109
      %v1461 = vpop.permute.xlu0 %1460
      %1462 = vrot.lane.b32.xlu0 %v1338, 109
      %v1463 = vpop.permute.xlu0 %1462
      %v1464 = vsel %vm1211, %v1461, %v1463
      %v1465 = vsel %vm1211, %v1459, %v1461
      %v1466 = vsel %vm1211, %v1463, %v1459
      %v1467 = vpack.c.bf16 %v1464, %v1465
      %v1468 = vpack.c.bf16 %v1466, %v1466
      %1469 = vst [vmem:[#allocation2 + $0x30] sm:$0x33] %v1467
      %1470 = vst [vmem:[#allocation2 + $0x38] sm:$0x3] %v1468
      %v1471 = vld [vmem:[%s6] sm:$0xf]
      %v1472 = vld [vmem:[%s6 + $0x4] sm:$0x3]
      %v1473 = vld [vmem:[#allocation2] sm:$0xff]
      %v1474 = vld [vmem:[#allocation2 + $0x8] sm:$0xf]
      %v1475 = vld [vmem:[#allocation2 + $0xc] sm:$0xff]
      %v1476 = vld [vmem:[#allocation2 + $0x14] sm:$0xf]
      %v1477 = vld [vmem:[#allocation2 + $0x18] sm:$0xff]
      %v1478 = vld [vmem:[#allocation2 + $0x20] sm:$0xf]
      %v1479 = vld [vmem:[#allocation2 + $0x24] sm:$0xff]
      %v1480 = vld [vmem:[#allocation2 + $0x2c] sm:$0xf]
      %v1481 = vld [vmem:[#allocation2 + $0x30] sm:$0x33]
      %v1482 = vld [vmem:[#allocation2 + $0x38] sm:$0x3]
      %v1483 = vld [vmem:[%s7] sm:$0xff]
      %v1484 = vld [vmem:[%s7 + $0x8] sm:$0xf]
      %1486 = vset.pattern.permute.xlu0 0
      %1487 = vperm.xlu0 %1486, %v1483
      %v1488 = vpop.permute.xlu0 %1487
      %1491 = vset.pattern.permute.xlu0 0
      %1492 = vperm.xlu0 %1491, %v1484
      %v1493 = vpop.permute.xlu0 %1492
      %v1497 = vunpack.c.l.b16 %v1471
      %v1498 = vunpack.c.l.b16 %v1472
      %v1499 = vpack.c.b16 %v1498, %v1497
      %v1510 = vunpack.c.l.b16 %v1473
      %v1511 = vunpack.c.h.b16 %v1473
      %v1512 = vunpack.c.l.b16 %v1474
      %v1513 = vunpack.c.l.b16 %v1475
      %v1514 = vunpack.c.h.b16 %v1475
      %v1515 = vunpack.c.l.b16 %v1476
      %v1516 = vunpack.c.l.b16 %v1477
      %v1517 = vunpack.c.h.b16 %v1477
      %v1518 = vunpack.c.l.b16 %v1478
      %v1519 = vunpack.c.l.b16 %v1479
      %v1520 = vunpack.c.h.b16 %v1479
      %v1521 = vunpack.c.l.b16 %v1480
      %v1522 = vunpack.c.l.b16 %v1481
      %v1523 = vunpack.c.h.b16 %v1481
      %v1524 = vunpack.c.l.b16 %v1482
      %v1525 = vpack.c.b16 %v1513, %v1510
      %v1526 = vpack.c.b16 %v1514, %v1511
      %v1527 = vpack.c.b16 %v1515, %v1512
      %v1528 = vpack.c.b16 %v1519, %v1516
      %v1529 = vpack.c.b16 %v1520, %v1517
      %v1530 = vpack.c.b16 %v1521, %v1518
      %v1531 = vpack.c.b16 %v1522, %v1522
      %v1532 = vpack.c.b16 %v1523, %v1523
      %v1533 = vpack.c.b16 %v1524, %v1524
      %v1541 = vsel %vm1276, %v1499, 0
      %v1544 = vsel %vm1280, %v1531, 0
      %v1547 = vsel %vm1280, %v1532, 0
      %v1550 = vsel %vm1280, %v1533, 0
      %1552 = vmatpush.bf16.msra.mxu0 0
      %1553 = vmatpush.bf16.msra.mxu0 0
      %1554 = vmatpush.bf16.msra.mxu0 0
      %1555 = vmatpush.bf16.msra.mxu0 0
      %1556 = vmatpush.bf16.msra.mxu0 0
      %1557 = vmatpush.bf16.msra.mxu0 %v1544
      %1558 = vmatpush.bf16.msra.mxu0 %v1528
      %1559 = vmatpush.bf16.msra.mxu0 %v1525
      %1560 = vmatmul.bf16.gmra.mxu0 %v1541
      %v1561 = vpop.f32.mrf.mxu0
      %v1562 = vadd.f32 %v1488, %v1561
      %v1563 = vpop.f32.mrf.mxu0
      %v1564 = vadd.f32 %v1493, %v1563
      %1565 = vdwg.mxu0
      %1566 = vmatpush.bf16.msra.mxu0 0
      %1567 = vmatpush.bf16.msra.mxu0 0
      %1568 = vmatpush.bf16.msra.mxu0 0
      %1569 = vmatpush.bf16.msra.mxu0 0
      %1570 = vmatpush.bf16.msra.mxu0 0
      %1571 = vmatpush.bf16.msra.mxu0 %v1547
      %1572 = vmatpush.bf16.msra.mxu0 %v1529
      %1573 = vmatpush.bf16.msra.mxu0 %v1526
      %1574 = vmatmul.bf16.gmra.mxu0 %v1541
      %v1575 = vpop.f32.mrf.mxu0
      %v1576 = vadd.f32 %v1488, %v1575
      %v1577 = vpop.f32.mrf.mxu0
      %v1578 = vadd.f32 %v1493, %v1577
      %1579 = vdwg.mxu0
      %1580 = vmatpush.bf16.msra.mxu0 0
      %1581 = vmatpush.bf16.msra.mxu0 0
      %1582 = vmatpush.bf16.msra.mxu0 0
      %1583 = vmatpush.bf16.msra.mxu0 0
      %1584 = vmatpush.bf16.msra.mxu0 0
      %1585 = vmatpush.bf16.msra.mxu0 %v1550
      %1586 = vmatpush.bf16.msra.mxu0 %v1530
      %1587 = vmatpush.bf16.msra.mxu0 %v1527
      %1588 = vmatmul.bf16.gmra.mxu0 %v1541
      %v1589 = vpop.f32.mrf.mxu0
      %v1590 = vadd.f32 %v1488, %v1589
      %v1591 = vpop.f32.mrf.mxu0
      %v1592 = vadd.f32 %v1493, %v1591
      %1593 = vdwg.mxu0
      %v1594 = vld [vmem:[%s8] sm:$0xff]
      %v1595 = vld [vmem:[%s8 + $0x8] sm:$0xf]
      %v1596 = vld [vmem:[%s9] sm:$0xff]
      %v1597 = vld [vmem:[%s9 + $0x8] sm:$0xf]
      %v1598 = vld [vmem:[%s756] sm:$0xff]
      %v1599 = vld [vmem:[%s756 + $0x8] sm:$0xf]
      %v1600 = vmul.f32 %v1562, %v1330
      %v1601 = vmul.f32 %v1576, %v1331
      %v1602 = vmul.f32 %v1590, %v1332
      %v1603 = vsel %vm835, %v1600, 0.0
      %v1604 = vsel %vm835, %v1601, 0.0
      %v1605 = vadd.f32 %v1603, %v1604
      %v1606 = vsel %vm835, %v1602, 0.0
      %v1607 = vadd.f32 %v1605, %v1606
      %1608 = vadd.xlane.f32.xlu0 %v1607
      %v1609 = vpop.xlane.xlu0 %1608
      %v1610 = vrot.slane %v1609, 4
      %v1611 = vadd.f32 %v1609, %v1610
      %v1612 = vrot.slane %v1611, 2
      %v1613 = vadd.f32 %v1611, %v1612
      %v1614 = vrot.slane %v1613, 1
      %v1615 = vadd.f32 %v1613, %v1614
      %s1616 = vtos %v1615
      %v1617 = vmul.f32 %v1600, %v1600
      %v1618 = vmul.f32 %v1601, %v1601
      %v1619 = vmul.f32 %v1602, %v1602
      %v1620 = vsel %vm835, %v1617, 0.0
      %v1621 = vsel %vm835, %v1618, 0.0
      %v1622 = vadd.f32 %v1620, %v1621
      %v1623 = vsel %vm835, %v1619, 0.0
      %v1624 = vadd.f32 %v1622, %v1623
      %1625 = vadd.xlane.f32.xlu0 %v1624
      %v1626 = vpop.xlane.xlu0 %1625
      %v1627 = vrot.slane %v1626, 4
      %v1628 = vadd.f32 %v1626, %v1627
      %v1629 = vrot.slane %v1628, 2
      %v1630 = vadd.f32 %v1628, %v1629
      %v1631 = vrot.slane %v1630, 1
      %v1632 = vadd.f32 %v1630, %v1631
      %s1633 = vtos %v1632
      %s1634 = smul.f32 %s1616, 0.0009765625
      %s1635 = smul.f32 %s1633, 0.0009765625
      %s1636 = smul.f32 %s1634, %s1634
      %s1637 = ssub.f32 %s1635, %s1636
      %s1638 = smax.f32 %s1637, 0.0
      %v1639 = vstv %s1634
      %v1640 = vsub.f32 %v1600, %v1639
      %v1641 = vsub.f32 %v1601, %v1639
      %v1642 = vsub.f32 %v1602, %v1639
      %s1643 = sadd.f32 %s1638, 1e-05
      %v1644 = vstv %s1643
      %v1645 = vrsqrt.pop %v1644
      %v1646 = vmul.f32 %v1645, %v1644
      %v1647 = vmul.f32 %v1646, %v1645
      %v1648 = vmul.f32 0.5, %v1647
      %v1649 = vsub.f32 1.5, %v1648
      %v1650 = vmul.f32 %v1645, %v1649
      %vm1651 = vweird.f32 %v1644
      %vm1652 = vweird.f32 %v1645
      %vm1653 = vmor %vm1651, %vm1652
      %v1654 = vsel %vm1653, %v1645, %v1650
      %s1655 = vtos %v1654
      %v1656 = vstv %s1655
      %v1657 = vmul.f32 %v1640, %v1656
      %v1658 = vmul.f32 %v1641, %v1656
      %v1659 = vmul.f32 %v1642, %v1656
      %1661 = vset.pattern.permute.xlu0 0
      %1662 = vperm.xlu0 %1661, %v1594
      %v1663 = vpop.permute.xlu0 %1662
      %v1665 = vmul.f32 %v1657, %v1663
      %v1666 = vmul.f32 %v1658, %v1663
      %v1667 = vmul.f32 %v1659, %v1663
      %1669 = vset.pattern.permute.xlu0 0
      %1670 = vperm.xlu0 %1669, %v1596
      %v1671 = vpop.permute.xlu0 %1670
      %v1673 = vadd.f32 %v1665, %v1671
      %v1674 = vadd.f32 %v1666, %v1671
      %v1675 = vadd.f32 %v1667, %v1671
      %v1676 = vmax.f32 %v1673, 0.0
      %v1677 = vmax.f32 %v1674, 0.0
      %v1678 = vmax.f32 %v1675, 0.0
      %1680 = vset.pattern.permute.xlu0 0
      %1681 = vperm.xlu0 %1680, %v1598
      %v1682 = vpop.permute.xlu0 %1681
      %v1684 = vmul.f32 %v1676, %v1682
      %v1685 = vmul.f32 %v1677, %v1682
      %v1686 = vmul.f32 %v1678, %v1682
      %v1687 = vadd.f32 %v1684, 0.0
      %v1688 = vadd.f32 %v1685, 0.0
      %v1689 = vadd.f32 %v1686, 0.0
      %v1693 = vrot.slane %v1600, 4
      %v1694 = vrot.slane %v1601, 4
      %v1695 = vrot.slane %v1602, 4
      %v1699 = vsel %vm835, %v1693, 0.0
      %v1700 = vsel %vm835, %v1694, 0.0
      %v1701 = vadd.f32 %v1699, %v1700
      %v1702 = vsel %vm835, %v1695, 0.0
      %v1703 = vadd.f32 %v1701, %v1702
      %1704 = vadd.xlane.f32.xlu0 %v1703
      %v1705 = vpop.xlane.xlu0 %1704
      %v1706 = vrot.slane %v1705, 4
      %v1707 = vadd.f32 %v1705, %v1706
      %v1708 = vrot.slane %v1707, 2
      %v1709 = vadd.f32 %v1707, %v1708
      %v1710 = vrot.slane %v1709, 1
      %v1711 = vadd.f32 %v1709, %v1710
      %s1712 = vtos %v1711
      %v1716 = vrot.slane %v1617, 4
      %v1717 = vrot.slane %v1618, 4
      %v1718 = vrot.slane %v1619, 4
      %v1722 = vsel %vm835, %v1716, 0.0
      %v1723 = vsel %vm835, %v1717, 0.0
      %v1724 = vadd.f32 %v1722, %v1723
      %v1725 = vsel %vm835, %v1718, 0.0
      %v1726 = vadd.f32 %v1724, %v1725
      %1727 = vadd.xlane.f32.xlu0 %v1726
      %v1728 = vpop.xlane.xlu0 %1727
      %v1729 = vrot.slane %v1728, 4
      %v1730 = vadd.f32 %v1728, %v1729
      %v1731 = vrot.slane %v1730, 2
      %v1732 = vadd.f32 %v1730, %v1731
      %v1733 = vrot.slane %v1732, 1
      %v1734 = vadd.f32 %v1732, %v1733
      %s1735 = vtos %v1734
      %s1736 = smul.f32 %s1712, 0.0009765625
      %s1737 = smul.f32 %s1735, 0.0009765625
      %s1738 = smul.f32 %s1736, %s1736
      %s1739 = ssub.f32 %s1737, %s1738
      %s1740 = smax.f32 %s1739, 0.0
      %v1741 = vstv %s1736
      %v1742 = vsub.f32 %v1600, %v1741
      %v1743 = vsub.f32 %v1601, %v1741
      %v1744 = vsub.f32 %v1602, %v1741
      %s1745 = sadd.f32 %s1740, 1e-05
      %v1746 = vstv %s1745
      %v1747 = vrsqrt.pop %v1746
      %v1748 = vmul.f32 %v1747, %v1746
      %v1749 = vmul.f32 %v1748, %v1747
      %v1750 = vmul.f32 0.5, %v1749
      %v1751 = vsub.f32 1.5, %v1750
      %v1752 = vmul.f32 %v1747, %v1751
      %vm1753 = vweird.f32 %v1746
      %vm1754 = vweird.f32 %v1747
      %vm1755 = vmor %vm1753, %vm1754
      %v1756 = vsel %vm1755, %v1747, %v1752
      %s1757 = vtos %v1756
      %v1758 = vstv %s1757
      %v1759 = vmul.f32 %v1742, %v1758
      %v1760 = vmul.f32 %v1743, %v1758
      %v1761 = vmul.f32 %v1744, %v1758
      %v1762 = vmul.f32 %v1759, %v1663
      %v1763 = vmul.f32 %v1760, %v1663
      %v1764 = vmul.f32 %v1761, %v1663
      %v1765 = vadd.f32 %v1762, %v1671
      %v1766 = vadd.f32 %v1763, %v1671
      %v1767 = vadd.f32 %v1764, %v1671
      %v1768 = vmax.f32 %v1765, 0.0
      %v1769 = vmax.f32 %v1766, 0.0
      %v1770 = vmax.f32 %v1767, 0.0
      %v1771 = vmul.f32 %v1768, %v1682
      %v1772 = vmul.f32 %v1769, %v1682
      %v1773 = vmul.f32 %v1770, %v1682
      %v1777 = vrot.slane %v1771, 4
      %v1778 = vrot.slane %v1772, 4
      %v1779 = vrot.slane %v1773, 4
      %v1783 = vadd.f32 %v1687, %v1777
      %v1784 = vadd.f32 %v1688, %v1778
      %v1785 = vadd.f32 %v1689, %v1779
      %v1786 = vmul.f32 %v1564, %v1330
      %v1787 = vmul.f32 %v1578, %v1331
      %v1788 = vmul.f32 %v1592, %v1332
      %v1789 = vsel %vm835, %v1786, 0.0
      %v1790 = vsel %vm835, %v1787, 0.0
      %v1791 = vadd.f32 %v1789, %v1790
      %v1792 = vsel %vm835, %v1788, 0.0
      %v1793 = vadd.f32 %v1791, %v1792
      %1794 = vadd.xlane.f32.xlu0 %v1793
      %v1795 = vpop.xlane.xlu0 %1794
      %v1796 = vrot.slane %v1795, 4
      %v1797 = vadd.f32 %v1795, %v1796
      %v1798 = vrot.slane %v1797, 2
      %v1799 = vadd.f32 %v1797, %v1798
      %v1800 = vrot.slane %v1799, 1
      %v1801 = vadd.f32 %v1799, %v1800
      %s1802 = vtos %v1801
      %v1803 = vmul.f32 %v1786, %v1786
      %v1804 = vmul.f32 %v1787, %v1787
      %v1805 = vmul.f32 %v1788, %v1788
      %v1806 = vsel %vm835, %v1803, 0.0
      %v1807 = vsel %vm835, %v1804, 0.0
      %v1808 = vadd.f32 %v1806, %v1807
      %v1809 = vsel %vm835, %v1805, 0.0
      %v1810 = vadd.f32 %v1808, %v1809
      %1811 = vadd.xlane.f32.xlu0 %v1810
      %v1812 = vpop.xlane.xlu0 %1811
      %v1813 = vrot.slane %v1812, 4
      %v1814 = vadd.f32 %v1812, %v1813
      %v1815 = vrot.slane %v1814, 2
      %v1816 = vadd.f32 %v1814, %v1815
      %v1817 = vrot.slane %v1816, 1
      %v1818 = vadd.f32 %v1816, %v1817
      %s1819 = vtos %v1818
      %s1820 = smul.f32 %s1802, 0.0009765625
      %s1821 = smul.f32 %s1819, 0.0009765625
      %s1822 = smul.f32 %s1820, %s1820
      %s1823 = ssub.f32 %s1821, %s1822
      %s1824 = smax.f32 %s1823, 0.0
      %v1825 = vstv %s1820
      %v1826 = vsub.f32 %v1786, %v1825
      %v1827 = vsub.f32 %v1787, %v1825
      %v1828 = vsub.f32 %v1788, %v1825
      %s1829 = sadd.f32 %s1824, 1e-05
      %v1830 = vstv %s1829
      %v1831 = vrsqrt.pop %v1830
      %v1832 = vmul.f32 %v1831, %v1830
      %v1833 = vmul.f32 %v1832, %v1831
      %v1834 = vmul.f32 0.5, %v1833
      %v1835 = vsub.f32 1.5, %v1834
      %v1836 = vmul.f32 %v1831, %v1835
      %vm1837 = vweird.f32 %v1830
      %vm1838 = vweird.f32 %v1831
      %vm1839 = vmor %vm1837, %vm1838
      %v1840 = vsel %vm1839, %v1831, %v1836
      %s1841 = vtos %v1840
      %v1842 = vstv %s1841
      %v1843 = vmul.f32 %v1826, %v1842
      %v1844 = vmul.f32 %v1827, %v1842
      %v1845 = vmul.f32 %v1828, %v1842
      %1847 = vset.pattern.permute.xlu0 0
      %1848 = vperm.xlu0 %1847, %v1595
      %v1849 = vpop.permute.xlu0 %1848
      %v1851 = vmul.f32 %v1843, %v1849
      %v1852 = vmul.f32 %v1844, %v1849
      %v1853 = vmul.f32 %v1845, %v1849
      %1855 = vset.pattern.permute.xlu0 0
      %1856 = vperm.xlu0 %1855, %v1597
      %v1857 = vpop.permute.xlu0 %1856
      %v1859 = vadd.f32 %v1851, %v1857
      %v1860 = vadd.f32 %v1852, %v1857
      %v1861 = vadd.f32 %v1853, %v1857
      %v1862 = vmax.f32 %v1859, 0.0
      %v1863 = vmax.f32 %v1860, 0.0
      %v1864 = vmax.f32 %v1861, 0.0
      %1866 = vset.pattern.permute.xlu0 0
      %1867 = vperm.xlu0 %1866, %v1599
      %v1868 = vpop.permute.xlu0 %1867
      %v1870 = vmul.f32 %v1862, %v1868
      %v1871 = vmul.f32 %v1863, %v1868
      %v1872 = vmul.f32 %v1864, %v1868
      %v1873 = vadd.f32 %v1783, %v1870
      %v1874 = vadd.f32 %v1784, %v1871
      %v1875 = vadd.f32 %v1785, %v1872
      %v1876 = vld [vmem:[%s760] sm:$0xf]
      %1878 = vset.pattern.permute.xlu0 0
      %1879 = vperm.xlu0 %1878, %v1876
      %v1880 = vpop.permute.xlu0 %1879
      %v1882 = vadd.f32 %v1873, %v1880
      %v1883 = vadd.f32 %v1874, %v1880
      %v1884 = vadd.f32 %v1875, %v1880
      %v1886 = vperm.slane %v778, 0
      %v1887 = vperm.slane %v778, 1
      %v1888 = vperm.slane %v778, 2
      %v1892 = vmul.f32 %v1336, %v1886
      %v1893 = vmul.f32 %v1337, %v1887
      %v1894 = vmul.f32 %v1338, %v1888
      %v1896 = vperm.slane %v777, 0
      %v1897 = vperm.slane %v777, 1
      %v1898 = vperm.slane %v777, 2
      %v1902 = vmul.f32 %v1882, %v1896
      %v1903 = vmul.f32 %v1883, %v1897
      %v1904 = vmul.f32 %v1884, %v1898
      %v1905 = vadd.f32 %v1892, %v1902
      %v1906 = vadd.f32 %v1893, %v1903
      %v1907 = vadd.f32 %v1894, %v1904
      %v1908 = vsel %vm835, %v1905, 0.0
      %v1909 = vsel %vm835, %v1906, 0.0
      %v1910 = vadd.f32 %v1908, %v1909
      %v1911 = vsel %vm835, %v1907, 0.0
      %v1912 = vadd.f32 %v1910, %v1911
      %1913 = vadd.xlane.f32.xlu0 %v1912
      %v1914 = vpop.xlane.xlu0 %1913
      %v1915 = vrot.slane %v1914, 4
      %v1916 = vadd.f32 %v1914, %v1915
      %v1917 = vrot.slane %v1916, 2
      %v1918 = vadd.f32 %v1916, %v1917
      %v1919 = vrot.slane %v1918, 1
      %v1920 = vadd.f32 %v1918, %v1919
      %s1921 = vtos %v1920
      %v1922 = vmul.f32 %v1905, %v1905
      %v1923 = vmul.f32 %v1906, %v1906
      %v1924 = vmul.f32 %v1907, %v1907
      %v1925 = vsel %vm835, %v1922, 0.0
      %v1926 = vsel %vm835, %v1923, 0.0
      %v1927 = vadd.f32 %v1925, %v1926
      %v1928 = vsel %vm835, %v1924, 0.0
      %v1929 = vadd.f32 %v1927, %v1928
      %1930 = vadd.xlane.f32.xlu0 %v1929
      %v1931 = vpop.xlane.xlu0 %1930
      %v1932 = vrot.slane %v1931, 4
      %v1933 = vadd.f32 %v1931, %v1932
      %v1934 = vrot.slane %v1933, 2
      %v1935 = vadd.f32 %v1933, %v1934
      %v1936 = vrot.slane %v1935, 1
      %v1937 = vadd.f32 %v1935, %v1936
      %s1938 = vtos %v1937
      %v1939 = vrcp.pop 1024.0
      %v1940 = vmul.f32 1024.0, %v1939
      %v1941 = vsub.f32 1.0, %v1940
      %v1942 = vmul.f32 %v1939, %v1941
      %v1943 = vadd.f32 %v1939, %v1942
      %vm1944 = vweird.f32 %v1939
      %v1945 = vsel %vm1944, %v1939, %v1943
      %s1946 = vtos %v1945
      %s1947 = smul.f32 %s1921, %s1946
      %s1948 = smul.f32 %s1947, 1024.0
      %s1949 = smul.f32 %s1948, %s1947
      %s1950 = ssub.f32 %s1938, %s1949
      %v1951 = vrcp.pop 1023.0
      %v1952 = vmul.f32 1023.0, %v1951
      %v1953 = vsub.f32 1.0, %v1952
      %v1954 = vmul.f32 %v1951, %v1953
      %v1955 = vadd.f32 %v1951, %v1954
      %vm1956 = vweird.f32 %v1951
      %v1957 = vsel %vm1956, %v1951, %v1955
      %s1958 = vtos %v1957
      %s1959 = smul.f32 %s1950, %s1958
      %s1960 = smax.f32 %s1959, 0.0
      %v1961 = vstv %s1947
      %v1962 = vsub.f32 %v1905, %v1961
      %v1963 = vsub.f32 %v1906, %v1961
      %v1964 = vsub.f32 %v1907, %v1961
      %v1965 = vstv %s1960
      %v1966 = vrsqrt.pop %v1965
      %v1967 = vmul.f32 %v1966, %v1965
      %v1968 = vmul.f32 %v1967, %v1966
      %v1969 = vmul.f32 0.5, %v1968
      %v1970 = vsub.f32 1.5, %v1969
      %v1971 = vmul.f32 %v1966, %v1970
      %v1972 = vmul.f32 %v1965, %v1971
      %vm1973 = vcmp.eq.f32.partialorder %v1965, inf
      %v1974 = vsel %vm1973, %v1965, %v1972
      %vm1975 = vcmp.eq.f32.partialorder %v1965, 0.0
      %v1976 = vand.u32 %v1965, 2147483648
      %v1977 = vsel %vm1975, %v1976, %v1974
      %s1978 = vtos %v1977
      %s1979 = sadd.f32 %s1978, 1e-05
      %v1980 = vstv %s1979
      %v1981 = vrcp.pop %v1980
      %v1982 = vmul.f32 %v1980, %v1981
      %v1983 = vsub.f32 1.0, %v1982
      %v1984 = vmul.f32 %v1981, %v1983
      %v1985 = vadd.f32 %v1981, %v1984
      %vm1986 = vweird.f32 %v1980
      %vm1987 = vweird.f32 %v1981
      %vm1988 = vmor %vm1986, %vm1987
      %v1989 = vsel %vm1988, %v1981, %v1985
      %v1990 = vand.u32 2147483647, %v1980
      %vm1991 = vcmp.eq.f32.partialorder %v1990, 8.507059e+37
      %v1992 = vand.u32 %v1980, 2147483648
      %v1993 = vor.u32 1.1754944e-38, %v1992
      %v1994 = vsel %vm1991, %v1993, %v1989
      %v1995 = vmul.f32 %v1962, %v1994
      %v1996 = vmul.f32 %v1963, %v1994
      %v1997 = vmul.f32 %v1964, %v1994
      %v1998 = vld [vmem:[%s20] sm:$0xf]
      %2000 = vset.pattern.permute.xlu0 0
      %2001 = vperm.xlu0 %2000, %v1998
      %v2002 = vpop.permute.xlu0 %2001
      %v2004 = vmul.f32 %v1995, %v2002
      %v2005 = vmul.f32 %v1996, %v2002
      %v2006 = vmul.f32 %v1997, %v2002
      %v2007 = vld [vmem:[%s21] sm:$0xf]
      %2009 = vset.pattern.permute.xlu0 0
      %2010 = vperm.xlu0 %2009, %v2007
      %v2011 = vpop.permute.xlu0 %2010
      %v2013 = vadd.f32 %v2004, %v2011
      %v2014 = vadd.f32 %v2005, %v2011
      %v2015 = vadd.f32 %v2006, %v2011
      %vm2016 = vcmp.ge.f32.partialorder %v2013, 0.0
      %vm2017 = vcmp.ge.f32.partialorder %v2014, 0.0
      %vm2018 = vcmp.ge.f32.partialorder %v2015, 0.0
      %v2019 = vmul.f32 %v2013, 0.2
      %v2020 = vmul.f32 %v2014, 0.2
      %v2021 = vmul.f32 %v2015, 0.2
      %v2022 = vsel %vm2016, %v2013, %v2019
      %v2023 = vsel %vm2017, %v2014, %v2020
      %v2024 = vsel %vm2018, %v2015, %v2021
      %2025 = vrot.lane.b32.xlu0 %v2022, 92
      %v2026 = vpop.permute.xlu0 %2025
      %2027 = vrot.lane.b32.xlu0 %v2023, 92
      %v2028 = vpop.permute.xlu0 %2027
      %2029 = vrot.lane.b32.xlu0 %v2024, 92
      %v2030 = vpop.permute.xlu0 %2029
      %v2031 = vsel %vm802, %v2028, %v2030
      %v2032 = vsel %vm802, %v2026, %v2028
      %v2033 = vsel %vm802, %v2030, %v2026
      %v2034 = vsub.f32 %v2032, %v2022
      %v2035 = vsub.f32 %v2031, %v2023
      %v2036 = vsub.f32 %v2033, %v2024
      %v2037 = vmul.f32 %v826, %v2034
      %v2038 = vmul.f32 %v827, %v2035
      %v2039 = vmul.f32 %v828, %v2036
      %v2040 = vadd.f32 %v2022, %v2037
      %v2041 = vadd.f32 %v2023, %v2038
      %v2042 = vadd.f32 %v2024, %v2039
      %2043 = vrot.lane.b32.xlu0 %v2040, 36
      %v2044 = vpop.permute.xlu0 %2043
      %2045 = vrot.lane.b32.xlu0 %v2041, 36
      %v2046 = vpop.permute.xlu0 %2045
      %2047 = vrot.lane.b32.xlu0 %v2042, 36
      %v2048 = vpop.permute.xlu0 %2047
      %v2049 = vsel %vm857, %v2046, %v2048
      %v2050 = vsel %vm857, %v2044, %v2046
      %v2051 = vsel %vm857, %v2048, %v2044
      %v2052 = vsub.f32 %v2051, %v2040
      %v2053 = vsub.f32 %v2050, %v2041
      %v2054 = vsub.f32 %v2049, %v2042
      %v2055 = vmul.f32 %v879, %v2052
      %v2056 = vmul.f32 %v880, %v2053
      %v2057 = vmul.f32 %v881, %v2054
      %v2058 = vadd.f32 %v2040, %v2055
      %v2059 = vadd.f32 %v2041, %v2056
      %v2060 = vadd.f32 %v2042, %v2057
      %2061 = vrot.lane.b32.xlu0 %v2058, 126
      %v2062 = vpop.permute.xlu0 %2061
      %2063 = vrot.lane.b32.xlu0 %v2059, 126
      %v2064 = vpop.permute.xlu0 %2063
      %2065 = vrot.lane.b32.xlu0 %v2060, 126
      %v2066 = vpop.permute.xlu0 %2065
      %v2067 = vsel %vm909, %v2064, %v2066
      %v2068 = vsel %vm909, %v2062, %v2064
      %v2069 = vsel %vm909, %v2066, %v2062
      %v2070 = vsub.f32 %v2068, %v2058
      %v2071 = vsub.f32 %v2067, %v2059
      %v2072 = vsub.f32 %v2069, %v2060
      %v2073 = vmul.f32 %v931, %v2070
      %v2074 = vmul.f32 %v932, %v2071
      %v2075 = vmul.f32 %v933, %v2072
      %v2076 = vadd.f32 %v2058, %v2073
      %v2077 = vadd.f32 %v2059, %v2074
      %v2078 = vadd.f32 %v2060, %v2075
      %2079 = vrot.lane.b32.xlu0 %v2076, 2
      %v2080 = vpop.permute.xlu0 %2079
      %2081 = vrot.lane.b32.xlu0 %v2077, 2
      %v2082 = vpop.permute.xlu0 %2081
      %2083 = vrot.lane.b32.xlu0 %v2078, 2
      %v2084 = vpop.permute.xlu0 %2083
      %v2085 = vsel %vm961, %v2082, %v2084
      %v2086 = vsel %vm961, %v2080, %v2082
      %v2087 = vsel %vm961, %v2084, %v2080
      %v2088 = vsub.f32 %v2087, %v2076
      %v2089 = vsub.f32 %v2086, %v2077
      %v2090 = vsub.f32 %v2085, %v2078
      %v2091 = vmul.f32 %v983, %v2088
      %v2092 = vmul.f32 %v984, %v2089
      %v2093 = vmul.f32 %v985, %v2090
      %v2094 = vadd.f32 %v2076, %v2091
      %v2095 = vadd.f32 %v2077, %v2092
      %v2096 = vadd.f32 %v2078, %v2093
      %2097 = vrot.lane.b32.xlu0 %v2094, 19
      %v2098 = vpop.permute.xlu0 %2097
      %2099 = vrot.lane.b32.xlu0 %v2095, 19
      %v2100 = vpop.permute.xlu0 %2099
      %2101 = vrot.lane.b32.xlu0 %v2096, 19
      %v2102 = vpop.permute.xlu0 %2101
      %v2103 = vsel %vm1013, %v2100, %v2102
      %v2104 = vsel %vm1013, %v2098, %v2100
      %v2105 = vsel %vm1013, %v2102, %v2098
      %v2106 = vpack.c.bf16 %v2104, %v2105
      %v2107 = vpack.c.bf16 %v2103, %v2103
      %2108 = vst [vmem:[#allocation2] sm:$0x33] %v2106
      %2109 = vst [vmem:[#allocation2 + $0x8] sm:$0x3] %v2107
      %2110 = vrot.lane.b32.xlu0 %v2094, 18
      %v2111 = vpop.permute.xlu0 %2110
      %2112 = vrot.lane.b32.xlu0 %v2095, 18
      %v2113 = vpop.permute.xlu0 %2112
      %2114 = vrot.lane.b32.xlu0 %v2096, 18
      %v2115 = vpop.permute.xlu0 %2114
      %v2116 = vsel %vm1036, %v2113, %v2115
      %v2117 = vsel %vm1036, %v2111, %v2113
      %v2118 = vsel %vm1036, %v2115, %v2111
      %v2119 = vpack.c.bf16 %v2117, %v2118
      %v2120 = vpack.c.bf16 %v2116, %v2116
      %v2123 = vrot.slane %v2119, 6
      %v2124 = vrot.slane %v2120, 6
      %2127 = vst [vmem:[#allocation2] sm:$0xcc] %v2123
      %2128 = vst [vmem:[#allocation2 + $0x8] sm:$0xc] %v2124
      %2129 = vrot.lane.b32.xlu0 %v2094, 17
      %v2130 = vpop.permute.xlu0 %2129
      %2131 = vrot.lane.b32.xlu0 %v2095, 17
      %v2132 = vpop.permute.xlu0 %2131
      %2133 = vrot.lane.b32.xlu0 %v2096, 17
      %v2134 = vpop.permute.xlu0 %2133
      %v2135 = vsel %vm1065, %v2132, %v2134
      %v2136 = vsel %vm1065, %v2130, %v2132
      %v2137 = vsel %vm1065, %v2134, %v2130
      %v2138 = vpack.c.bf16 %v2136, %v2137
      %v2139 = vpack.c.bf16 %v2135, %v2135
      %2140 = vst [vmem:[#allocation2 + $0xc] sm:$0x33] %v2138
      %2141 = vst [vmem:[#allocation2 + $0x14] sm:$0x3] %v2139
      %2142 = vrot.lane.b32.xlu0 %v2094, 1
      %v2143 = vpop.permute.xlu0 %2142
      %2144 = vrot.lane.b32.xlu0 %v2095, 1
      %v2145 = vpop.permute.xlu0 %2144
      %2146 = vrot.lane.b32.xlu0 %v2096, 1
      %v2147 = vpop.permute.xlu0 %2146
      %v2148 = vsel %vm1088, %v2145, %v2147
      %v2149 = vsel %vm1088, %v2143, %v2145
      %v2150 = vsel %vm1088, %v2147, %v2143
      %v2151 = vpack.c.bf16 %v2149, %v2150
      %v2152 = vpack.c.bf16 %v2148, %v2148
      %v2155 = vrot.slane %v2151, 6
      %v2156 = vrot.slane %v2152, 6
      %2159 = vst [vmem:[#allocation2 + $0xc] sm:$0xcc] %v2155
      %2160 = vst [vmem:[#allocation2 + $0x14] sm:$0xc] %v2156
      %v2161 = vpack.c.bf16 %v2095, %v2094
      %v2162 = vpack.c.bf16 %v2096, %v2096
      %2163 = vst [vmem:[#allocation2 + $0x18] sm:$0x33] %v2161
      %2164 = vst [vmem:[#allocation2 + $0x20] sm:$0x3] %v2162
      %2165 = vrot.lane.b32.xlu0 %v2094, 127
      %v2166 = vpop.permute.xlu0 %2165
      %2167 = vrot.lane.b32.xlu0 %v2095, 127
      %v2168 = vpop.permute.xlu0 %2167
      %2169 = vrot.lane.b32.xlu0 %v2096, 127
      %v2170 = vpop.permute.xlu0 %2169
      %v2171 = vsel %vm1130, %v2168, %v2170
      %v2172 = vsel %vm1130, %v2166, %v2168
      %v2173 = vsel %vm1130, %v2170, %v2166
      %v2174 = vpack.c.bf16 %v2171, %v2172
      %v2175 = vpack.c.bf16 %v2173, %v2173
      %v2178 = vrot.slane %v2174, 6
      %v2179 = vrot.slane %v2175, 6
      %2182 = vst [vmem:[#allocation2 + $0x18] sm:$0xcc] %v2178
      %2183 = vst [vmem:[#allocation2 + $0x20] sm:$0xc] %v2179
      %2184 = vrot.lane.b32.xlu0 %v2094, 111
      %v2185 = vpop.permute.xlu0 %2184
      %2186 = vrot.lane.b32.xlu0 %v2095, 111
      %v2187 = vpop.permute.xlu0 %2186
      %2188 = vrot.lane.b32.xlu0 %v2096, 111
      %v2189 = vpop.permute.xlu0 %2188
      %v2190 = vsel %vm1159, %v2187, %v2189
      %v2191 = vsel %vm1159, %v2185, %v2187
      %v2192 = vsel %vm1159, %v2189, %v2185
      %v2193 = vpack.c.bf16 %v2190, %v2191
      %v2194 = vpack.c.bf16 %v2192, %v2192
      %2195 = vst [vmem:[#allocation2 + $0x24] sm:$0x33] %v2193
      %2196 = vst [vmem:[#allocation2 + $0x2c] sm:$0x3] %v2194
      %2197 = vrot.lane.b32.xlu0 %v2094, 110
      %v2198 = vpop.permute.xlu0 %2197
      %2199 = vrot.lane.b32.xlu0 %v2095, 110
      %v2200 = vpop.permute.xlu0 %2199
      %2201 = vrot.lane.b32.xlu0 %v2096, 110
      %v2202 = vpop.permute.xlu0 %2201
      %v2203 = vsel %vm1182, %v2200, %v2202
      %v2204 = vsel %vm1182, %v2198, %v2200
      %v2205 = vsel %vm1182, %v2202, %v2198
      %v2206 = vpack.c.bf16 %v2203, %v2204
      %v2207 = vpack.c.bf16 %v2205, %v2205
      %v2210 = vrot.slane %v2206, 6
      %v2211 = vrot.slane %v2207, 6
      %2214 = vst [vmem:[#allocation2 + $0x24] sm:$0xcc] %v2210
      %2215 = vst [vmem:[#allocation2 + $0x2c] sm:$0xc] %v2211
      %2216 = vrot.lane.b32.xlu0 %v2094, 109
      %v2217 = vpop.permute.xlu0 %2216
      %2218 = vrot.lane.b32.xlu0 %v2095, 109
      %v2219 = vpop.permute.xlu0 %2218
      %2220 = vrot.lane.b32.xlu0 %v2096, 109
      %v2221 = vpop.permute.xlu0 %2220
      %v2222 = vsel %vm1211, %v2219, %v2221
      %v2223 = vsel %vm1211, %v2217, %v2219
      %v2224 = vsel %vm1211, %v2221, %v2217
      %v2225 = vpack.c.bf16 %v2222, %v2223
      %v2226 = vpack.c.bf16 %v2224, %v2224
      %2227 = vst [vmem:[#allocation2 + $0x30] sm:$0x33] %v2225
      %2228 = vst [vmem:[#allocation2 + $0x38] sm:$0x3] %v2226
      %v2229 = vld [vmem:[%s12] sm:$0x3]
      %v2230 = vld [vmem:[#allocation2] sm:$0xff]
      %v2231 = vld [vmem:[#allocation2 + $0x8] sm:$0xf]
      %v2232 = vld [vmem:[#allocation2 + $0xc] sm:$0xff]
      %v2233 = vld [vmem:[#allocation2 + $0x14] sm:$0xf]
      %v2234 = vld [vmem:[#allocation2 + $0x18] sm:$0xff]
      %v2235 = vld [vmem:[#allocation2 + $0x20] sm:$0xf]
      %v2236 = vld [vmem:[#allocation2 + $0x24] sm:$0xff]
      %v2237 = vld [vmem:[#allocation2 + $0x2c] sm:$0xf]
      %v2238 = vld [vmem:[#allocation2 + $0x30] sm:$0x33]
      %v2239 = vld [vmem:[#allocation2 + $0x38] sm:$0x3]
      %v2240 = vld [vmem:[%s13] sm:$0xf]
      %2242 = vset.pattern.permute.xlu0 0
      %2243 = vperm.xlu0 %2242, %v2240
      %v2244 = vpop.permute.xlu0 %2243
      %v2256 = vunpack.c.l.b16 %v2230
      %v2257 = vunpack.c.h.b16 %v2230
      %v2258 = vunpack.c.l.b16 %v2231
      %v2259 = vunpack.c.l.b16 %v2232
      %v2260 = vunpack.c.h.b16 %v2232
      %v2261 = vunpack.c.l.b16 %v2233
      %v2262 = vunpack.c.l.b16 %v2234
      %v2263 = vunpack.c.h.b16 %v2234
      %v2264 = vunpack.c.l.b16 %v2235
      %v2265 = vunpack.c.l.b16 %v2236
      %v2266 = vunpack.c.h.b16 %v2236
      %v2267 = vunpack.c.l.b16 %v2237
      %v2268 = vunpack.c.l.b16 %v2238
      %v2269 = vunpack.c.h.b16 %v2238
      %v2270 = vunpack.c.l.b16 %v2239
      %v2271 = vpack.c.b16 %v2259, %v2256
      %v2272 = vpack.c.b16 %v2260, %v2257
      %v2273 = vpack.c.b16 %v2261, %v2258
      %v2274 = vpack.c.b16 %v2265, %v2262
      %v2275 = vpack.c.b16 %v2266, %v2263
      %v2276 = vpack.c.b16 %v2267, %v2264
      %v2277 = vpack.c.b16 %v2268, %v2268
      %v2278 = vpack.c.b16 %v2269, %v2269
      %v2279 = vpack.c.b16 %v2270, %v2270
      %v2287 = vsel %vm1276, %v2229, 0
      %v2290 = vsel %vm1280, %v2277, 0
      %v2293 = vsel %vm1280, %v2278, 0
      %v2296 = vsel %vm1280, %v2279, 0
      %2298 = vmatpush.bf16.msra.mxu0 0
      %2299 = vmatpush.bf16.msra.mxu0 0
      %2300 = vmatpush.bf16.msra.mxu0 0
      %2301 = vmatpush.bf16.msra.mxu0 0
      %2302 = vmatpush.bf16.msra.mxu0 0
      %2303 = vmatpush.bf16.msra.mxu0 %v2290
      %2304 = vmatpush.bf16.msra.mxu0 %v2274
      %2305 = vmatpush.bf16.msra.mxu0 %v2271
      %2306 = vmatmul.bf16.gmra.mxu0 %v2287
      %v2307 = vpop.f32.mrf.mxu0
      %v2308 = vadd.f32 %v2244, %v2307
      %v2309 = vpop.f32.mrf.mxu0
      %2310 = vdwg.mxu0
      %2311 = vmatpush.bf16.msra.mxu0 0
      %2312 = vmatpush.bf16.msra.mxu0 0
      %2313 = vmatpush.bf16.msra.mxu0 0
      %2314 = vmatpush.bf16.msra.mxu0 0
      %2315 = vmatpush.bf16.msra.mxu0 0
      %2316 = vmatpush.bf16.msra.mxu0 %v2293
      %2317 = vmatpush.bf16.msra.mxu0 %v2275
      %2318 = vmatpush.bf16.msra.mxu0 %v2272
      %2319 = vmatmul.bf16.gmra.mxu0 %v2287
      %v2320 = vpop.f32.mrf.mxu0
      %v2321 = vadd.f32 %v2244, %v2320
      %v2322 = vpop.f32.mrf.mxu0
      %2323 = vdwg.mxu0
      %2324 = vmatpush.bf16.msra.mxu0 0
      %2325 = vmatpush.bf16.msra.mxu0 0
      %2326 = vmatpush.bf16.msra.mxu0 0
      %2327 = vmatpush.bf16.msra.mxu0 0
      %2328 = vmatpush.bf16.msra.mxu0 0
      %2329 = vmatpush.bf16.msra.mxu0 %v2296
      %2330 = vmatpush.bf16.msra.mxu0 %v2276
      %2331 = vmatpush.bf16.msra.mxu0 %v2273
      %2332 = vmatmul.bf16.gmra.mxu0 %v2287
      %v2333 = vpop.f32.mrf.mxu0
      %v2334 = vadd.f32 %v2244, %v2333
      %v2335 = vpop.f32.mrf.mxu0
      %2336 = vdwg.mxu0
      %v2337 = vmul.f32 %v2308, %v1330
      %v2338 = vmul.f32 %v2321, %v1331
      %v2339 = vmul.f32 %v2334, %v1332
      %2340 = vrot.lane.b32.xlu0 %v2337, 19
      %v2341 = vpop.permute.xlu0 %2340
      %2342 = vrot.lane.b32.xlu0 %v2338, 19
      %v2343 = vpop.permute.xlu0 %2342
      %2344 = vrot.lane.b32.xlu0 %v2339, 19
      %v2345 = vpop.permute.xlu0 %2344
      %v2346 = vsel %vm1013, %v2343, %v2345
      %v2347 = vsel %vm1013, %v2341, %v2343
      %v2348 = vsel %vm1013, %v2345, %v2341
      %v2349 = vpack.c.bf16 %v2347, %v2348
      %v2350 = vpack.c.bf16 %v2346, %v2346
      %2351 = vst [vmem:[#allocation2] sm:$0x33] %v2349
      %2352 = vst [vmem:[#allocation2 + $0x8] sm:$0x3] %v2350
      %2353 = vrot.lane.b32.xlu0 %v2337, 18
      %v2354 = vpop.permute.xlu0 %2353
      %2355 = vrot.lane.b32.xlu0 %v2338, 18
      %v2356 = vpop.permute.xlu0 %2355
      %2357 = vrot.lane.b32.xlu0 %v2339, 18
      %v2358 = vpop.permute.xlu0 %2357
      %v2359 = vsel %vm1036, %v2356, %v2358
      %v2360 = vsel %vm1036, %v2354, %v2356
      %v2361 = vsel %vm1036, %v2358, %v2354
      %v2362 = vpack.c.bf16 %v2360, %v2361
      %v2363 = vpack.c.bf16 %v2359, %v2359
      %v2366 = vrot.slane %v2362, 6
      %v2367 = vrot.slane %v2363, 6
      %2370 = vst [vmem:[#allocation2] sm:$0xcc] %v2366
      %2371 = vst [vmem:[#allocation2 + $0x8] sm:$0xc] %v2367
      %2372 = vrot.lane.b32.xlu0 %v2337, 17
      %v2373 = vpop.permute.xlu0 %2372
      %2374 = vrot.lane.b32.xlu0 %v2338, 17
      %v2375 = vpop.permute.xlu0 %2374
      %2376 = vrot.lane.b32.xlu0 %v2339, 17
      %v2377 = vpop.permute.xlu0 %2376
      %v2378 = vsel %vm1065, %v2375, %v2377
      %v2379 = vsel %vm1065, %v2373, %v2375
      %v2380 = vsel %vm1065, %v2377, %v2373
      %v2381 = vpack.c.bf16 %v2379, %v2380
      %v2382 = vpack.c.bf16 %v2378, %v2378
      %2383 = vst [vmem:[#allocation2 + $0xc] sm:$0x33] %v2381
      %2384 = vst [vmem:[#allocation2 + $0x14] sm:$0x3] %v2382
      %2385 = vrot.lane.b32.xlu0 %v2337, 1
      %v2386 = vpop.permute.xlu0 %2385
      %2387 = vrot.lane.b32.xlu0 %v2338, 1
      %v2388 = vpop.permute.xlu0 %2387
      %2389 = vrot.lane.b32.xlu0 %v2339, 1
      %v2390 = vpop.permute.xlu0 %2389
      %v2391 = vsel %vm1088, %v2388, %v2390
      %v2392 = vsel %vm1088, %v2386, %v2388
      %v2393 = vsel %vm1088, %v2390, %v2386
      %v2394 = vpack.c.bf16 %v2392, %v2393
      %v2395 = vpack.c.bf16 %v2391, %v2391
      %v2398 = vrot.slane %v2394, 6
      %v2399 = vrot.slane %v2395, 6
      %2402 = vst [vmem:[#allocation2 + $0xc] sm:$0xcc] %v2398
      %2403 = vst [vmem:[#allocation2 + $0x14] sm:$0xc] %v2399
      %v2404 = vpack.c.bf16 %v2338, %v2337
      %v2405 = vpack.c.bf16 %v2339, %v2339
      %2406 = vst [vmem:[#allocation2 + $0x18] sm:$0x33] %v2404
      %2407 = vst [vmem:[#allocation2 + $0x20] sm:$0x3] %v2405
      %2408 = vrot.lane.b32.xlu0 %v2337, 127
      %v2409 = vpop.permute.xlu0 %2408
      %2410 = vrot.lane.b32.xlu0 %v2338, 127
      %v2411 = vpop.permute.xlu0 %2410
      %2412 = vrot.lane.b32.xlu0 %v2339, 127
      %v2413 = vpop.permute.xlu0 %2412
      %v2414 = vsel %vm1130, %v2411, %v2413
      %v2415 = vsel %vm1130, %v2409, %v2411
      %v2416 = vsel %vm1130, %v2413, %v2409
      %v2417 = vpack.c.bf16 %v2414, %v2415
      %v2418 = vpack.c.bf16 %v2416, %v2416
      %v2421 = vrot.slane %v2417, 6
      %v2422 = vrot.slane %v2418, 6
      %2425 = vst [vmem:[#allocation2 + $0x18] sm:$0xcc] %v2421
      %2426 = vst [vmem:[#allocation2 + $0x20] sm:$0xc] %v2422
      %2427 = vrot.lane.b32.xlu0 %v2337, 111
      %v2428 = vpop.permute.xlu0 %2427
      %2429 = vrot.lane.b32.xlu0 %v2338, 111
      %v2430 = vpop.permute.xlu0 %2429
      %2431 = vrot.lane.b32.xlu0 %v2339, 111
      %v2432 = vpop.permute.xlu0 %2431
      %v2433 = vsel %vm1159, %v2430, %v2432
      %v2434 = vsel %vm1159, %v2428, %v2430
      %v2435 = vsel %vm1159, %v2432, %v2428
      %v2436 = vpack.c.bf16 %v2433, %v2434
      %v2437 = vpack.c.bf16 %v2435, %v2435
      %2438 = vst [vmem:[#allocation2 + $0x24] sm:$0x33] %v2436
      %2439 = vst [vmem:[#allocation2 + $0x2c] sm:$0x3] %v2437
      %2440 = vrot.lane.b32.xlu0 %v2337, 110
      %v2441 = vpop.permute.xlu0 %2440
      %2442 = vrot.lane.b32.xlu0 %v2338, 110
      %v2443 = vpop.permute.xlu0 %2442
      %2444 = vrot.lane.b32.xlu0 %v2339, 110
      %v2445 = vpop.permute.xlu0 %2444
      %v2446 = vsel %vm1182, %v2443, %v2445
      %v2447 = vsel %vm1182, %v2441, %v2443
      %v2448 = vsel %vm1182, %v2445, %v2441
      %v2449 = vpack.c.bf16 %v2446, %v2447
      %v2450 = vpack.c.bf16 %v2448, %v2448
      %v2453 = vrot.slane %v2449, 6
      %v2454 = vrot.slane %v2450, 6
      %2457 = vst [vmem:[#allocation2 + $0x24] sm:$0xcc] %v2453
      %2458 = vst [vmem:[#allocation2 + $0x2c] sm:$0xc] %v2454
      %2459 = vrot.lane.b32.xlu0 %v2337, 109
      %v2460 = vpop.permute.xlu0 %2459
      %2461 = vrot.lane.b32.xlu0 %v2338, 109
      %v2462 = vpop.permute.xlu0 %2461
      %2463 = vrot.lane.b32.xlu0 %v2339, 109
      %v2464 = vpop.permute.xlu0 %2463
      %v2465 = vsel %vm1211, %v2462, %v2464
      %v2466 = vsel %vm1211, %v2460, %v2462
      %v2467 = vsel %vm1211, %v2464, %v2460
      %v2468 = vpack.c.bf16 %v2465, %v2466
      %v2469 = vpack.c.bf16 %v2467, %v2467
      %2470 = vst [vmem:[#allocation2 + $0x30] sm:$0x33] %v2468
      %2471 = vst [vmem:[#allocation2 + $0x38] sm:$0x3] %v2469
      %v2472 = vld [vmem:[%s14] sm:$0xf]
      %v2473 = vld [vmem:[%s14 + $0x4] sm:$0x3]
      %v2474 = vld [vmem:[#allocation2] sm:$0xff]
      %v2475 = vld [vmem:[#allocation2 + $0x8] sm:$0xf]
      %v2476 = vld [vmem:[#allocation2 + $0xc] sm:$0xff]
      %v2477 = vld [vmem:[#allocation2 + $0x14] sm:$0xf]
      %v2478 = vld [vmem:[#allocation2 + $0x18] sm:$0xff]
      %v2479 = vld [vmem:[#allocation2 + $0x20] sm:$0xf]
      %v2480 = vld [vmem:[#allocation2 + $0x24] sm:$0xff]
      %v2481 = vld [vmem:[#allocation2 + $0x2c] sm:$0xf]
      %v2482 = vld [vmem:[#allocation2 + $0x30] sm:$0x33]
      %v2483 = vld [vmem:[#allocation2 + $0x38] sm:$0x3]
      %v2484 = vld [vmem:[%s15] sm:$0xff]
      %v2485 = vld [vmem:[%s15 + $0x8] sm:$0xf]
      %2487 = vset.pattern.permute.xlu0 0
      %2488 = vperm.xlu0 %2487, %v2484
      %v2489 = vpop.permute.xlu0 %2488
      %2492 = vset.pattern.permute.xlu0 0
      %2493 = vperm.xlu0 %2492, %v2485
      %v2494 = vpop.permute.xlu0 %2493
      %v2498 = vunpack.c.l.b16 %v2472
      %v2499 = vunpack.c.l.b16 %v2473
      %v2500 = vpack.c.b16 %v2499, %v2498
      %v2511 = vunpack.c.l.b16 %v2474
      %v2512 = vunpack.c.h.b16 %v2474
      %v2513 = vunpack.c.l.b16 %v2475
      %v2514 = vunpack.c.l.b16 %v2476
      %v2515 = vunpack.c.h.b16 %v2476
      %v2516 = vunpack.c.l.b16 %v2477
      %v2517 = vunpack.c.l.b16 %v2478
      %v2518 = vunpack.c.h.b16 %v2478
      %v2519 = vunpack.c.l.b16 %v2479
      %v2520 = vunpack.c.l.b16 %v2480
      %v2521 = vunpack.c.h.b16 %v2480
      %v2522 = vunpack.c.l.b16 %v2481
      %v2523 = vunpack.c.l.b16 %v2482
      %v2524 = vunpack.c.h.b16 %v2482
      %v2525 = vunpack.c.l.b16 %v2483
      %v2526 = vpack.c.b16 %v2514, %v2511
      %v2527 = vpack.c.b16 %v2515, %v2512
      %v2528 = vpack.c.b16 %v2516, %v2513
      %v2529 = vpack.c.b16 %v2520, %v2517
      %v2530 = vpack.c.b16 %v2521, %v2518
      %v2531 = vpack.c.b16 %v2522, %v2519
      %v2532 = vpack.c.b16 %v2523, %v2523
      %v2533 = vpack.c.b16 %v2524, %v2524
      %v2534 = vpack.c.b16 %v2525, %v2525
      %v2542 = vsel %vm1276, %v2500, 0
      %v2545 = vsel %vm1280, %v2532, 0
      %v2548 = vsel %vm1280, %v2533, 0
      %v2551 = vsel %vm1280, %v2534, 0
      %2553 = vmatpush.bf16.msra.mxu0 0
      %2554 = vmatpush.bf16.msra.mxu0 0
      %2555 = vmatpush.bf16.msra.mxu0 0
      %2556 = vmatpush.bf16.msra.mxu0 0
      %2557 = vmatpush.bf16.msra.mxu0 0
      %2558 = vmatpush.bf16.msra.mxu0 %v2545
      %2559 = vmatpush.bf16.msra.mxu0 %v2529
      %2560 = vmatpush.bf16.msra.mxu0 %v2526
      %2561 = vmatmul.bf16.gmra.mxu0 %v2542
      %v2562 = vpop.f32.mrf.mxu0
      %v2563 = vadd.f32 %v2489, %v2562
      %v2564 = vpop.f32.mrf.mxu0
      %v2565 = vadd.f32 %v2494, %v2564
      %2566 = vdwg.mxu0
      %2567 = vmatpush.bf16.msra.mxu0 0
      %2568 = vmatpush.bf16.msra.mxu0 0
      %2569 = vmatpush.bf16.msra.mxu0 0
      %2570 = vmatpush.bf16.msra.mxu0 0
      %2571 = vmatpush.bf16.msra.mxu0 0
      %2572 = vmatpush.bf16.msra.mxu0 %v2548
      %2573 = vmatpush.bf16.msra.mxu0 %v2530
      %2574 = vmatpush.bf16.msra.mxu0 %v2527
      %2575 = vmatmul.bf16.gmra.mxu0 %v2542
      %v2576 = vpop.f32.mrf.mxu0
      %v2577 = vadd.f32 %v2489, %v2576
      %v2578 = vpop.f32.mrf.mxu0
      %v2579 = vadd.f32 %v2494, %v2578
      %2580 = vdwg.mxu0
      %2581 = vmatpush.bf16.msra.mxu0 0
      %2582 = vmatpush.bf16.msra.mxu0 0
      %2583 = vmatpush.bf16.msra.mxu0 0
      %2584 = vmatpush.bf16.msra.mxu0 0
      %2585 = vmatpush.bf16.msra.mxu0 0
      %2586 = vmatpush.bf16.msra.mxu0 %v2551
      %2587 = vmatpush.bf16.msra.mxu0 %v2531
      %2588 = vmatpush.bf16.msra.mxu0 %v2528
      %2589 = vmatmul.bf16.gmra.mxu0 %v2542
      %v2590 = vpop.f32.mrf.mxu0
      %v2591 = vadd.f32 %v2489, %v2590
      %v2592 = vpop.f32.mrf.mxu0
      %v2593 = vadd.f32 %v2494, %v2592
      %2594 = vdwg.mxu0
      %v2595 = vld [vmem:[%s16] sm:$0xff]
      %v2596 = vld [vmem:[%s16 + $0x8] sm:$0xf]
      %v2597 = vld [vmem:[%s17] sm:$0xff]
      %v2598 = vld [vmem:[%s17 + $0x8] sm:$0xf]
      %v2599 = vld [vmem:[%s765] sm:$0xff]
      %v2600 = vld [vmem:[%s765 + $0x8] sm:$0xf]
      %v2601 = vmul.f32 %v2563, %v1330
      %v2602 = vmul.f32 %v2577, %v1331
      %v2603 = vmul.f32 %v2591, %v1332
      %v2604 = vsel %vm835, %v2601, 0.0
      %v2605 = vsel %vm835, %v2602, 0.0
      %v2606 = vadd.f32 %v2604, %v2605
      %v2607 = vsel %vm835, %v2603, 0.0
      %v2608 = vadd.f32 %v2606, %v2607
      %2609 = vadd.xlane.f32.xlu0 %v2608
      %v2610 = vpop.xlane.xlu0 %2609
      %v2611 = vrot.slane %v2610, 4
      %v2612 = vadd.f32 %v2610, %v2611
      %v2613 = vrot.slane %v2612, 2
      %v2614 = vadd.f32 %v2612, %v2613
      %v2615 = vrot.slane %v2614, 1
      %v2616 = vadd.f32 %v2614, %v2615
      %s2617 = vtos %v2616
      %v2618 = vmul.f32 %v2601, %v2601
      %v2619 = vmul.f32 %v2602, %v2602
      %v2620 = vmul.f32 %v2603, %v2603
      %v2621 = vsel %vm835, %v2618, 0.0
      %v2622 = vsel %vm835, %v2619, 0.0
      %v2623 = vadd.f32 %v2621, %v2622
      %v2624 = vsel %vm835, %v2620, 0.0
      %v2625 = vadd.f32 %v2623, %v2624
      %2626 = vadd.xlane.f32.xlu0 %v2625
      %v2627 = vpop.xlane.xlu0 %2626
      %v2628 = vrot.slane %v2627, 4
      %v2629 = vadd.f32 %v2627, %v2628
      %v2630 = vrot.slane %v2629, 2
      %v2631 = vadd.f32 %v2629, %v2630
      %v2632 = vrot.slane %v2631, 1
      %v2633 = vadd.f32 %v2631, %v2632
      %s2634 = vtos %v2633
      %s2635 = smul.f32 %s2617, 0.0009765625
      %s2636 = smul.f32 %s2634, 0.0009765625
      %s2637 = smul.f32 %s2635, %s2635
      %s2638 = ssub.f32 %s2636, %s2637
      %s2639 = smax.f32 %s2638, 0.0
      %v2640 = vstv %s2635
      %v2641 = vsub.f32 %v2601, %v2640
      %v2642 = vsub.f32 %v2602, %v2640
      %v2643 = vsub.f32 %v2603, %v2640
      %s2644 = sadd.f32 %s2639, 1e-05
      %v2645 = vstv %s2644
      %v2646 = vrsqrt.pop %v2645
      %v2647 = vmul.f32 %v2646, %v2645
      %v2648 = vmul.f32 %v2647, %v2646
      %v2649 = vmul.f32 0.5, %v2648
      %v2650 = vsub.f32 1.5, %v2649
      %v2651 = vmul.f32 %v2646, %v2650
      %vm2652 = vweird.f32 %v2645
      %vm2653 = vweird.f32 %v2646
      %vm2654 = vmor %vm2652, %vm2653
      %v2655 = vsel %vm2654, %v2646, %v2651
      %s2656 = vtos %v2655
      %v2657 = vstv %s2656
      %v2658 = vmul.f32 %v2641, %v2657
      %v2659 = vmul.f32 %v2642, %v2657
      %v2660 = vmul.f32 %v2643, %v2657
      %2662 = vset.pattern.permute.xlu0 0
      %2663 = vperm.xlu0 %2662, %v2595
      %v2664 = vpop.permute.xlu0 %2663
      %v2666 = vmul.f32 %v2658, %v2664
      %v2667 = vmul.f32 %v2659, %v2664
      %v2668 = vmul.f32 %v2660, %v2664
      %2670 = vset.pattern.permute.xlu0 0
      %2671 = vperm.xlu0 %2670, %v2597
      %v2672 = vpop.permute.xlu0 %2671
      %v2674 = vadd.f32 %v2666, %v2672
      %v2675 = vadd.f32 %v2667, %v2672
      %v2676 = vadd.f32 %v2668, %v2672
      %v2677 = vmax.f32 %v2674, 0.0
      %v2678 = vmax.f32 %v2675, 0.0
      %v2679 = vmax.f32 %v2676, 0.0
      %2681 = vset.pattern.permute.xlu0 0
      %2682 = vperm.xlu0 %2681, %v2599
      %v2683 = vpop.permute.xlu0 %2682
      %v2685 = vmul.f32 %v2677, %v2683
      %v2686 = vmul.f32 %v2678, %v2683
      %v2687 = vmul.f32 %v2679, %v2683
      %v2688 = vadd.f32 %v2685, 0.0
      %v2689 = vadd.f32 %v2686, 0.0
      %v2690 = vadd.f32 %v2687, 0.0
      %v2694 = vrot.slane %v2601, 4
      %v2695 = vrot.slane %v2602, 4
      %v2696 = vrot.slane %v2603, 4
      %v2700 = vsel %vm835, %v2694, 0.0
      %v2701 = vsel %vm835, %v2695, 0.0
      %v2702 = vadd.f32 %v2700, %v2701
      %v2703 = vsel %vm835, %v2696, 0.0
      %v2704 = vadd.f32 %v2702, %v2703
      %2705 = vadd.xlane.f32.xlu0 %v2704
      %v2706 = vpop.xlane.xlu0 %2705
      %v2707 = vrot.slane %v2706, 4
      %v2708 = vadd.f32 %v2706, %v2707
      %v2709 = vrot.slane %v2708, 2
      %v2710 = vadd.f32 %v2708, %v2709
      %v2711 = vrot.slane %v2710, 1
      %v2712 = vadd.f32 %v2710, %v2711
      %s2713 = vtos %v2712
      %v2717 = vrot.slane %v2618, 4
      %v2718 = vrot.slane %v2619, 4
      %v2719 = vrot.slane %v2620, 4
      %v2723 = vsel %vm835, %v2717, 0.0
      %v2724 = vsel %vm835, %v2718, 0.0
      %v2725 = vadd.f32 %v2723, %v2724
      %v2726 = vsel %vm835, %v2719, 0.0
      %v2727 = vadd.f32 %v2725, %v2726
      %2728 = vadd.xlane.f32.xlu0 %v2727
      %v2729 = vpop.xlane.xlu0 %2728
      %v2730 = vrot.slane %v2729, 4
      %v2731 = vadd.f32 %v2729, %v2730
      %v2732 = vrot.slane %v2731, 2
      %v2733 = vadd.f32 %v2731, %v2732
      %v2734 = vrot.slane %v2733, 1
      %v2735 = vadd.f32 %v2733, %v2734
      %s2736 = vtos %v2735
      %s2737 = smul.f32 %s2713, 0.0009765625
      %s2738 = smul.f32 %s2736, 0.0009765625
      %s2739 = smul.f32 %s2737, %s2737
      %s2740 = ssub.f32 %s2738, %s2739
      %s2741 = smax.f32 %s2740, 0.0
      %v2742 = vstv %s2737
      %v2743 = vsub.f32 %v2601, %v2742
      %v2744 = vsub.f32 %v2602, %v2742
      %v2745 = vsub.f32 %v2603, %v2742
      %s2746 = sadd.f32 %s2741, 1e-05
      %v2747 = vstv %s2746
      %v2748 = vrsqrt.pop %v2747
      %v2749 = vmul.f32 %v2748, %v2747
      %v2750 = vmul.f32 %v2749, %v2748
      %v2751 = vmul.f32 0.5, %v2750
      %v2752 = vsub.f32 1.5, %v2751
      %v2753 = vmul.f32 %v2748, %v2752
      %vm2754 = vweird.f32 %v2747
      %vm2755 = vweird.f32 %v2748
      %vm2756 = vmor %vm2754, %vm2755
      %v2757 = vsel %vm2756, %v2748, %v2753
      %s2758 = vtos %v2757
      %v2759 = vstv %s2758
      %v2760 = vmul.f32 %v2743, %v2759
      %v2761 = vmul.f32 %v2744, %v2759
      %v2762 = vmul.f32 %v2745, %v2759
      %v2763 = vmul.f32 %v2760, %v2664
      %v2764 = vmul.f32 %v2761, %v2664
      %v2765 = vmul.f32 %v2762, %v2664
      %v2766 = vadd.f32 %v2763, %v2672
      %v2767 = vadd.f32 %v2764, %v2672
      %v2768 = vadd.f32 %v2765, %v2672
      %v2769 = vmax.f32 %v2766, 0.0
      %v2770 = vmax.f32 %v2767, 0.0
      %v2771 = vmax.f32 %v2768, 0.0
      %v2772 = vmul.f32 %v2769, %v2683
      %v2773 = vmul.f32 %v2770, %v2683
      %v2774 = vmul.f32 %v2771, %v2683
      %v2778 = vrot.slane %v2772, 4
      %v2779 = vrot.slane %v2773, 4
      %v2780 = vrot.slane %v2774, 4
      %v2784 = vadd.f32 %v2688, %v2778
      %v2785 = vadd.f32 %v2689, %v2779
      %v2786 = vadd.f32 %v2690, %v2780
      %v2787 = vmul.f32 %v2565, %v1330
      %v2788 = vmul.f32 %v2579, %v1331
      %v2789 = vmul.f32 %v2593, %v1332
      %v2790 = vsel %vm835, %v2787, 0.0
      %v2791 = vsel %vm835, %v2788, 0.0
      %v2792 = vadd.f32 %v2790, %v2791
      %v2793 = vsel %vm835, %v2789, 0.0
      %v2794 = vadd.f32 %v2792, %v2793
      %2795 = vadd.xlane.f32.xlu0 %v2794
      %v2796 = vpop.xlane.xlu0 %2795
      %v2797 = vrot.slane %v2796, 4
      %v2798 = vadd.f32 %v2796, %v2797
      %v2799 = vrot.slane %v2798, 2
      %v2800 = vadd.f32 %v2798, %v2799
      %v2801 = vrot.slane %v2800, 1
      %v2802 = vadd.f32 %v2800, %v2801
      %s2803 = vtos %v2802
      %v2804 = vmul.f32 %v2787, %v2787
      %v2805 = vmul.f32 %v2788, %v2788
      %v2806 = vmul.f32 %v2789, %v2789
      %v2807 = vsel %vm835, %v2804, 0.0
      %v2808 = vsel %vm835, %v2805, 0.0
      %v2809 = vadd.f32 %v2807, %v2808
      %v2810 = vsel %vm835, %v2806, 0.0
      %v2811 = vadd.f32 %v2809, %v2810
      %2812 = vadd.xlane.f32.xlu0 %v2811
      %v2813 = vpop.xlane.xlu0 %2812
      %v2814 = vrot.slane %v2813, 4
      %v2815 = vadd.f32 %v2813, %v2814
      %v2816 = vrot.slane %v2815, 2
      %v2817 = vadd.f32 %v2815, %v2816
      %v2818 = vrot.slane %v2817, 1
      %v2819 = vadd.f32 %v2817, %v2818
      %s2820 = vtos %v2819
      %s2821 = smul.f32 %s2803, 0.0009765625
      %s2822 = smul.f32 %s2820, 0.0009765625
      %s2823 = smul.f32 %s2821, %s2821
      %s2824 = ssub.f32 %s2822, %s2823
      %s2825 = smax.f32 %s2824, 0.0
      %v2826 = vstv %s2821
      %v2827 = vsub.f32 %v2787, %v2826
      %v2828 = vsub.f32 %v2788, %v2826
      %v2829 = vsub.f32 %v2789, %v2826
      %s2830 = sadd.f32 %s2825, 1e-05
      %v2831 = vstv %s2830
      %v2832 = vrsqrt.pop %v2831
      %v2833 = vmul.f32 %v2832, %v2831
      %v2834 = vmul.f32 %v2833, %v2832
      %v2835 = vmul.f32 0.5, %v2834
      %v2836 = vsub.f32 1.5, %v2835
      %v2837 = vmul.f32 %v2832, %v2836
      %vm2838 = vweird.f32 %v2831
      %vm2839 = vweird.f32 %v2832
      %vm2840 = vmor %vm2838, %vm2839
      %v2841 = vsel %vm2840, %v2832, %v2837
      %s2842 = vtos %v2841
      %v2843 = vstv %s2842
      %v2844 = vmul.f32 %v2827, %v2843
      %v2845 = vmul.f32 %v2828, %v2843
      %v2846 = vmul.f32 %v2829, %v2843
      %2848 = vset.pattern.permute.xlu0 0
      %2849 = vperm.xlu0 %2848, %v2596
      %v2850 = vpop.permute.xlu0 %2849
      %v2852 = vmul.f32 %v2844, %v2850
      %v2853 = vmul.f32 %v2845, %v2850
      %v2854 = vmul.f32 %v2846, %v2850
      %2856 = vset.pattern.permute.xlu0 0
      %2857 = vperm.xlu0 %2856, %v2598
      %v2858 = vpop.permute.xlu0 %2857
      %v2860 = vadd.f32 %v2852, %v2858
      %v2861 = vadd.f32 %v2853, %v2858
      %v2862 = vadd.f32 %v2854, %v2858
      %v2863 = vmax.f32 %v2860, 0.0
      %v2864 = vmax.f32 %v2861, 0.0
      %v2865 = vmax.f32 %v2862, 0.0
      %2867 = vset.pattern.permute.xlu0 0
      %2868 = vperm.xlu0 %2867, %v2600
      %v2869 = vpop.permute.xlu0 %2868
      %v2871 = vmul.f32 %v2863, %v2869
      %v2872 = vmul.f32 %v2864, %v2869
      %v2873 = vmul.f32 %v2865, %v2869
      %v2874 = vadd.f32 %v2784, %v2871
      %v2875 = vadd.f32 %v2785, %v2872
      %v2876 = vadd.f32 %v2786, %v2873
      %v2877 = vld [vmem:[%s769] sm:$0xf]
      %2879 = vset.pattern.permute.xlu0 0
      %2880 = vperm.xlu0 %2879, %v2877
      %v2881 = vpop.permute.xlu0 %2880
      %v2883 = vadd.f32 %v2874, %v2881
      %v2884 = vadd.f32 %v2875, %v2881
      %v2885 = vadd.f32 %v2876, %v2881
      %v2886 = vmul.f32 %v2337, %v1886
      %v2887 = vmul.f32 %v2338, %v1887
      %v2888 = vmul.f32 %v2339, %v1888
      %v2889 = vmul.f32 %v2883, %v1896
      %v2890 = vmul.f32 %v2884, %v1897
      %v2891 = vmul.f32 %v2885, %v1898
      %v2892 = vadd.f32 %v2886, %v2889
      %v2893 = vadd.f32 %v2887, %v2890
      %v2894 = vadd.f32 %v2888, %v2891
      %v2895 = vsel %vm835, %v2892, 0.0
      %v2896 = vsel %vm835, %v2893, 0.0
      %v2897 = vadd.f32 %v2895, %v2896
      %v2898 = vsel %vm835, %v2894, 0.0
      %v2899 = vadd.f32 %v2897, %v2898
      %2900 = vadd.xlane.f32.xlu0 %v2899
      %v2901 = vpop.xlane.xlu0 %2900
      %v2902 = vrot.slane %v2901, 4
      %v2903 = vadd.f32 %v2901, %v2902
      %v2904 = vrot.slane %v2903, 2
      %v2905 = vadd.f32 %v2903, %v2904
      %v2906 = vrot.slane %v2905, 1
      %v2907 = vadd.f32 %v2905, %v2906
      %s2908 = vtos %v2907
      %v2909 = vmul.f32 %v2892, %v2892
      %v2910 = vmul.f32 %v2893, %v2893
      %v2911 = vmul.f32 %v2894, %v2894
      %v2912 = vsel %vm835, %v2909, 0.0
      %v2913 = vsel %vm835, %v2910, 0.0
      %v2914 = vadd.f32 %v2912, %v2913
      %v2915 = vsel %vm835, %v2911, 0.0
      %v2916 = vadd.f32 %v2914, %v2915
      %2917 = vadd.xlane.f32.xlu0 %v2916
      %v2918 = vpop.xlane.xlu0 %2917
      %v2919 = vrot.slane %v2918, 4
      %v2920 = vadd.f32 %v2918, %v2919
      %v2921 = vrot.slane %v2920, 2
      %v2922 = vadd.f32 %v2920, %v2921
      %v2923 = vrot.slane %v2922, 1
      %v2924 = vadd.f32 %v2922, %v2923
      %s2925 = vtos %v2924
      %v2926 = vrcp.pop 1024.0
      %v2927 = vmul.f32 1024.0, %v2926
      %v2928 = vsub.f32 1.0, %v2927
      %v2929 = vmul.f32 %v2926, %v2928
      %v2930 = vadd.f32 %v2926, %v2929
      %vm2931 = vweird.f32 %v2926
      %v2932 = vsel %vm2931, %v2926, %v2930
      %s2933 = vtos %v2932
      %s2934 = smul.f32 %s2908, %s2933
      %s2935 = smul.f32 %s2934, 1024.0
      %s2936 = smul.f32 %s2935, %s2934
      %s2937 = ssub.f32 %s2925, %s2936
      %v2938 = vrcp.pop 1023.0
      %v2939 = vmul.f32 1023.0, %v2938
      %v2940 = vsub.f32 1.0, %v2939
      %v2941 = vmul.f32 %v2938, %v2940
      %v2942 = vadd.f32 %v2938, %v2941
      %vm2943 = vweird.f32 %v2938
      %v2944 = vsel %vm2943, %v2938, %v2942
      %s2945 = vtos %v2944
      %s2946 = smul.f32 %s2937, %s2945
      %s2947 = smax.f32 %s2946, 0.0
      %v2948 = vstv %s2934
      %v2949 = vsub.f32 %v2892, %v2948
      %v2950 = vsub.f32 %v2893, %v2948
      %v2951 = vsub.f32 %v2894, %v2948
      %v2952 = vstv %s2947
      %v2953 = vrsqrt.pop %v2952
      %v2954 = vmul.f32 %v2953, %v2952
      %v2955 = vmul.f32 %v2954, %v2953
      %v2956 = vmul.f32 0.5, %v2955
      %v2957 = vsub.f32 1.5, %v2956
      %v2958 = vmul.f32 %v2953, %v2957
      %v2959 = vmul.f32 %v2952, %v2958
      %vm2960 = vcmp.eq.f32.partialorder %v2952, inf
      %v2961 = vsel %vm2960, %v2952, %v2959
      %vm2962 = vcmp.eq.f32.partialorder %v2952, 0.0
      %v2963 = vand.u32 %v2952, 2147483648
      %v2964 = vsel %vm2962, %v2963, %v2961
      %s2965 = vtos %v2964
      %s2966 = sadd.f32 %s2965, 1e-05
      %v2967 = vstv %s2966
      %v2968 = vrcp.pop %v2967
      %v2969 = vmul.f32 %v2967, %v2968
      %v2970 = vsub.f32 1.0, %v2969
      %v2971 = vmul.f32 %v2968, %v2970
      %v2972 = vadd.f32 %v2968, %v2971
      %vm2973 = vweird.f32 %v2967
      %vm2974 = vweird.f32 %v2968
      %vm2975 = vmor %vm2973, %vm2974
      %v2976 = vsel %vm2975, %v2968, %v2972
      %v2977 = vand.u32 2147483647, %v2967
      %vm2978 = vcmp.eq.f32.partialorder %v2977, 8.507059e+37
      %v2979 = vand.u32 %v2967, 2147483648
      %v2980 = vor.u32 1.1754944e-38, %v2979
      %v2981 = vsel %vm2978, %v2980, %v2976
      %v2982 = vmul.f32 %v2949, %v2981
      %v2983 = vmul.f32 %v2950, %v2981
      %v2984 = vmul.f32 %v2951, %v2981
      %v2985 = vld [vmem:[%s20] sm:$0xf]
      %2987 = vset.pattern.permute.xlu0 0
      %2988 = vperm.xlu0 %2987, %v2985
      %v2989 = vpop.permute.xlu0 %2988
      %v2991 = vmul.f32 %v2982, %v2989
      %v2992 = vmul.f32 %v2983, %v2989
      %v2993 = vmul.f32 %v2984, %v2989
      %v2994 = vld [vmem:[%s21] sm:$0xf]
      %2996 = vset.pattern.permute.xlu0 0
      %2997 = vperm.xlu0 %2996, %v2994
      %v2998 = vpop.permute.xlu0 %2997
      %v3000 = vadd.f32 %v2991, %v2998
      %v3001 = vadd.f32 %v2992, %v2998
      %v3002 = vadd.f32 %v2993, %v2998
      %3003 = vst [vmem:[#allocation1] ss:$2 sm:$0xff] %v781
      %s3004 = scalar_lea.vmem [#allocation1], 16
      %3005 = vst [vmem:[%s3004] ss:$2 sm:$0xff] %v782
      %v3006 = vld.sshfl [vmem:[#allocation1] sm:$0xff pattern:$0x75316420]
      %v3007 = vld.sshfl [vmem:[#allocation1 + $0x8] sm:$0xff pattern:$0x75316420]
      %v3008 = vld.sshfl [vmem:[#allocation1 + $0x10] sm:$0xff pattern:$0x75316420]
      %v3012 = vadd.f32 %v3000, %v3006
      %v3013 = vadd.f32 %v3001, %v3007
      %v3014 = vadd.f32 %v3002, %v3008
      %v3017 = vrot.slane %v3013, 4
      %v3018 = vsel %vm835, %v3012, %v3017
      %3020 = vst [vmem:[%s774] sm:$0xff] %v3018
      %3021 = vst [vmem:[%s774 + $0x8] sm:$0xf] %v3014
      %p3022 = scmp.lt.s32.totalorder %s33, 1
      %s3023 = scalar_select %p3022, %s33, 1
      %s3024 = smul.addr %s3023, 3
      %s3025 = smul.addr %s3024, 4
      %s3026 = scalar_lea.vmem %s22, %s3025
      // Predicated region
      $region109: #{lighting_res_blocks_forward.4} parent=107 // pred_check
        %p3027 = pneg %p543
      $region110: #{lighting_res_blocks_forward.4} parent=107 // pred_check_branch
        %3029 = sbr.rel (%p3027) target = $region112
      $region111: #{lighting_res_blocks_forward.4} parent=107 // pred_region
        _
      $region112: #{lighting_res_blocks_forward.4} parent=107 // pred_fallthru
        _
    $region108: #{lighting_res_blocks_forward.4} parent=5 // pred_fallthru
      _
    %p3030 = scmp.le.s32.totalorder 2, %s28
    // Predicated region
    $region113: #{lighting_res_blocks_forward.4} parent=5 // pred_check
      %p3031 = pneg %p3030
    $region114: #{lighting_res_blocks_forward.4} parent=5 // pred_check_branch
      %3033 = sbr.rel (%p3031) target = $region116
    $region115: #{lighting_res_blocks_forward.4} parent=5 // pred_region
      %s3034 = ssub.s32 %s28, 2
      // Predicated region
      $region117: #{lighting_res_blocks_forward.4} parent=115 // pred_check
        %p3035 = pneg %p549
      $region118: #{lighting_res_blocks_forward.4} parent=115 // pred_check_branch
        %3037 = sbr.rel (%p3035) target = $region120
      $region119: #{lighting_res_blocks_forward.4} parent=115 // pred_region
        %p3038 = scmp.lt.s32.totalorder %s34, 1
        %s3039 = scalar_select %p3038, %s34, 1
        %s3040 = smul.addr %s3039, 3
        %s3041 = smul.addr %s3040, 4
        %s3042 = scalar_lea.vmem %s22, %s3041
      $region120: #{lighting_res_blocks_forward.4} parent=115 // pred_fallthru
        _
    $region116: #{lighting_res_blocks_forward.4} parent=5 // pred_fallthru
      _
  $region6: #{lighting_res_blocks_forward.4} parent=0 // loop_footer
    %s32 = sadd.s32 1, %s28
  $region7: #{lighting_res_blocks_forward.4} parent=0 // loop_footer_branch
    %27 = sbr.rel target = $region3
  $region8: #{lighting_res_blocks_forward.4} parent=0 // loop_exit
    _

</llo_original>
